<compile_context>
chip_gen: v5e
topology: v5e:2x2
jax: 0.10.0
libtpu: 0.0.40
codegen_flags: <defaults>
</compile_context>

<pallas_src>
import functools

import jax
import jax.numpy as jnp
from jax.experimental import pallas as pl
from jax.experimental.pallas import tpu as pltpu

BN_EPS = 1e-5


def _round_up(x, n):
    return ((x + n - 1) // n) * n


def _vmem_capacity_bytes():
    """Physical per-core VMEM (128 MiB on v5e/v6e, 64 MiB on v7x)."""
    try:
        info = pltpu.get_tpu_info()
        cap = getattr(info, "vmem_capacity_bytes", None)
        if cap:
            return int(cap)
    except Exception:
        pass
    return 64 * 1024 * 1024  # conservative (v7x-sized) fallback


def _padded_bytes(shape, itemsize):
    """VMEM footprint of one block: last dim padded to 128 lanes, second-to-last
    to 8 sublanes (approximate; ignores sub-32-bit sublane packing)."""
    shape = tuple(shape)
    if not shape:
        return itemsize
    if len(shape) == 1:
        return _round_up(shape[0], 128) * itemsize
    total = itemsize * _round_up(shape[-1], 128) * _round_up(shape[-2], 8)
    for d in shape[:-2]:
        total *= d
    return total


def _tap_patch(x_ref, i, j, oh, ow, stride):
    """(oh, ow, cin) window of the padded input feeding conv tap (i, j)."""
    if stride == 1:
        return x_ref[pl.ds(i, oh), pl.ds(j, ow), :]
    # TODO(synk): strided sublane slicing may lower slowly on some Mosaic
    # versions; only stride == 1 is exercised by the demo below.
    x = x_ref[pl.ds(i, stride * (oh - 1) + 1), pl.ds(j, stride * (ow - 1) + 1), :]
    return x[::stride, ::stride, :]


def _conv_taps(x_ref, w_ref, acc_ref, *, kh, kw, oh, ow, cin, stride):
    """In-kernel im2col-free conv: KH*KW shifted (OH*OW, Cin) x (Cin, Cout_pad)
    MXU dots (bf16 operands, f32 accumulation into acc_ref)."""
    ohw = oh * ow
    for t in range(kh * kw):
        i, j = divmod(t, kw)
        patch = _tap_patch(x_ref, i, j, oh, ow, stride)       # (oh, ow, cin) bf16
        lhs = jnp.reshape(patch, (ohw, cin))
        contrib = jnp.dot(lhs, w_ref[t], preferred_element_type=jnp.float32)
        if t == 0:
            acc_ref[...] = contrib
        else:
            acc_ref[...] += contrib
    # TODO(synk): for small Cin the per-tap contraction under-fills the 256-wide
    # MXU on v6e/v7x; packing the KW taps into one KW*Cin contraction would
    # improve utilization for stem-like layers.


def _fused_kernel(x_ref, w_ref, b_ref, g_ref, bt_ref, o_ref,
                  acc_ref, sum_ref, sq_ref, *,
                  mode, kh, kw, oh, ow, cin, stride, has_relu, n_total):
    conv = functools.partial(_conv_taps, x_ref, w_ref, acc_ref,
                             kh=kh, kw=kw, oh=oh, ow=ow, cin=cin, stride=stride)
    inv_m = jnp.float32(1.0 / float(n_total * oh * ow))

    def scale_shift():
        # TODO(synk): E[x^2] - E[x]^2 in f32; a shifted / Welford accumulation
        # would be more robust for very large activation magnitudes.
        mean = sum_ref[...] * inv_m
        var = jnp.maximum(sq_ref[...] * inv_m - mean * mean, 0.0)
        scale = g_ref[...] * jax.lax.rsqrt(var + BN_EPS)
        shift = bt_ref[...] - mean * scale
        return scale, shift

    if mode == "nobn":                        # conv (+bias) (+relu), single pass
        conv()
        y = acc_ref[...] + b_ref[...]
        if has_relu:
            y = jnp.maximum(y, 0.0)
        o_ref[...] = y.astype(o_ref.dtype)

    elif mode == "bn_resident":               # single pass, output resident in VMEM
        nidx = pl.program_id(0)
        conv()
        acc = acc_ref[...]

        @pl.when(nidx == 0)
        def _():
            sum_ref[...] = jnp.zeros_like(sum_ref)
            sq_ref[...] = jnp.zeros_like(sq_ref)

        sum_ref[...] += jnp.sum(acc, axis=0, keepdims=True)
        sq_ref[...] += jnp.sum(acc * acc, axis=0, keepdims=True)
        # Conv bias skipped under BN: it cancels under batch-mean subtraction.
        o_ref[nidx] = acc.astype(o_ref.dtype)

        @pl.when(nidx == n_total - 1)
        def _():
            scale, shift = scale_shift()

            def body(b, carry):
                yb = o_ref[b].astype(jnp.float32) * scale + shift
                if has_relu:
                    yb = jnp.maximum(yb, 0.0)
                o_ref[b] = yb.astype(o_ref.dtype)
                return carry

            jax.lax.fori_loop(0, n_total, body, 0)

    else:                                     # "bn_twopass": stats pass + store pass
        p = pl.program_id(0)
        nidx = pl.program_id(1)
        conv()
        acc = acc_ref[...]

        @pl.when(jnp.logical_and(p == 0, nidx == 0))
        def _():
            sum_ref[...] = jnp.zeros_like(sum_ref)
            sq_ref[...] = jnp.zeros_like(sq_ref)

        @pl.when(p == 0)
        def _():
            sum_ref[...] += jnp.sum(acc, axis=0, keepdims=True)
            sq_ref[...] += jnp.sum(acc * acc, axis=0, keepdims=True)

        @pl.when(p == 1)
        def _():
            scale, shift = scale_shift()
            y = acc * scale + shift
            if has_relu:
                y = jnp.maximum(y, 0.0)
            o_ref[...] = y.astype(o_ref.dtype)


def conv_bn_relu_forward(x_nchw, weight, bias, gamma, beta, *,
                         stride=1, padding=1, has_bn=True, has_relu=True,
                         out_dtype=jnp.float32, force_two_pass=False):
    """Forward of conv_bn_relu (NCHW in / NCHW out), groups=1."""
    n, cin, h, w = x_nchw.shape
    cout, cin_w, kh, kw = weight.shape
    assert cin_w == cin, "grouped conv not supported"  # TODO(synk): groups > 1
    oh = (h + 2 * padding - kh) // stride + 1
    ow = (w + 2 * padding - kw) // stride + 1
    ohw = oh * ow
    hp, wp = h + 2 * padding, w + 2 * padding

    # ---- wrapper glue: NHWC layout + spatial zero-pad, bf16 MXU operands ----
    x_nhwc = jnp.transpose(x_nchw, (0, 2, 3, 1)).astype(jnp.float32)
    x_p = jnp.pad(x_nhwc, ((0, 0), (padding, padding), (padding, padding),
                           (0, 0))).astype(jnp.bfloat16)

    cout_pad = _round_up(cout, 128)            # lane-dense output channels
    w_taps = jnp.transpose(weight, (2, 3, 1, 0)).reshape(kh * kw, cin, cout)
    w_taps = jnp.pad(w_taps.astype(jnp.float32),
                     ((0, 0), (0, 0), (0, cout_pad - cout))).astype(jnp.bfloat16)
    pad_c = ((0, 0), (0, cout_pad - cout))
    b_p = jnp.pad(bias.reshape(1, cout).astype(jnp.float32), pad_c)
    g_p = jnp.pad(gamma.reshape(1, cout).astype(jnp.float32), pad_c)
    bt_p = jnp.pad(beta.reshape(1, cout).astype(jnp.float32), pad_c)

    # ---- per-generation VMEM budgeting --------------------------------------
    cap = _vmem_capacity_bytes()
    budget = int(cap * 0.55)
    vmem_limit = max(32 << 20, min(int(cap * 0.75), 112 << 20))

    out_isz = jnp.dtype(out_dtype).itemsize
    base = (2 * _padded_bytes((hp, wp, cin), 2)               # input block (dbl-buf)
            + 2 * _padded_bytes((kh * kw, cin, cout_pad), 2)  # per-tap weights
            + _padded_bytes((ohw, cout_pad), 4)               # f32 conv accumulator
            + 8 * _padded_bytes((1, cout_pad), 4))            # bias/gamma/beta/stats
    fits_resident = base + 2 * _padded_bytes((n * ohw, cout_pad), out_isz) <= budget

    if not has_bn:
        mode = "nobn"
        grid = (n,)
        x_spec = pl.BlockSpec((None, hp, wp, cin), lambda i: (i, 0, 0, 0))
        w_spec = pl.BlockSpec((kh * kw, cin, cout_pad), lambda i: (0, 0, 0))
        c_spec = pl.BlockSpec((1, cout_pad), lambda i: (0, 0))
        out_spec = pl.BlockSpec((None, ohw, cout_pad), lambda i: (i, 0, 0))
        dims = ("parallel",)                  # v7x: batch axis over both TCs
    elif fits_resident and not force_two_pass:
        mode = "bn_resident"
        grid = (n,)
        x_spec = pl.BlockSpec((None, hp, wp, cin), lambda i: (i, 0, 0, 0))
        w_spec = pl.BlockSpec((kh * kw, cin, cout_pad), lambda i: (0, 0, 0))
        c_spec = pl.BlockSpec((1, cout_pad), lambda i: (0, 0))
        out_spec = pl.BlockSpec((n, ohw, cout_pad), lambda i: (0, 0, 0))
        dims = ("arbitrary",)                 # sequential stats + resident output
    else:
        mode = "bn_twopass"
        grid = (2, n)
        x_spec = pl.BlockSpec((None, hp, wp, cin), lambda p, i: (i, 0, 0, 0))
        w_spec = pl.BlockSpec((kh * kw, cin, cout_pad), lambda p, i: (0, 0, 0))
        c_spec = pl.BlockSpec((1, cout_pad), lambda p, i: (0, 0))
        # Pass 0 pins the output to block 0 -> no HBM writeback during stats.
        out_spec = pl.BlockSpec((None, ohw, cout_pad), lambda p, i: (p * i, 0, 0))
        dims = ("arbitrary", "arbitrary")
    # TODO(synk): single-buffer the constant-index operands via
    # pipeline_mode=pl.Buffered(1) to free VMEM on v7x.
    # TODO(synk): with BN, per-core partial sum/sumsq + combine would let the
    # batch axis run core-parallel on v7x; kept sequential here.

    kernel = functools.partial(
        _fused_kernel, mode=mode, kh=kh, kw=kw, oh=oh, ow=ow, cin=cin,
        stride=stride, has_relu=has_relu, n_total=n)

    out3d = pl.pallas_call(
        kernel,
        out_shape=jax.ShapeDtypeStruct((n, ohw, cout_pad), out_dtype),
        grid_spec=pltpu.PrefetchScalarGridSpec(
            num_scalar_prefetch=0,
            grid=grid,
            in_specs=[x_spec, w_spec, c_spec, c_spec, c_spec],
            out_specs=out_spec,
            scratch_shapes=[pltpu.VMEM((ohw, cout_pad), jnp.float32),   # conv acc
                            pltpu.VMEM((1, cout_pad), jnp.float32),     # BN sum
                            pltpu.VMEM((1, cout_pad), jnp.float32)]),   # BN sumsq
        compiler_params=pltpu.CompilerParams(
            dimension_semantics=dims,
            vmem_limit_bytes=vmem_limit),
    )(x_p, w_taps, b_p, g_p, bt_p)

    out = out3d[:, :, :cout].reshape(n, oh, ow, cout)
    return jnp.transpose(out, (0, 3, 1, 2))                    # NCHW


def _reference(x, weight, bias, gamma, beta, *, stride, padding,
               has_bn=True, has_relu=True):
    # bf16 conv operands with f32 accumulation — same datapath as the kernel.
    out = jax.lax.conv_general_dilated(
        x.astype(jnp.bfloat16), weight.astype(jnp.bfloat16),
        window_strides=(stride, stride),
        padding=[(padding, padding), (padding, padding)],
        dimension_numbers=("NCHW", "OIHW", "NCHW"),
        preferred_element_type=jnp.float32)
    out = out + bias.reshape(1, -1, 1, 1)
    if has_bn:
        mean = out.mean(axis=(0, 2, 3), keepdims=True)
        var = ((out - mean) ** 2).mean(axis=(0, 2, 3), keepdims=True)
        out = (out - mean) / jnp.sqrt(var + BN_EPS)
        out = out * gamma.reshape(1, -1, 1, 1) + beta.reshape(1, -1, 1, 1)
    if has_relu:
        out = jnp.maximum(out, 0.0)
    return out


if __name__ == "__main__":
    # Module config: conv_bn_relu(in_planes=4, out_planes=8, kernel_size=3,
    #                             stride=1, padding=1, has_bn=True, has_relu=True)
    N, CIN, H, W = 2, 4, 16, 16
    COUT, KH, KW = 8, 3, 3
    STRIDE, PADDING = 1, 1

    key = jax.random.PRNGKey(0)
    kx, kw_, kb, kg, kbt = jax.random.split(key, 5)

    x = jax.random.normal(kx, (N, CIN, H, W), dtype=jnp.float32)
    weight = jax.random.normal(kw_, (COUT, CIN, KH, KW), dtype=jnp.float32) * 0.1
    bias = jax.random.normal(kb, (COUT,), dtype=jnp.float32) * 0.1
    gamma = 1.0 + 0.1 * jax.random.normal(kg, (COUT,), dtype=jnp.float32)
    beta = 0.1 * jax.random.normal(kbt, (COUT,), dtype=jnp.float32)

    ref_bn = _reference(x, weight, bias, gamma, beta,
                        stride=STRIDE, padding=PADDING,
                        has_bn=True, has_relu=True)

    # 1) Fused conv + BN + ReLU — VMEM-resident single-pass path (no GEMM
    #    recompute, single HBM writeback), f32 output.
    out = jax.block_until_ready(conv_bn_relu_forward(
        x, weight, bias, gamma, beta, stride=STRIDE, padding=PADDING,
        has_bn=True, has_relu=True))
    assert out.shape == (N, COUT, H, W), out.shape
    assert jnp.allclose(out, ref_bn, atol=3e-3, rtol=3e-3), (
        float(jnp.max(jnp.abs(out - ref_bn))))

    # 2) Two-pass BN path (taken automatically for feature maps too large to
    #    stay resident) with bf16 output store.
    out2 = jax.block_until_ready(conv_bn_relu_forward(
        x, weight, bias, gamma, beta, stride=STRIDE, padding=PADDING,
        has_bn=True, has_relu=True, force_two_pass=True,
        out_dtype=jnp.bfloat16))
    assert jnp.allclose(out2.astype(jnp.float32), ref_bn,
                        atol=3e-2, rtol=3e-2), (
        float(jnp.max(jnp.abs(out2.astype(jnp.float32) - ref_bn))))

    # 3) conv + bias + ReLU (no BN) — single pass, batch axis "parallel".
    ref_nobn = _reference(x, weight, bias, gamma, beta,
                          stride=STRIDE, padding=PADDING,
                          has_bn=False, has_relu=True)
    out3 = jax.block_until_ready(conv_bn_relu_forward(
        x, weight, bias, gamma, beta, stride=STRIDE, padding=PADDING,
        has_bn=False, has_relu=True))
    assert jnp.allclose(out3, ref_nobn, atol=3e-3, rtol=3e-3), (
        float(jnp.max(jnp.abs(out3 - ref_nobn))))

    print("KERNEL_OK")
</pallas_src>

<mosaic_0001>
module attributes {stable_mosaic.version = 11 : i64} {
  func.func @_fused_kernel(%arg0: i32, %arg1: memref<1x18x18x4xbf16, #tpu.memory_space<vmem>>, %arg2: memref<9x4x128xbf16, #tpu.memory_space<vmem>>, %arg3: memref<1x128xf32, #tpu.memory_space<vmem>>, %arg4: memref<1x128xf32, #tpu.memory_space<vmem>>, %arg5: memref<1x128xf32, #tpu.memory_space<vmem>>, %arg6: memref<2x256x128xf32, #tpu.memory_space<vmem>>, %arg7: memref<256x128xf32, #tpu.memory_space<vmem>>, %arg8: memref<1x128xf32, #tpu.memory_space<vmem>>, %arg9: memref<1x128xf32, #tpu.memory_space<vmem>>) attributes {dimension_semantics = [#tpu.dimension_semantics<arbitrary>], iteration_bounds = array<i64: 2>, scalar_prefetch = 0 : i64, scratch_operands = 3 : i64, tpu.core_type = #tpu.core_type<tc>, window_params = [{transform_indices = @transform_0, window_bounds = array<i64: 1, 18, 18, 4>}, {pipeline_mode = #tpu.pipeline_mode<synchronous>, transform_indices = @transform_1, window_bounds = array<i64: 9, 4, 128>}, {pipeline_mode = #tpu.pipeline_mode<synchronous>, transform_indices = @transform_2, window_bounds = array<i64: 1, 128>}, {pipeline_mode = #tpu.pipeline_mode<synchronous>, transform_indices = @transform_3, window_bounds = array<i64: 1, 128>}, {pipeline_mode = #tpu.pipeline_mode<synchronous>, transform_indices = @transform_4, window_bounds = array<i64: 1, 128>}, {pipeline_mode = #tpu.pipeline_mode<synchronous>, transform_indices = @transform_5, window_bounds = array<i64: 2, 256, 128>}]} {
    %c0 = arith.constant 0 : index
    %c0_0 = arith.constant 0 : index
    %c0_1 = arith.constant 0 : index
    %c0_2 = arith.constant 0 : index
    %0 = vector.load %arg1[%c0, %c0_0, %c0_1, %c0_2] : memref<1x18x18x4xbf16, #tpu.memory_space<vmem>>, vector<1x16x16x4xbf16>
    %1 = vector.shape_cast %0 : vector<1x16x16x4xbf16> to vector<16x16x4xbf16>
    %2 = vector.shape_cast %1 : vector<16x16x4xbf16> to vector<256x4xbf16>
    %c0_3 = arith.constant 0 : index
    %c0_4 = arith.constant 0 : index
    %c0_5 = arith.constant 0 : index
    %3 = vector.load %arg2[%c0_3, %c0_4, %c0_5] : memref<9x4x128xbf16, #tpu.memory_space<vmem>>, vector<1x4x128xbf16>
    %4 = vector.shape_cast %3 : vector<1x4x128xbf16> to vector<4x128xbf16>
    %cst = arith.constant dense<0.000000e+00> : vector<256x128xf32>
    %5 = tpu.matmul %2, %4, %cst {dimension_numbers = #tpu.dot_dimension_numbers<[1], [0], [0], [1], [0, 0, 1, 1], [], []>} : vector<256x4xbf16>, vector<4x128xbf16>, vector<256x128xf32> -> vector<256x128xf32>
    %c0_6 = arith.constant 0 : index
    %c0_7 = arith.constant 0 : index
    %6 = vector.load %arg7[%c0_6, %c0_7] : memref<256x128xf32, #tpu.memory_space<vmem>>, vector<256x128xf32>
    tpu.vector_store %arg7[%c0_6, %c0_7], %5 {strides = array<i32>} : memref<256x128xf32, #tpu.memory_space<vmem>>, vector<256x128xf32>,
    %c0_8 = arith.constant 0 : index
    %c0_9 = arith.constant 0 : index
    %c1 = arith.constant 1 : index
    %c0_10 = arith.constant 0 : index
    %7 = vector.load %arg1[%c0_8, %c0_9, %c1, %c0_10] : memref<1x18x18x4xbf16, #tpu.memory_space<vmem>>, vector<1x16x16x4xbf16>
    %8 = vector.shape_cast %7 : vector<1x16x16x4xbf16> to vector<16x16x4xbf16>
    %9 = vector.shape_cast %8 : vector<16x16x4xbf16> to vector<256x4xbf16>
    %c1_11 = arith.constant 1 : index
    %c0_12 = arith.constant 0 : index
    %c0_13 = arith.constant 0 : index
    %10 = vector.load %arg2[%c1_11, %c0_12, %c0_13] : memref<9x4x128xbf16, #tpu.memory_space<vmem>>, vector<1x4x128xbf16>
    %11 = vector.shape_cast %10 : vector<1x4x128xbf16> to vector<4x128xbf16>
    %cst_14 = arith.constant dense<0.000000e+00> : vector<256x128xf32>
    %12 = tpu.matmul %9, %11, %cst_14 {dimension_numbers = #tpu.dot_dimension_numbers<[1], [0], [0], [1], [0, 0, 1, 1], [], []>} : vector<256x4xbf16>, vector<4x128xbf16>, vector<256x128xf32> -> vector<256x128xf32>
    %c0_15 = arith.constant 0 : index
    %c0_16 = arith.constant 0 : index
    %13 = vector.load %arg7[%c0_15, %c0_16] : memref<256x128xf32, #tpu.memory_space<vmem>>, vector<256x128xf32>
    %14 = arith.addf %13, %12 : vector<256x128xf32>
    %c0_17 = arith.constant 0 : index
    %c0_18 = arith.constant 0 : index
    %15 = vector.load %arg7[%c0_17, %c0_18] : memref<256x128xf32, #tpu.memory_space<vmem>>, vector<256x128xf32>
    tpu.vector_store %arg7[%c0_17, %c0_18], %14 {strides = array<i32>} : memref<256x128xf32, #tpu.memory_space<vmem>>, vector<256x128xf32>,
    %c0_19 = arith.constant 0 : index
    %c0_20 = arith.constant 0 : index
    %c2 = arith.constant 2 : index
    %c0_21 = arith.constant 0 : index
    %16 = vector.load %arg1[%c0_19, %c0_20, %c2, %c0_21] : memref<1x18x18x4xbf16, #tpu.memory_space<vmem>>, vector<1x16x16x4xbf16>
    %17 = vector.shape_cast %16 : vector<1x16x16x4xbf16> to vector<16x16x4xbf16>
    %18 = vector.shape_cast %17 : vector<16x16x4xbf16> to vector<256x4xbf16>
    %c2_22 = arith.constant 2 : index
    %c0_23 = arith.constant 0 : index
    %c0_24 = arith.constant 0 : index
    %19 = vector.load %arg2[%c2_22, %c0_23, %c0_24] : memref<9x4x128xbf16, #tpu.memory_space<vmem>>, vector<1x4x128xbf16>
    %20 = vector.shape_cast %19 : vector<1x4x128xbf16> to vector<4x128xbf16>
    %cst_25 = arith.constant dense<0.000000e+00> : vector<256x128xf32>
    %21 = tpu.matmul %18, %20, %cst_25 {dimension_numbers = #tpu.dot_dimension_numbers<[1], [0], [0], [1], [0, 0, 1, 1], [], []>} : vector<256x4xbf16>, vector<4x128xbf16>, vector<256x128xf32> -> vector<256x128xf32>
    %c0_26 = arith.constant 0 : index
    %c0_27 = arith.constant 0 : index
    %22 = vector.load %arg7[%c0_26, %c0_27] : memref<256x128xf32, #tpu.memory_space<vmem>>, vector<256x128xf32>
    %23 = arith.addf %22, %21 : vector<256x128xf32>
    %c0_28 = arith.constant 0 : index
    %c0_29 = arith.constant 0 : index
    %24 = vector.load %arg7[%c0_28, %c0_29] : memref<256x128xf32, #tpu.memory_space<vmem>>, vector<256x128xf32>
    tpu.vector_store %arg7[%c0_28, %c0_29], %23 {strides = array<i32>} : memref<256x128xf32, #tpu.memory_space<vmem>>, vector<256x128xf32>,
    %c0_30 = arith.constant 0 : index
    %c1_31 = arith.constant 1 : index
    %c0_32 = arith.constant 0 : index
    %c0_33 = arith.constant 0 : index
    %25 = vector.load %arg1[%c0_30, %c1_31, %c0_32, %c0_33] : memref<1x18x18x4xbf16, #tpu.memory_space<vmem>>, vector<1x16x16x4xbf16>
    %26 = vector.shape_cast %25 : vector<1x16x16x4xbf16> to vector<16x16x4xbf16>
    %27 = vector.shape_cast %26 : vector<16x16x4xbf16> to vector<256x4xbf16>
    %c3 = arith.constant 3 : index
    %c0_34 = arith.constant 0 : index
    %c0_35 = arith.constant 0 : index
    %28 = vector.load %arg2[%c3, %c0_34, %c0_35] : memref<9x4x128xbf16, #tpu.memory_space<vmem>>, vector<1x4x128xbf16>
    %29 = vector.shape_cast %28 : vector<1x4x128xbf16> to vector<4x128xbf16>
    %cst_36 = arith.constant dense<0.000000e+00> : vector<256x128xf32>
    %30 = tpu.matmul %27, %29, %cst_36 {dimension_numbers = #tpu.dot_dimension_numbers<[1], [0], [0], [1], [0, 0, 1, 1], [], []>} : vector<256x4xbf16>, vector<4x128xbf16>, vector<256x128xf32> -> vector<256x128xf32>
    %c0_37 = arith.constant 0 : index
    %c0_38 = arith.constant 0 : index
    %31 = vector.load %arg7[%c0_37, %c0_38] : memref<256x128xf32, #tpu.memory_space<vmem>>, vector<256x128xf32>
    %32 = arith.addf %31, %30 : vector<256x128xf32>
    %c0_39 = arith.constant 0 : index
    %c0_40 = arith.constant 0 : index
    %33 = vector.load %arg7[%c0_39, %c0_40] : memref<256x128xf32, #tpu.memory_space<vmem>>, vector<256x128xf32>
    tpu.vector_store %arg7[%c0_39, %c0_40], %32 {strides = array<i32>} : memref<256x128xf32, #tpu.memory_space<vmem>>, vector<256x128xf32>,
    %c0_41 = arith.constant 0 : index
    %c1_42 = arith.constant 1 : index
    %c1_43 = arith.constant 1 : index
    %c0_44 = arith.constant 0 : index
    %34 = vector.load %arg1[%c0_41, %c1_42, %c1_43, %c0_44] : memref<1x18x18x4xbf16, #tpu.memory_space<vmem>>, vector<1x16x16x4xbf16>
    %35 = vector.shape_cast %34 : vector<1x16x16x4xbf16> to vector<16x16x4xbf16>
    %36 = vector.shape_cast %35 : vector<16x16x4xbf16> to vector<256x4xbf16>
    %c4 = arith.constant 4 : index
    %c0_45 = arith.constant 0 : index
    %c0_46 = arith.constant 0 : index
    %37 = vector.load %arg2[%c4, %c0_45, %c0_46] : memref<9x4x128xbf16, #tpu.memory_space<vmem>>, vector<1x4x128xbf16>
    %38 = vector.shape_cast %37 : vector<1x4x128xbf16> to vector<4x128xbf16>
    %cst_47 = arith.constant dense<0.000000e+00> : vector<256x128xf32>
    %39 = tpu.matmul %36, %38, %cst_47 {dimension_numbers = #tpu.dot_dimension_numbers<[1], [0], [0], [1], [0, 0, 1, 1], [], []>} : vector<256x4xbf16>, vector<4x128xbf16>, vector<256x128xf32> -> vector<256x128xf32>
    %c0_48 = arith.constant 0 : index
    %c0_49 = arith.constant 0 : index
    %40 = vector.load %arg7[%c0_48, %c0_49] : memref<256x128xf32, #tpu.memory_space<vmem>>, vector<256x128xf32>
    %41 = arith.addf %40, %39 : vector<256x128xf32>
    %c0_50 = arith.constant 0 : index
    %c0_51 = arith.constant 0 : index
    %42 = vector.load %arg7[%c0_50, %c0_51] : memref<256x128xf32, #tpu.memory_space<vmem>>, vector<256x128xf32>
    tpu.vector_store %arg7[%c0_50, %c0_51], %41 {strides = array<i32>} : memref<256x128xf32, #tpu.memory_space<vmem>>, vector<256x128xf32>,
    %c0_52 = arith.constant 0 : index
    %c1_53 = arith.constant 1 : index
    %c2_54 = arith.constant 2 : index
    %c0_55 = arith.constant 0 : index
    %43 = vector.load %arg1[%c0_52, %c1_53, %c2_54, %c0_55] : memref<1x18x18x4xbf16, #tpu.memory_space<vmem>>, vector<1x16x16x4xbf16>
    %44 = vector.shape_cast %43 : vector<1x16x16x4xbf16> to vector<16x16x4xbf16>
    %45 = vector.shape_cast %44 : vector<16x16x4xbf16> to vector<256x4xbf16>
    %c5 = arith.constant 5 : index
    %c0_56 = arith.constant 0 : index
    %c0_57 = arith.constant 0 : index
    %46 = vector.load %arg2[%c5, %c0_56, %c0_57] : memref<9x4x128xbf16, #tpu.memory_space<vmem>>, vector<1x4x128xbf16>
    %47 = vector.shape_cast %46 : vector<1x4x128xbf16> to vector<4x128xbf16>
    %cst_58 = arith.constant dense<0.000000e+00> : vector<256x128xf32>
    %48 = tpu.matmul %45, %47, %cst_58 {dimension_numbers = #tpu.dot_dimension_numbers<[1], [0], [0], [1], [0, 0, 1, 1], [], []>} : vector<256x4xbf16>, vector<4x128xbf16>, vector<256x128xf32> -> vector<256x128xf32>
    %c0_59 = arith.constant 0 : index
    %c0_60 = arith.constant 0 : index
    %49 = vector.load %arg7[%c0_59, %c0_60] : memref<256x128xf32, #tpu.memory_space<vmem>>, vector<256x128xf32>
    %50 = arith.addf %49, %48 : vector<256x128xf32>
    %c0_61 = arith.constant 0 : index
    %c0_62 = arith.constant 0 : index
    %51 = vector.load %arg7[%c0_61, %c0_62] : memref<256x128xf32, #tpu.memory_space<vmem>>, vector<256x128xf32>
    tpu.vector_store %arg7[%c0_61, %c0_62], %50 {strides = array<i32>} : memref<256x128xf32, #tpu.memory_space<vmem>>, vector<256x128xf32>,
    %c0_63 = arith.constant 0 : index
    %c2_64 = arith.constant 2 : index
    %c0_65 = arith.constant 0 : index
    %c0_66 = arith.constant 0 : index
    %52 = vector.load %arg1[%c0_63, %c2_64, %c0_65, %c0_66] : memref<1x18x18x4xbf16, #tpu.memory_space<vmem>>, vector<1x16x16x4xbf16>
    %53 = vector.shape_cast %52 : vector<1x16x16x4xbf16> to vector<16x16x4xbf16>
    %54 = vector.shape_cast %53 : vector<16x16x4xbf16> to vector<256x4xbf16>
    %c6 = arith.constant 6 : index
    %c0_67 = arith.constant 0 : index
    %c0_68 = arith.constant 0 : index
    %55 = vector.load %arg2[%c6, %c0_67, %c0_68] : memref<9x4x128xbf16, #tpu.memory_space<vmem>>, vector<1x4x128xbf16>
    %56 = vector.shape_cast %55 : vector<1x4x128xbf16> to vector<4x128xbf16>
    %cst_69 = arith.constant dense<0.000000e+00> : vector<256x128xf32>
    %57 = tpu.matmul %54, %56, %cst_69 {dimension_numbers = #tpu.dot_dimension_numbers<[1], [0], [0], [1], [0, 0, 1, 1], [], []>} : vector<256x4xbf16>, vector<4x128xbf16>, vector<256x128xf32> -> vector<256x128xf32>
    %c0_70 = arith.constant 0 : index
    %c0_71 = arith.constant 0 : index
    %58 = vector.load %arg7[%c0_70, %c0_71] : memref<256x128xf32, #tpu.memory_space<vmem>>, vector<256x128xf32>
    %59 = arith.addf %58, %57 : vector<256x128xf32>
    %c0_72 = arith.constant 0 : index
    %c0_73 = arith.constant 0 : index
    %60 = vector.load %arg7[%c0_72, %c0_73] : memref<256x128xf32, #tpu.memory_space<vmem>>, vector<256x128xf32>
    tpu.vector_store %arg7[%c0_72, %c0_73], %59 {strides = array<i32>} : memref<256x128xf32, #tpu.memory_space<vmem>>, vector<256x128xf32>,
    %c0_74 = arith.constant 0 : index
    %c2_75 = arith.constant 2 : index
    %c1_76 = arith.constant 1 : index
    %c0_77 = arith.constant 0 : index
    %61 = vector.load %arg1[%c0_74, %c2_75, %c1_76, %c0_77] : memref<1x18x18x4xbf16, #tpu.memory_space<vmem>>, vector<1x16x16x4xbf16>
    %62 = vector.shape_cast %61 : vector<1x16x16x4xbf16> to vector<16x16x4xbf16>
    %63 = vector.shape_cast %62 : vector<16x16x4xbf16> to vector<256x4xbf16>
    %c7 = arith.constant 7 : index
    %c0_78 = arith.constant 0 : index
    %c0_79 = arith.constant 0 : index
    %64 = vector.load %arg2[%c7, %c0_78, %c0_79] : memref<9x4x128xbf16, #tpu.memory_space<vmem>>, vector<1x4x128xbf16>
    %65 = vector.shape_cast %64 : vector<1x4x128xbf16> to vector<4x128xbf16>
    %cst_80 = arith.constant dense<0.000000e+00> : vector<256x128xf32>
    %66 = tpu.matmul %63, %65, %cst_80 {dimension_numbers = #tpu.dot_dimension_numbers<[1], [0], [0], [1], [0, 0, 1, 1], [], []>} : vector<256x4xbf16>, vector<4x128xbf16>, vector<256x128xf32> -> vector<256x128xf32>
    %c0_81 = arith.constant 0 : index
    %c0_82 = arith.constant 0 : index
    %67 = vector.load %arg7[%c0_81, %c0_82] : memref<256x128xf32, #tpu.memory_space<vmem>>, vector<256x128xf32>
    %68 = arith.addf %67, %66 : vector<256x128xf32>
    %c0_83 = arith.constant 0 : index
    %c0_84 = arith.constant 0 : index
    %69 = vector.load %arg7[%c0_83, %c0_84] : memref<256x128xf32, #tpu.memory_space<vmem>>, vector<256x128xf32>
    tpu.vector_store %arg7[%c0_83, %c0_84], %68 {strides = array<i32>} : memref<256x128xf32, #tpu.memory_space<vmem>>, vector<256x128xf32>,
    %c0_85 = arith.constant 0 : index
    %c2_86 = arith.constant 2 : index
    %c2_87 = arith.constant 2 : index
    %c0_88 = arith.constant 0 : index
    %70 = vector.load %arg1[%c0_85, %c2_86, %c2_87, %c0_88] : memref<1x18x18x4xbf16, #tpu.memory_space<vmem>>, vector<1x16x16x4xbf16>
    %71 = vector.shape_cast %70 : vector<1x16x16x4xbf16> to vector<16x16x4xbf16>
    %72 = vector.shape_cast %71 : vector<16x16x4xbf16> to vector<256x4xbf16>
    %c8 = arith.constant 8 : index
    %c0_89 = arith.constant 0 : index
    %c0_90 = arith.constant 0 : index
    %73 = vector.load %arg2[%c8, %c0_89, %c0_90] : memref<9x4x128xbf16, #tpu.memory_space<vmem>>, vector<1x4x128xbf16>
    %74 = vector.shape_cast %73 : vector<1x4x128xbf16> to vector<4x128xbf16>
    %cst_91 = arith.constant dense<0.000000e+00> : vector<256x128xf32>
    %75 = tpu.matmul %72, %74, %cst_91 {dimension_numbers = #tpu.dot_dimension_numbers<[1], [0], [0], [1], [0, 0, 1, 1], [], []>} : vector<256x4xbf16>, vector<4x128xbf16>, vector<256x128xf32> -> vector<256x128xf32>
    %c0_92 = arith.constant 0 : index
    %c0_93 = arith.constant 0 : index
    %76 = vector.load %arg7[%c0_92, %c0_93] : memref<256x128xf32, #tpu.memory_space<vmem>>, vector<256x128xf32>
    %77 = arith.addf %76, %75 : vector<256x128xf32>
    %c0_94 = arith.constant 0 : index
    %c0_95 = arith.constant 0 : index
    %78 = vector.load %arg7[%c0_94, %c0_95] : memref<256x128xf32, #tpu.memory_space<vmem>>, vector<256x128xf32>
    tpu.vector_store %arg7[%c0_94, %c0_95], %77 {strides = array<i32>} : memref<256x128xf32, #tpu.memory_space<vmem>>, vector<256x128xf32>,
    %c0_96 = arith.constant 0 : index
    %c0_97 = arith.constant 0 : index
    %79 = vector.load %arg7[%c0_96, %c0_97] : memref<256x128xf32, #tpu.memory_space<vmem>>, vector<256x128xf32>
    %c0_i32 = arith.constant 0 : i32
    %80 = arith.cmpi eq, %arg0, %c0_i32 : i32
    %81 = arith.extui %80 : i1 to i32
    %c0_i32_98 = arith.constant 0 : i32
    %82 = arith.cmpi ne, %81, %c0_i32_98 : i32
    scf.if %82 {
      %cst_113 = arith.constant 0.000000e+00 : f32
      %101 = vector.broadcast %cst_113 : f32 to vector<1x128xf32>
      %c0_114 = arith.constant 0 : index
      %c0_115 = arith.constant 0 : index
      %102 = vector.load %arg8[%c0_114, %c0_115] : memref<1x128xf32, #tpu.memory_space<vmem>>, vector<1x128xf32>
      tpu.vector_store %arg8[%c0_114, %c0_115], %101 {strides = array<i32>} : memref<1x128xf32, #tpu.memory_space<vmem>>, vector<1x128xf32>,
      %cst_116 = arith.constant 0.000000e+00 : f32
      %103 = vector.broadcast %cst_116 : f32 to vector<1x128xf32>
      %c0_117 = arith.constant 0 : index
      %c0_118 = arith.constant 0 : index
      %104 = vector.load %arg9[%c0_117, %c0_118] : memref<1x128xf32, #tpu.memory_space<vmem>>, vector<1x128xf32>
      tpu.vector_store %arg9[%c0_117, %c0_118], %103 {strides = array<i32>} : memref<1x128xf32, #tpu.memory_space<vmem>>, vector<1x128xf32>,
    } else {
    }
    %c0_99 = arith.constant 0 : index
    %c0_100 = arith.constant 0 : index
    %83 = vector.load %arg8[%c0_99, %c0_100] : memref<1x128xf32, #tpu.memory_space<vmem>>, vector<1x128xf32>
    %cst_101 = arith.constant dense<0.000000e+00> : vector<128xf32>
    %84 = vector.multi_reduction <add>, %79, %cst_101 [0] : vector<256x128xf32> to vector<128xf32>
    %85 = vector.shape_cast %84 : vector<128xf32> to vector<1x128xf32>
    %86 = arith.addf %83, %85 : vector<1x128xf32>
    %c0_102 = arith.constant 0 : index
    %c0_103 = arith.constant 0 : index
    %87 = vector.load %arg8[%c0_102, %c0_103] : memref<1x128xf32, #tpu.memory_space<vmem>>, vector<1x128xf32>
    tpu.vector_store %arg8[%c0_102, %c0_103], %86 {strides = array<i32>} : memref<1x128xf32, #tpu.memory_space<vmem>>, vector<1x128xf32>,
    %c0_104 = arith.constant 0 : index
    %c0_105 = arith.constant 0 : index
    %88 = vector.load %arg9[%c0_104, %c0_105] : memref<1x128xf32, #tpu.memory_space<vmem>>, vector<1x128xf32>
    %89 = arith.mulf %79, %79 : vector<256x128xf32>
    %cst_106 = arith.constant dense<0.000000e+00> : vector<128xf32>
    %90 = vector.multi_reduction <add>, %89, %cst_106 [0] : vector<256x128xf32> to vector<128xf32>
    %91 = vector.shape_cast %90 : vector<128xf32> to vector<1x128xf32>
    %92 = arith.addf %88, %91 : vector<1x128xf32>
    %c0_107 = arith.constant 0 : index
    %c0_108 = arith.constant 0 : index
    %93 = vector.load %arg9[%c0_107, %c0_108] : memref<1x128xf32, #tpu.memory_space<vmem>>, vector<1x128xf32>
    tpu.vector_store %arg9[%c0_107, %c0_108], %92 {strides = array<i32>} : memref<1x128xf32, #tpu.memory_space<vmem>>, vector<1x128xf32>,
    %94 = arith.index_cast %arg0 : i32 to index
    %c0_109 = arith.constant 0 : index
    %c0_110 = arith.constant 0 : index
    %95 = vector.load %arg6[%94, %c0_109, %c0_110] : memref<2x256x128xf32, #tpu.memory_space<vmem>>, vector<1x256x128xf32>
    %96 = vector.shape_cast %95 : vector<1x256x128xf32> to vector<256x128xf32>
    %97 = vector.shape_cast %79 : vector<256x128xf32> to vector<1x256x128xf32>
    tpu.vector_store %arg6[%94, %c0_109, %c0_110], %97 {strides = array<i32>} : memref<2x256x128xf32, #tpu.memory_space<vmem>>, vector<1x256x128xf32>,
    %c1_i32 = arith.constant 1 : i32
    %98 = arith.cmpi eq, %arg0, %c1_i32 : i32
    %99 = arith.extui %98 : i1 to i32
    %cst_111 = arith.constant 0.001953125 : f32
    %c0_i32_112 = arith.constant 0 : i32
    %100 = arith.cmpi ne, %99, %c0_i32_112 : i32
    scf.if %100 {
      %c0_113 = arith.constant 0 : index
      %c0_114 = arith.constant 0 : index
      %101 = vector.load %arg8[%c0_113, %c0_114] : memref<1x128xf32, #tpu.memory_space<vmem>>, vector<1x128xf32>
      %102 = vector.broadcast %cst_111 : f32 to vector<1x128xf32>
      %103 = arith.mulf %101, %102 : vector<1x128xf32>
      %c0_115 = arith.constant 0 : index
      %c0_116 = arith.constant 0 : index
      %104 = vector.load %arg9[%c0_115, %c0_116] : memref<1x128xf32, #tpu.memory_space<vmem>>, vector<1x128xf32>
      %105 = vector.broadcast %cst_111 : f32 to vector<1x128xf32>
      %106 = arith.mulf %104, %105 : vector<1x128xf32>
      %107 = arith.mulf %103, %103 : vector<1x128xf32>
      %108 = arith.subf %106, %107 : vector<1x128xf32>
      %cst_117 = arith.constant 0.000000e+00 : f32
      %109 = vector.broadcast %cst_117 : f32 to vector<1x128xf32>
      %110 = arith.maximumf %108, %109 : vector<1x128xf32>
      %c0_118 = arith.constant 0 : index
      %c0_119 = arith.constant 0 : index
      %111 = vector.load %arg4[%c0_118, %c0_119] : memref<1x128xf32, #tpu.memory_space<vmem>>, vector<1x128xf32>
      %cst_120 = arith.constant 9.99999974E-6 : f32
      %112 = vector.broadcast %cst_120 : f32 to vector<1x128xf32>
      %113 = arith.addf %110, %112 : vector<1x128xf32>
      %114 = math.rsqrt %113 : vector<1x128xf32>
      %115 = arith.mulf %111, %114 : vector<1x128xf32>
      %c0_121 = arith.constant 0 : index
      %c0_122 = arith.constant 0 : index
      %116 = vector.load %arg5[%c0_121, %c0_122] : memref<1x128xf32, #tpu.memory_space<vmem>>, vector<1x128xf32>
      %117 = arith.mulf %103, %115 : vector<1x128xf32>
      %118 = arith.subf %116, %117 : vector<1x128xf32>
      %c0_i32_123 = arith.constant 0 : i32
      %c2_i32 = arith.constant 2 : i32
      %119 = arith.addi %c0_i32_123, %c2_i32 : i32
      %c1_i32_124 = arith.constant 1 : i32
      scf.for %arg10 = %c0_i32_123 to %119 step %c1_i32_124  : i32 {
        %120 = arith.index_cast %arg10 : i32 to index
        %c0_126 = arith.constant 0 : index
        %c0_127 = arith.constant 0 : index
        %121 = vector.load %arg6[%120, %c0_126, %c0_127] : memref<2x256x128xf32, #tpu.memory_space<vmem>>, vector<1x256x128xf32>
        %122 = vector.shape_cast %121 : vector<1x256x128xf32> to vector<256x128xf32>
        %123 = vector.broadcast %115 : vector<1x128xf32> to vector<256x128xf32>
        %124 = arith.mulf %122, %123 : vector<256x128xf32>
        %125 = vector.broadcast %118 : vector<1x128xf32> to vector<256x128xf32>
        %126 = arith.addf %124, %125 : vector<256x128xf32>
        %cst_128 = arith.constant 0.000000e+00 : f32
        %127 = vector.broadcast %cst_128 : f32 to vector<256x128xf32>
        %128 = arith.maximumf %126, %127 : vector<256x128xf32>
        %129 = arith.index_cast %arg10 : i32 to index
        %c0_129 = arith.constant 0 : index
        %c0_130 = arith.constant 0 : index
        %130 = vector.load %arg6[%129, %c0_129, %c0_130] : memref<2x256x128xf32, #tpu.memory_space<vmem>>, vector<1x256x128xf32>
        %131 = vector.shape_cast %130 : vector<1x256x128xf32> to vector<256x128xf32>
        %132 = vector.shape_cast %128 : vector<256x128xf32> to vector<1x256x128xf32>
        tpu.vector_store %arg6[%129, %c0_129, %c0_130], %132 {strides = array<i32>} : memref<2x256x128xf32, #tpu.memory_space<vmem>>, vector<1x256x128xf32>,
      }
      %c2_i32_125 = arith.constant 2 : i32
    } else {
    }
    return
  }
  func.func @transform_0(%arg0: i32) -> (i32, i32, i32, i32) {
    %c0_i32 = arith.constant 0 : i32
    %c0_i32_0 = arith.constant 0 : i32
    %c0_i32_1 = arith.constant 0 : i32
    %c0_i32_2 = arith.constant 0 : i32
    return %arg0, %c0_i32, %c0_i32_0, %c0_i32_1 : i32, i32, i32, i32
  }
  func.func @transform_1(%arg0: i32) -> (i32, i32, i32) {
    %c0_i32 = arith.constant 0 : i32
    %c0_i32_0 = arith.constant 0 : i32
    %c0_i32_1 = arith.constant 0 : i32
    %c0_i32_2 = arith.constant 0 : i32
    return %c0_i32, %c0_i32_0, %c0_i32_1 : i32, i32, i32
  }
  func.func @transform_2(%arg0: i32) -> (i32, i32) {
    %c0_i32 = arith.constant 0 : i32
    %c0_i32_0 = arith.constant 0 : i32
    %c0_i32_1 = arith.constant 0 : i32
    return %c0_i32, %c0_i32_0 : i32, i32
  }
  func.func @transform_3(%arg0: i32) -> (i32, i32) {
    %c0_i32 = arith.constant 0 : i32
    %c0_i32_0 = arith.constant 0 : i32
    %c0_i32_1 = arith.constant 0 : i32
    return %c0_i32, %c0_i32_0 : i32, i32
  }
  func.func @transform_4(%arg0: i32) -> (i32, i32) {
    %c0_i32 = arith.constant 0 : i32
    %c0_i32_0 = arith.constant 0 : i32
    %c0_i32_1 = arith.constant 0 : i32
    return %c0_i32, %c0_i32_0 : i32, i32
  }
  func.func @transform_5(%arg0: i32) -> (i32, i32, i32) {
    %c0_i32 = arith.constant 0 : i32
    %c0_i32_0 = arith.constant 0 : i32
    %c0_i32_1 = arith.constant 0 : i32
    %c0_i32_2 = arith.constant 0 : i32
    return %c0_i32, %c0_i32_0, %c0_i32_1 : i32, i32, i32
  }
}

</mosaic_0001>

<llo_original>
// kernel: tpu_custom_call.1
$region0: #{tpu_custom_call.1}
  #allocation0 [shape = 'u32[]', space=smem, size = 0x4, offset = 0x4, fixed_abs, tag = 'smem constant byte address 0x4 - core index']
  #allocation1 [shape = 'u32[72,128]{1,0:T(1,128)}', space=vmem, size = 0x9000, scoped, tag = 'internal scratch']
  #allocation2 [shape = 'f32[256,128]{1,0:T(8,128)}', space=vmem, size = 0x20000, scoped, tag = 'scratch operand']
  #allocation3 [shape = 'f32[1,128]{1,0:T(1,128)}', space=vmem, size = 0x200, scoped, tag = 'scratch operand']
  #allocation4 [shape = 'f32[1,128]{1,0:T(1,128)}', space=vmem, size = 0x200, scoped, tag = 'scratch operand']
  %s0 = inlined_call_operand.vmem [shape: bf16[2,18,18,4], index: 0, kind: input, shape index: {}]
  %s1 = inlined_call_operand.vmem [shape: bf16[9,4,128], index: 1, kind: input, shape index: {}]
  %s2 = inlined_call_operand.vmem [shape: f32[1,128], index: 2, kind: input, shape index: {}]
  %s3 = inlined_call_operand.vmem [shape: f32[1,128], index: 3, kind: input, shape index: {}]
  %s4 = inlined_call_operand.vmem [shape: f32[1,128], index: 4, kind: input, shape index: {}]
  %s5 = inlined_call_operand.hbm [shape: f32[2,256,128], index: 5, kind: output, shape index: {}]
  %s6 = sld [smem:[#allocation0]]
  $region68: #{tpu_custom_call.1} parent=0
    _
  %s8 = ssub.s32 1, %s6
  %s9 = scalar_select 0, %s8, %s6
  $region1: #{tpu_custom_call.1} parent=0
    #allocation5 [shape = 'u8[262144]{0}', space=vmem, size = 0x40000, scoped, tag = 'output window, operand 0, single buffered']
    #allocation6 [shape = 's32[2]{0}', space=sflag, size = 0x8, scoped, tag = 'scoped memory for tpu_custom_call.1']
    %10 = vsyncpa [#allocation6], 0
    loop: start=0, step=1, limit=4
    $region2: #{tpu_custom_call.1} parent=1 // loop_pre_header
      _
    $region3: #{tpu_custom_call.1} parent=1 // loop_header
      %s12 = sphi 0, %s16
      %p13 = scmp.ge.s32.totalorder %s12, 4
      %s22 = sphi 0, %s24
      %s25 = sphi 0, %s22
      %s26 = sphi 0, %s25
      %s42 = sphi 0, %s26
      %s46 = sphi 0, %s46
      %s48 = sphi 0, %s46
      %s49 = sphi 0, %s48
      %s63 = sphi 0, %s49
      %s67 = sphi 0, %s67
      %s69 = sphi 0, %s67
      %s70 = sphi 0, %s69
      %s84 = sphi 0, %s70
      %s88 = sphi 0, %s88
      %s90 = sphi 0, %s88
      %s91 = sphi 0, %s90
      %s105 = sphi 0, %s91
      %s109 = sphi 0, %s109
      %s111 = sphi 0, %s109
      %s112 = sphi 0, %s111
      %s126 = sphi 0, %s112
      %s130 = sphi 0, %s130
      %s132 = sphi 0, %s130
      %s133 = sphi 0, %s132
      %s147 = sphi 0, %s133
    $region4: #{tpu_custom_call.1} parent=1 // loop_header_branch
      %15 = sbr.rel (%p13) target = $region8
    $region5: #{tpu_custom_call.1} parent=1 // loop_body
      %s17 = ssub.s32 %s12, 1
      %s18 = ssub.s32 %s12, 2
      %s19 = sadd.s32 %s12, 1
      %s20 = ssub.s32 %s12, %s19
      %p21 = scmp.eq.s32.totalorder %s20, 0
      %s23 = sadd.s32 %s22, 1
      %s24 = scalar_select %p21, %s22, %s23
      %p27 = pneg %p21
      %p28 = scmp.eq.s32.totalorder %s12, 1
      %p29 = por %p27, %p28
      %p30 = scmp.ne.s32.totalorder %s22, %s25
      %p31 = scmp.eq.s32.totalorder %s12, 0
      %p32 = por %p30, %p31
      %p33 = scmp.ne.s32.totalorder %s22, %s25
      %p34 = scmp.eq.s32.totalorder %s17, 1
      %p35 = por %p33, %p34
      %p36 = scmp.ne.s32.totalorder %s25, %s26
      %p37 = scmp.eq.s32.totalorder %s17, 0
      %p38 = por %p36, %p37
      %p39 = scmp.ne.s32.totalorder %s25, %s26
      %p40 = scmp.eq.s32.totalorder %s18, 1
      %p41 = por %p39, %p40
      %p43 = scmp.ne.s32.totalorder %s26, %s42
      %p44 = scmp.eq.s32.totalorder %s18, 0
      %p45 = por %p43, %p44
      %s47 = sadd.s32 %s46, 1
      %p50 = scmp.eq.s32.totalorder %s12, 1
      %p51 = scmp.ne.s32.totalorder %s46, %s48
      %p52 = scmp.eq.s32.totalorder %s12, 0
      %p53 = por %p51, %p52
      %p54 = scmp.ne.s32.totalorder %s46, %s48
      %p55 = scmp.eq.s32.totalorder %s17, 1
      %p56 = por %p54, %p55
      %p57 = scmp.ne.s32.totalorder %s48, %s49
      %p58 = scmp.eq.s32.totalorder %s17, 0
      %p59 = por %p57, %p58
      %p60 = scmp.ne.s32.totalorder %s48, %s49
      %p61 = scmp.eq.s32.totalorder %s18, 1
      %p62 = por %p60, %p61
      %p64 = scmp.ne.s32.totalorder %s49, %s63
      %p65 = scmp.eq.s32.totalorder %s18, 0
      %p66 = por %p64, %p65
      %s68 = sadd.s32 %s67, 1
      %p71 = scmp.eq.s32.totalorder %s12, 1
      %p72 = scmp.ne.s32.totalorder %s67, %s69
      %p73 = scmp.eq.s32.totalorder %s12, 0
      %p74 = por %p72, %p73
      %p75 = scmp.ne.s32.totalorder %s67, %s69
      %p76 = scmp.eq.s32.totalorder %s17, 1
      %p77 = por %p75, %p76
      %p78 = scmp.ne.s32.totalorder %s69, %s70
      %p79 = scmp.eq.s32.totalorder %s17, 0
      %p80 = por %p78, %p79
      %p81 = scmp.ne.s32.totalorder %s69, %s70
      %p82 = scmp.eq.s32.totalorder %s18, 1
      %p83 = por %p81, %p82
      %p85 = scmp.ne.s32.totalorder %s70, %s84
      %p86 = scmp.eq.s32.totalorder %s18, 0
      %p87 = por %p85, %p86
      %s89 = sadd.s32 %s88, 1
      %p92 = scmp.eq.s32.totalorder %s12, 1
      %p93 = scmp.ne.s32.totalorder %s88, %s90
      %p94 = scmp.eq.s32.totalorder %s12, 0
      %p95 = por %p93, %p94
      %p96 = scmp.ne.s32.totalorder %s88, %s90
      %p97 = scmp.eq.s32.totalorder %s17, 1
      %p98 = por %p96, %p97
      %p99 = scmp.ne.s32.totalorder %s90, %s91
      %p100 = scmp.eq.s32.totalorder %s17, 0
      %p101 = por %p99, %p100
      %p102 = scmp.ne.s32.totalorder %s90, %s91
      %p103 = scmp.eq.s32.totalorder %s18, 1
      %p104 = por %p102, %p103
      %p106 = scmp.ne.s32.totalorder %s91, %s105
      %p107 = scmp.eq.s32.totalorder %s18, 0
      %p108 = por %p106, %p107
      %s110 = sadd.s32 %s109, 1
      %p113 = scmp.eq.s32.totalorder %s12, 1
      %p114 = scmp.ne.s32.totalorder %s109, %s111
      %p115 = scmp.eq.s32.totalorder %s12, 0
      %p116 = por %p114, %p115
      %p117 = scmp.ne.s32.totalorder %s109, %s111
      %p118 = scmp.eq.s32.totalorder %s17, 1
      %p119 = por %p117, %p118
      %p120 = scmp.ne.s32.totalorder %s111, %s112
      %p121 = scmp.eq.s32.totalorder %s17, 0
      %p122 = por %p120, %p121
      %p123 = scmp.ne.s32.totalorder %s111, %s112
      %p124 = scmp.eq.s32.totalorder %s18, 1
      %p125 = por %p123, %p124
      %p127 = scmp.ne.s32.totalorder %s112, %s126
      %p128 = scmp.eq.s32.totalorder %s18, 0
      %p129 = por %p127, %p128
      %s131 = sadd.s32 %s130, 1
      %p134 = scmp.eq.s32.totalorder %s12, 1
      %p135 = scmp.ne.s32.totalorder %s130, %s132
      %p136 = scmp.eq.s32.totalorder %s12, 0
      %p137 = por %p135, %p136
      %p138 = scmp.ne.s32.totalorder %s130, %s132
      %p139 = scmp.eq.s32.totalorder %s17, 1
      %p140 = por %p138, %p139
      %p141 = scmp.ne.s32.totalorder %s132, %s133
      %p142 = scmp.eq.s32.totalorder %s17, 0
      %p143 = por %p141, %p142
      %p144 = scmp.ne.s32.totalorder %s132, %s133
      %p145 = scmp.eq.s32.totalorder %s18, 1
      %p146 = por %p144, %p145
      %p148 = scmp.ne.s32.totalorder %s133, %s147
      %p149 = scmp.eq.s32.totalorder %s18, 0
      %p150 = por %p148, %p149
      %p151 = scmp.le.s32.totalorder 1, %s12
      %p152 = scmp.lt.s32.totalorder %s12, 3
      %p153 = pnand %p151, %p152
      %p154 = pneg %p153
      // Predicated region
      $region9: #{tpu_custom_call.1} parent=5 // pred_check
        _
      $region10: #{tpu_custom_call.1} parent=5 // pred_check_branch
        %156 = sbr.rel (%p153) target = $region12
      $region11: #{tpu_custom_call.1} parent=5 // pred_region
        %s157 = ssub.s32 %s12, 1
        // Predicated region
        $region13: #{tpu_custom_call.1} parent=11 // pred_check
          %p158 = pneg %p59
        $region14: #{tpu_custom_call.1} parent=11 // pred_check_branch
          %160 = sbr.rel (%p158) target = $region16
        $region15: #{tpu_custom_call.1} parent=11 // pred_region
          _
        $region16: #{tpu_custom_call.1} parent=11 // pred_fallthru
          _
        // Predicated region
        $region17: #{tpu_custom_call.1} parent=11 // pred_check
          %p161 = pneg %p80
        $region18: #{tpu_custom_call.1} parent=11 // pred_check_branch
          %163 = sbr.rel (%p161) target = $region20
        $region19: #{tpu_custom_call.1} parent=11 // pred_region
          _
        $region20: #{tpu_custom_call.1} parent=11 // pred_fallthru
          _
        // Predicated region
        $region21: #{tpu_custom_call.1} parent=11 // pred_check
          %p164 = pneg %p101
        $region22: #{tpu_custom_call.1} parent=11 // pred_check_branch
          %166 = sbr.rel (%p164) target = $region24
        $region23: #{tpu_custom_call.1} parent=11 // pred_region
          _
        $region24: #{tpu_custom_call.1} parent=11 // pred_fallthru
          _
        // Predicated region
        $region25: #{tpu_custom_call.1} parent=11 // pred_check
          %p167 = pneg %p122
        $region26: #{tpu_custom_call.1} parent=11 // pred_check_branch
          %169 = sbr.rel (%p167) target = $region28
        $region27: #{tpu_custom_call.1} parent=11 // pred_region
          _
        $region28: #{tpu_custom_call.1} parent=11 // pred_fallthru
          _
      $region12: #{tpu_custom_call.1} parent=5 // pred_fallthru
        _
      %p170 = scmp.lt.s32.totalorder %s12, 2
      // Predicated region
      $region29: #{tpu_custom_call.1} parent=5 // pred_check
        %p171 = pneg %p170
      $region30: #{tpu_custom_call.1} parent=5 // pred_check_branch
        %173 = sbr.rel (%p171) target = $region32
      $region31: #{tpu_custom_call.1} parent=5 // pred_region
        // Predicated region
        $region33: #{tpu_custom_call.1} parent=31 // pred_check
          %p174 = pneg %p32
        $region34: #{tpu_custom_call.1} parent=31 // pred_check_branch
          %176 = sbr.rel (%p174) target = $region36
        $region35: #{tpu_custom_call.1} parent=31 // pred_region
          %p177 = scmp.lt.s32.totalorder %s12, 1
          %s178 = scalar_select %p177, %s12, 1
          %s179 = smul.addr %s178, 54
          %s180 = smul.addr %s179, 4
          %s181 = scalar_lea.vmem %s0, %s180
        $region36: #{tpu_custom_call.1} parent=31 // pred_fallthru
          _
      $region32: #{tpu_custom_call.1} parent=5 // pred_fallthru
        _
      %p182 = scmp.le.s32.totalorder 1, %s12
      %p183 = scmp.lt.s32.totalorder %s12, 3
      %p184 = pnand %p182, %p183
      %p185 = pneg %p184
      // Predicated region
      $region37: #{tpu_custom_call.1} parent=5 // pred_check
        _
      $region38: #{tpu_custom_call.1} parent=5 // pred_check_branch
        %187 = sbr.rel (%p184) target = $region40
      $region39: #{tpu_custom_call.1} parent=5 // pred_region
        %s188 = ssub.s32 %s12, 1
        %p189 = scmp.lt.s32.totalorder %s17, 1
        %s190 = scalar_select %p189, %s17, 1
        %s191 = smul.addr %s190, 54
        %s192 = smul.addr %s191, 4
        %s193 = scalar_lea.vmem %s0, %s192
        %p194 = pneg %p38
        %p195 = pneg %p35
        %p196 = pneg %p59
        %p197 = pneg %p56
        %p198 = pneg %p80
        %p199 = pneg %p77
        %p200 = pneg %p101
        %p201 = pneg %p98
        %p202 = pneg %p122
        %p203 = pneg %p119
        %p204 = pneg %p143
        %p205 = pneg %p140
        %p206 = scmp.lt.s32.totalorder %s17, 1
        %s207 = scalar_select %p206, %s17, 1
        %s208 = smul.addr %s207, 54
        %s209 = smul.addr %s208, 4
        %s210 = scalar_lea.vmem %s0, %s209
        %v212 = vld [vmem:[%s210] sm:$0xf]
        %v213 = vld [vmem:[%s210 + $0x4] sm:$0xf]
        %v214 = vld [vmem:[%s210 + $0xc] sm:$0xf]
        %v215 = vld [vmem:[%s210 + $0x10] sm:$0xf]
        %v216 = vld [vmem:[%s210 + $0x18] sm:$0xf]
        %v217 = vld [vmem:[%s210 + $0x1c] sm:$0xf]
        %v218 = vld [vmem:[%s210 + $0x24] sm:$0xf]
        %v219 = vld [vmem:[%s210 + $0x28] sm:$0xf]
        %v220 = vld [vmem:[%s210 + $0x30] sm:$0xf]
        %v221 = vld [vmem:[%s210 + $0x34] sm:$0xf]
        %v222 = vld [vmem:[%s210 + $0x3c] sm:$0xf]
        %v223 = vld [vmem:[%s210 + $0x40] sm:$0xf]
        %v224 = vld [vmem:[%s210 + $0x48] sm:$0xf]
        %v225 = vld [vmem:[%s210 + $0x4c] sm:$0xf]
        %v226 = vld [vmem:[%s210 + $0x54] sm:$0xf]
        %v227 = vld [vmem:[%s210 + $0x58] sm:$0xf]
        %v228 = vld [vmem:[%s210 + $0x60] sm:$0xf]
        %v229 = vld [vmem:[%s210 + $0x64] sm:$0xf]
        %v230 = vld [vmem:[%s210 + $0x6c] sm:$0xf]
        %v231 = vld [vmem:[%s210 + $0x70] sm:$0xf]
        %v232 = vld [vmem:[%s210 + $0x78] sm:$0xf]
        %v233 = vld [vmem:[%s210 + $0x7c] sm:$0xf]
        %v234 = vld [vmem:[%s210 + $0x84] sm:$0xf]
        %v235 = vld [vmem:[%s210 + $0x88] sm:$0xf]
        %v236 = vld [vmem:[%s210 + $0x90] sm:$0xf]
        %v237 = vld [vmem:[%s210 + $0x94] sm:$0xf]
        %v238 = vld [vmem:[%s210 + $0x9c] sm:$0xf]
        %v239 = vld [vmem:[%s210 + $0xa0] sm:$0xf]
        %v240 = vld [vmem:[%s210 + $0xa8] sm:$0xf]
        %v241 = vld [vmem:[%s210 + $0xac] sm:$0xf]
        %v242 = vld [vmem:[%s210 + $0xb4] sm:$0xf]
        %v243 = vld [vmem:[%s210 + $0xb8] sm:$0xf]
        %v244 = vld [vmem:[%s1] sm:$0x3]
        %v277 = vunpack.c.l.b16 %v212
        %v278 = vunpack.c.l.b16 %v213
        %v279 = vunpack.c.l.b16 %v214
        %v280 = vunpack.c.l.b16 %v215
        %v281 = vunpack.c.l.b16 %v216
        %v282 = vunpack.c.l.b16 %v217
        %v283 = vunpack.c.l.b16 %v218
        %v284 = vunpack.c.l.b16 %v219
        %v285 = vunpack.c.l.b16 %v220
        %v286 = vunpack.c.l.b16 %v221
        %v287 = vunpack.c.l.b16 %v222
        %v288 = vunpack.c.l.b16 %v223
        %v289 = vunpack.c.l.b16 %v224
        %v290 = vunpack.c.l.b16 %v225
        %v291 = vunpack.c.l.b16 %v226
        %v292 = vunpack.c.l.b16 %v227
        %v293 = vunpack.c.l.b16 %v228
        %v294 = vunpack.c.l.b16 %v229
        %v295 = vunpack.c.l.b16 %v230
        %v296 = vunpack.c.l.b16 %v231
        %v297 = vunpack.c.l.b16 %v232
        %v298 = vunpack.c.l.b16 %v233
        %v299 = vunpack.c.l.b16 %v234
        %v300 = vunpack.c.l.b16 %v235
        %v301 = vunpack.c.l.b16 %v236
        %v302 = vunpack.c.l.b16 %v237
        %v303 = vunpack.c.l.b16 %v238
        %v304 = vunpack.c.l.b16 %v239
        %v305 = vunpack.c.l.b16 %v240
        %v306 = vunpack.c.l.b16 %v241
        %v307 = vunpack.c.l.b16 %v242
        %v308 = vunpack.c.l.b16 %v243
        %v309 = vpack.c.b16 %v278, %v277
        %v310 = vpack.c.b16 %v280, %v279
        %v311 = vpack.c.b16 %v282, %v281
        %v312 = vpack.c.b16 %v284, %v283
        %v313 = vpack.c.b16 %v286, %v285
        %v314 = vpack.c.b16 %v288, %v287
        %v315 = vpack.c.b16 %v290, %v289
        %v316 = vpack.c.b16 %v292, %v291
        %v317 = vpack.c.b16 %v294, %v293
        %v318 = vpack.c.b16 %v296, %v295
        %v319 = vpack.c.b16 %v298, %v297
        %v320 = vpack.c.b16 %v300, %v299
        %v321 = vpack.c.b16 %v302, %v301
        %v322 = vpack.c.b16 %v304, %v303
        %v323 = vpack.c.b16 %v306, %v305
        %v324 = vpack.c.b16 %v308, %v307
        %vm325 = vcmask 31744
        %v327 = vsel %vm325, %v309, 0
        %v330 = vsel %vm325, %v310, 0
        %v333 = vsel %vm325, %v311, 0
        %v336 = vsel %vm325, %v312, 0
        %v339 = vsel %vm325, %v313, 0
        %v342 = vsel %vm325, %v314, 0
        %v345 = vsel %vm325, %v315, 0
        %v348 = vsel %vm325, %v316, 0
        %v351 = vsel %vm325, %v317, 0
        %v354 = vsel %vm325, %v318, 0
        %v357 = vsel %vm325, %v319, 0
        %v360 = vsel %vm325, %v320, 0
        %v363 = vsel %vm325, %v321, 0
        %v366 = vsel %vm325, %v322, 0
        %v369 = vsel %vm325, %v323, 0
        %v372 = vsel %vm325, %v324, 0
        %vm374 = vcmask 1041408
        %v376 = vsel %vm374, %v244, 0
        %378 = vmatpush.bf16.msra.mxu0 0
        %379 = vmatpush.bf16.msra.mxu0 0
        %380 = vmatpush.bf16.msra.mxu0 0
        %381 = vmatpush.bf16.msra.mxu0 0
        %382 = vmatpush.bf16.msra.mxu0 0
        %383 = vmatpush.bf16.msra.mxu0 0
        %384 = vmatpush.bf16.msra.mxu0 0
        %385 = vmatpush.bf16.msra.mxu0 %v376
        %386 = vmatmul.bf16.gmra.mxu0 %v327
        %v387 = vpop.f32.mrf.mxu0
        %v388 = vadd.f32 0.0, %v387
        %v389 = vpop.f32.mrf.mxu0
        %v390 = vadd.f32 0.0, %v389
        %391 = vmatmul.bf16.gmra.mxu0 %v330
        %v392 = vpop.f32.mrf.mxu0
        %v393 = vadd.f32 0.0, %v392
        %v394 = vpop.f32.mrf.mxu0
        %v395 = vadd.f32 0.0, %v394
        %396 = vmatmul.bf16.gmra.mxu0 %v333
        %v397 = vpop.f32.mrf.mxu0
        %v398 = vadd.f32 0.0, %v397
        %v399 = vpop.f32.mrf.mxu0
        %v400 = vadd.f32 0.0, %v399
        %401 = vmatmul.bf16.gmra.mxu0 %v336
        %v402 = vpop.f32.mrf.mxu0
        %v403 = vadd.f32 0.0, %v402
        %v404 = vpop.f32.mrf.mxu0
        %v405 = vadd.f32 0.0, %v404
        %406 = vmatmul.bf16.gmra.mxu0 %v339
        %v407 = vpop.f32.mrf.mxu0
        %v408 = vadd.f32 0.0, %v407
        %v409 = vpop.f32.mrf.mxu0
        %v410 = vadd.f32 0.0, %v409
        %411 = vmatmul.bf16.gmra.mxu0 %v342
        %v412 = vpop.f32.mrf.mxu0
        %v413 = vadd.f32 0.0, %v412
        %v414 = vpop.f32.mrf.mxu0
        %v415 = vadd.f32 0.0, %v414
        %416 = vmatmul.bf16.gmra.mxu0 %v345
        %v417 = vpop.f32.mrf.mxu0
        %v418 = vadd.f32 0.0, %v417
        %v419 = vpop.f32.mrf.mxu0
        %v420 = vadd.f32 0.0, %v419
        %421 = vmatmul.bf16.gmra.mxu0 %v348
        %v422 = vpop.f32.mrf.mxu0
        %v423 = vadd.f32 0.0, %v422
        %v424 = vpop.f32.mrf.mxu0
        %v425 = vadd.f32 0.0, %v424
        %426 = vmatmul.bf16.gmra.mxu0 %v351
        %v427 = vpop.f32.mrf.mxu0
        %v428 = vadd.f32 0.0, %v427
        %v429 = vpop.f32.mrf.mxu0
        %v430 = vadd.f32 0.0, %v429
        %431 = vmatmul.bf16.gmra.mxu0 %v354
        %v432 = vpop.f32.mrf.mxu0
        %v433 = vadd.f32 0.0, %v432
        %v434 = vpop.f32.mrf.mxu0
        %v435 = vadd.f32 0.0, %v434
        %436 = vmatmul.bf16.gmra.mxu0 %v357
        %v437 = vpop.f32.mrf.mxu0
        %v438 = vadd.f32 0.0, %v437
        %v439 = vpop.f32.mrf.mxu0
        %v440 = vadd.f32 0.0, %v439
        %441 = vmatmul.bf16.gmra.mxu0 %v360
        %v442 = vpop.f32.mrf.mxu0
        %v443 = vadd.f32 0.0, %v442
        %v444 = vpop.f32.mrf.mxu0
        %v445 = vadd.f32 0.0, %v444
        %446 = vmatmul.bf16.gmra.mxu0 %v363
        %v447 = vpop.f32.mrf.mxu0
        %v448 = vadd.f32 0.0, %v447
        %v449 = vpop.f32.mrf.mxu0
        %v450 = vadd.f32 0.0, %v449
        %451 = vmatmul.bf16.gmra.mxu0 %v366
        %v452 = vpop.f32.mrf.mxu0
        %v453 = vadd.f32 0.0, %v452
        %v454 = vpop.f32.mrf.mxu0
        %v455 = vadd.f32 0.0, %v454
        %456 = vmatmul.bf16.gmra.mxu0 %v369
        %v457 = vpop.f32.mrf.mxu0
        %v458 = vadd.f32 0.0, %v457
        %v459 = vpop.f32.mrf.mxu0
        %v460 = vadd.f32 0.0, %v459
        %461 = vmatmul.bf16.gmra.mxu0 %v372
        %v462 = vpop.f32.mrf.mxu0
        %v463 = vadd.f32 0.0, %v462
        %v464 = vpop.f32.mrf.mxu0
        %v465 = vadd.f32 0.0, %v464
        %466 = vdwg.mxu0
        %467 = vst [vmem:[#allocation2] sm:$0xff] %v388
        %468 = vst [vmem:[#allocation2 + $0x8] sm:$0xff] %v390
        %469 = vst [vmem:[#allocation2 + $0x10] sm:$0xff] %v393
        %470 = vst [vmem:[#allocation2 + $0x18] sm:$0xff] %v395
        %471 = vst [vmem:[#allocation2 + $0x20] sm:$0xff] %v398
        %472 = vst [vmem:[#allocation2 + $0x28] sm:$0xff] %v400
        %473 = vst [vmem:[#allocation2 + $0x30] sm:$0xff] %v403
        %474 = vst [vmem:[#allocation2 + $0x38] sm:$0xff] %v405
        %475 = vst [vmem:[#allocation2 + $0x40] sm:$0xff] %v408
        %476 = vst [vmem:[#allocation2 + $0x48] sm:$0xff] %v410
        %477 = vst [vmem:[#allocation2 + $0x50] sm:$0xff] %v413
        %478 = vst [vmem:[#allocation2 + $0x58] sm:$0xff] %v415
        %479 = vst [vmem:[#allocation2 + $0x60] sm:$0xff] %v418
        %480 = vst [vmem:[#allocation2 + $0x68] sm:$0xff] %v420
        %481 = vst [vmem:[#allocation2 + $0x70] sm:$0xff] %v423
        %482 = vst [vmem:[#allocation2 + $0x78] sm:$0xff] %v425
        %483 = vst [vmem:[#allocation2 + $0x80] sm:$0xff] %v428
        %484 = vst [vmem:[#allocation2 + $0x88] sm:$0xff] %v430
        %485 = vst [vmem:[#allocation2 + $0x90] sm:$0xff] %v433
        %486 = vst [vmem:[#allocation2 + $0x98] sm:$0xff] %v435
        %487 = vst [vmem:[#allocation2 + $0xa0] sm:$0xff] %v438
        %488 = vst [vmem:[#allocation2 + $0xa8] sm:$0xff] %v440
        %489 = vst [vmem:[#allocation2 + $0xb0] sm:$0xff] %v443
        %490 = vst [vmem:[#allocation2 + $0xb8] sm:$0xff] %v445
        %491 = vst [vmem:[#allocation2 + $0xc0] sm:$0xff] %v448
        %492 = vst [vmem:[#allocation2 + $0xc8] sm:$0xff] %v450
        %493 = vst [vmem:[#allocation2 + $0xd0] sm:$0xff] %v453
        %494 = vst [vmem:[#allocation2 + $0xd8] sm:$0xff] %v455
        %495 = vst [vmem:[#allocation2 + $0xe0] sm:$0xff] %v458
        %496 = vst [vmem:[#allocation2 + $0xe8] sm:$0xff] %v460
        %497 = vst [vmem:[#allocation2 + $0xf0] sm:$0xff] %v463
        %498 = vst [vmem:[#allocation2 + $0xf8] sm:$0xff] %v465
        %v499 = vld [vmem:[%s210] sm:$0xf]
        %v500 = vld [vmem:[%s210 + $0x4] sm:$0xf]
        %v501 = vld [vmem:[%s210 + $0x8] sm:$0x1]
        %v502 = vld [vmem:[%s210 + $0xc] sm:$0xf]
        %v503 = vld [vmem:[%s210 + $0x10] sm:$0xf]
        %v504 = vld [vmem:[%s210 + $0x14] sm:$0x1]
        %v505 = vld [vmem:[%s210 + $0x18] sm:$0xf]
        %v506 = vld [vmem:[%s210 + $0x1c] sm:$0xf]
        %v507 = vld [vmem:[%s210 + $0x20] sm:$0x1]
        %v508 = vld [vmem:[%s210 + $0x24] sm:$0xf]
        %v509 = vld [vmem:[%s210 + $0x28] sm:$0xf]
        %v510 = vld [vmem:[%s210 + $0x2c] sm:$0x1]
        %v511 = vld [vmem:[%s210 + $0x30] sm:$0xf]
        %v512 = vld [vmem:[%s210 + $0x34] sm:$0xf]
        %v513 = vld [vmem:[%s210 + $0x38] sm:$0x1]
        %v514 = vld [vmem:[%s210 + $0x3c] sm:$0xf]
        %v515 = vld [vmem:[%s210 + $0x40] sm:$0xf]
        %v516 = vld [vmem:[%s210 + $0x44] sm:$0x1]
        %v517 = vld [vmem:[%s210 + $0x48] sm:$0xf]
        %v518 = vld [vmem:[%s210 + $0x4c] sm:$0xf]
        %v519 = vld [vmem:[%s210 + $0x50] sm:$0x1]
        %v520 = vld [vmem:[%s210 + $0x54] sm:$0xf]
        %v521 = vld [vmem:[%s210 + $0x58] sm:$0xf]
        %v522 = vld [vmem:[%s210 + $0x5c] sm:$0x1]
        %v523 = vld [vmem:[%s210 + $0x60] sm:$0xf]
        %v524 = vld [vmem:[%s210 + $0x64] sm:$0xf]
        %v525 = vld [vmem:[%s210 + $0x68] sm:$0x1]
        %v526 = vld [vmem:[%s210 + $0x6c] sm:$0xf]
        %v527 = vld [vmem:[%s210 + $0x70] sm:$0xf]
        %v528 = vld [vmem:[%s210 + $0x74] sm:$0x1]
        %v529 = vld [vmem:[%s210 + $0x78] sm:$0xf]
        %v530 = vld [vmem:[%s210 + $0x7c] sm:$0xf]
        %v531 = vld [vmem:[%s210 + $0x80] sm:$0x1]
        %v532 = vld [vmem:[%s210 + $0x84] sm:$0xf]
        %v533 = vld [vmem:[%s210 + $0x88] sm:$0xf]
        %v534 = vld [vmem:[%s210 + $0x8c] sm:$0x1]
        %v535 = vld [vmem:[%s210 + $0x90] sm:$0xf]
        %v536 = vld [vmem:[%s210 + $0x94] sm:$0xf]
        %v537 = vld [vmem:[%s210 + $0x98] sm:$0x1]
        %v538 = vld [vmem:[%s210 + $0x9c] sm:$0xf]
        %v539 = vld [vmem:[%s210 + $0xa0] sm:$0xf]
        %v540 = vld [vmem:[%s210 + $0xa4] sm:$0x1]
        %v541 = vld [vmem:[%s210 + $0xa8] sm:$0xf]
        %v542 = vld [vmem:[%s210 + $0xac] sm:$0xf]
        %v543 = vld [vmem:[%s210 + $0xb0] sm:$0x1]
        %v544 = vld [vmem:[%s210 + $0xb4] sm:$0xf]
        %v545 = vld [vmem:[%s210 + $0xb8] sm:$0xf]
        %v546 = vld [vmem:[%s210 + $0xbc] sm:$0x1]
        %vm547 = vsmask.f32 3328
        %vm548 = vsmask.f32 7440
        %vm549 = vmor %vm547, %vm548
        %v551 = vshrl.u32 %v499, 16
        %v553 = vrot.slane %v551, 4
        %v554 = vshll.u32 %v499, 16
        %v556 = vrot.slane %v554, 5
        %v557 = vor.u32 %v553, %v556
        %v558 = vrot.slane %v557, 4
        %v560 = vshll.u32 %v500, 16
        %v562 = vrot.slane %v560, 5
        %v563 = vsel %vm549, %v558, %v562
        %v564 = vshrl.u32 %v500, 16
        %v566 = vrot.slane %v564, 4
        %v567 = vor.u32 %v566, %v562
        %v568 = vrot.slane %v567, 4
        %v570 = vshll.u32 %v501, 16
        %v572 = vrot.slane %v570, 5
        %v573 = vsel %vm549, %v568, %v572
        %v575 = vshrl.u32 %v502, 16
        %v577 = vrot.slane %v575, 4
        %v578 = vshll.u32 %v502, 16
        %v580 = vrot.slane %v578, 5
        %v581 = vor.u32 %v577, %v580
        %v582 = vrot.slane %v581, 4
        %v584 = vshll.u32 %v503, 16
        %v586 = vrot.slane %v584, 5
        %v587 = vsel %vm549, %v582, %v586
        %v588 = vshrl.u32 %v503, 16
        %v590 = vrot.slane %v588, 4
        %v591 = vor.u32 %v590, %v586
        %v592 = vrot.slane %v591, 4
        %v594 = vshll.u32 %v504, 16
        %v596 = vrot.slane %v594, 5
        %v597 = vsel %vm549, %v592, %v596
        %v599 = vshrl.u32 %v505, 16
        %v601 = vrot.slane %v599, 4
        %v602 = vshll.u32 %v505, 16
        %v604 = vrot.slane %v602, 5
        %v605 = vor.u32 %v601, %v604
        %v606 = vrot.slane %v605, 4
        %v608 = vshll.u32 %v506, 16
        %v610 = vrot.slane %v608, 5
        %v611 = vsel %vm549, %v606, %v610
        %v612 = vshrl.u32 %v506, 16
        %v614 = vrot.slane %v612, 4
        %v615 = vor.u32 %v614, %v610
        %v616 = vrot.slane %v615, 4
        %v618 = vshll.u32 %v507, 16
        %v620 = vrot.slane %v618, 5
        %v621 = vsel %vm549, %v616, %v620
        %v623 = vshrl.u32 %v508, 16
        %v625 = vrot.slane %v623, 4
        %v626 = vshll.u32 %v508, 16
        %v628 = vrot.slane %v626, 5
        %v629 = vor.u32 %v625, %v628
        %v630 = vrot.slane %v629, 4
        %v632 = vshll.u32 %v509, 16
        %v634 = vrot.slane %v632, 5
        %v635 = vsel %vm549, %v630, %v634
        %v636 = vshrl.u32 %v509, 16
        %v638 = vrot.slane %v636, 4
        %v639 = vor.u32 %v638, %v634
        %v640 = vrot.slane %v639, 4
        %v642 = vshll.u32 %v510, 16
        %v644 = vrot.slane %v642, 5
        %v645 = vsel %vm549, %v640, %v644
        %v647 = vshrl.u32 %v511, 16
        %v649 = vrot.slane %v647, 4
        %v650 = vshll.u32 %v511, 16
        %v652 = vrot.slane %v650, 5
        %v653 = vor.u32 %v649, %v652
        %v654 = vrot.slane %v653, 4
        %v656 = vshll.u32 %v512, 16
        %v658 = vrot.slane %v656, 5
        %v659 = vsel %vm549, %v654, %v658
        %v660 = vshrl.u32 %v512, 16
        %v662 = vrot.slane %v660, 4
        %v663 = vor.u32 %v662, %v658
        %v664 = vrot.slane %v663, 4
        %v666 = vshll.u32 %v513, 16
        %v668 = vrot.slane %v666, 5
        %v669 = vsel %vm549, %v664, %v668
        %v671 = vshrl.u32 %v514, 16
        %v673 = vrot.slane %v671, 4
        %v674 = vshll.u32 %v514, 16
        %v676 = vrot.slane %v674, 5
        %v677 = vor.u32 %v673, %v676
        %v678 = vrot.slane %v677, 4
        %v680 = vshll.u32 %v515, 16
        %v682 = vrot.slane %v680, 5
        %v683 = vsel %vm549, %v678, %v682
        %v684 = vshrl.u32 %v515, 16
        %v686 = vrot.slane %v684, 4
        %v687 = vor.u32 %v686, %v682
        %v688 = vrot.slane %v687, 4
        %v690 = vshll.u32 %v516, 16
        %v692 = vrot.slane %v690, 5
        %v693 = vsel %vm549, %v688, %v692
        %v695 = vshrl.u32 %v517, 16
        %v697 = vrot.slane %v695, 4
        %v698 = vshll.u32 %v517, 16
        %v700 = vrot.slane %v698, 5
        %v701 = vor.u32 %v697, %v700
        %v702 = vrot.slane %v701, 4
        %v704 = vshll.u32 %v518, 16
        %v706 = vrot.slane %v704, 5
        %v707 = vsel %vm549, %v702, %v706
        %v708 = vshrl.u32 %v518, 16
        %v710 = vrot.slane %v708, 4
        %v711 = vor.u32 %v710, %v706
        %v712 = vrot.slane %v711, 4
        %v714 = vshll.u32 %v519, 16
        %v716 = vrot.slane %v714, 5
        %v717 = vsel %vm549, %v712, %v716
        %v719 = vshrl.u32 %v520, 16
        %v721 = vrot.slane %v719, 4
        %v722 = vshll.u32 %v520, 16
        %v724 = vrot.slane %v722, 5
        %v725 = vor.u32 %v721, %v724
        %v726 = vrot.slane %v725, 4
        %v728 = vshll.u32 %v521, 16
        %v730 = vrot.slane %v728, 5
        %v731 = vsel %vm549, %v726, %v730
        %v732 = vshrl.u32 %v521, 16
        %v734 = vrot.slane %v732, 4
        %v735 = vor.u32 %v734, %v730
        %v736 = vrot.slane %v735, 4
        %v738 = vshll.u32 %v522, 16
        %v740 = vrot.slane %v738, 5
        %v741 = vsel %vm549, %v736, %v740
        %v743 = vshrl.u32 %v523, 16
        %v745 = vrot.slane %v743, 4
        %v746 = vshll.u32 %v523, 16
        %v748 = vrot.slane %v746, 5
        %v749 = vor.u32 %v745, %v748
        %v750 = vrot.slane %v749, 4
        %v752 = vshll.u32 %v524, 16
        %v754 = vrot.slane %v752, 5
        %v755 = vsel %vm549, %v750, %v754
        %v756 = vshrl.u32 %v524, 16
        %v758 = vrot.slane %v756, 4
        %v759 = vor.u32 %v758, %v754
        %v760 = vrot.slane %v759, 4
        %v762 = vshll.u32 %v525, 16
        %v764 = vrot.slane %v762, 5
        %v765 = vsel %vm549, %v760, %v764
        %v767 = vshrl.u32 %v526, 16
        %v769 = vrot.slane %v767, 4
        %v770 = vshll.u32 %v526, 16
        %v772 = vrot.slane %v770, 5
        %v773 = vor.u32 %v769, %v772
        %v774 = vrot.slane %v773, 4
        %v776 = vshll.u32 %v527, 16
        %v778 = vrot.slane %v776, 5
        %v779 = vsel %vm549, %v774, %v778
        %v780 = vshrl.u32 %v527, 16
        %v782 = vrot.slane %v780, 4
        %v783 = vor.u32 %v782, %v778
        %v784 = vrot.slane %v783, 4
        %v786 = vshll.u32 %v528, 16
        %v788 = vrot.slane %v786, 5
        %v789 = vsel %vm549, %v784, %v788
        %v791 = vshrl.u32 %v529, 16
        %v793 = vrot.slane %v791, 4
        %v794 = vshll.u32 %v529, 16
        %v796 = vrot.slane %v794, 5
        %v797 = vor.u32 %v793, %v796
        %v798 = vrot.slane %v797, 4
        %v800 = vshll.u32 %v530, 16
        %v802 = vrot.slane %v800, 5
        %v803 = vsel %vm549, %v798, %v802
        %v804 = vshrl.u32 %v530, 16
        %v806 = vrot.slane %v804, 4
        %v807 = vor.u32 %v806, %v802
        %v808 = vrot.slane %v807, 4
        %v810 = vshll.u32 %v531, 16
        %v812 = vrot.slane %v810, 5
        %v813 = vsel %vm549, %v808, %v812
        %v815 = vshrl.u32 %v532, 16
        %v817 = vrot.slane %v815, 4
        %v818 = vshll.u32 %v532, 16
        %v820 = vrot.slane %v818, 5
        %v821 = vor.u32 %v817, %v820
        %v822 = vrot.slane %v821, 4
        %v824 = vshll.u32 %v533, 16
        %v826 = vrot.slane %v824, 5
        %v827 = vsel %vm549, %v822, %v826
        %v828 = vshrl.u32 %v533, 16
        %v830 = vrot.slane %v828, 4
        %v831 = vor.u32 %v830, %v826
        %v832 = vrot.slane %v831, 4
        %v834 = vshll.u32 %v534, 16
        %v836 = vrot.slane %v834, 5
        %v837 = vsel %vm549, %v832, %v836
        %v839 = vshrl.u32 %v535, 16
        %v841 = vrot.slane %v839, 4
        %v842 = vshll.u32 %v535, 16
        %v844 = vrot.slane %v842, 5
        %v845 = vor.u32 %v841, %v844
        %v846 = vrot.slane %v845, 4
        %v848 = vshll.u32 %v536, 16
        %v850 = vrot.slane %v848, 5
        %v851 = vsel %vm549, %v846, %v850
        %v852 = vshrl.u32 %v536, 16
        %v854 = vrot.slane %v852, 4
        %v855 = vor.u32 %v854, %v850
        %v856 = vrot.slane %v855, 4
        %v858 = vshll.u32 %v537, 16
        %v860 = vrot.slane %v858, 5
        %v861 = vsel %vm549, %v856, %v860
        %v863 = vshrl.u32 %v538, 16
        %v865 = vrot.slane %v863, 4
        %v866 = vshll.u32 %v538, 16
        %v868 = vrot.slane %v866, 5
        %v869 = vor.u32 %v865, %v868
        %v870 = vrot.slane %v869, 4
        %v872 = vshll.u32 %v539, 16
        %v874 = vrot.slane %v872, 5
        %v875 = vsel %vm549, %v870, %v874
        %v876 = vshrl.u32 %v539, 16
        %v878 = vrot.slane %v876, 4
        %v879 = vor.u32 %v878, %v874
        %v880 = vrot.slane %v879, 4
        %v882 = vshll.u32 %v540, 16
        %v884 = vrot.slane %v882, 5
        %v885 = vsel %vm549, %v880, %v884
        %v887 = vshrl.u32 %v541, 16
        %v889 = vrot.slane %v887, 4
        %v890 = vshll.u32 %v541, 16
        %v892 = vrot.slane %v890, 5
        %v893 = vor.u32 %v889, %v892
        %v894 = vrot.slane %v893, 4
        %v896 = vshll.u32 %v542, 16
        %v898 = vrot.slane %v896, 5
        %v899 = vsel %vm549, %v894, %v898
        %v900 = vshrl.u32 %v542, 16
        %v902 = vrot.slane %v900, 4
        %v903 = vor.u32 %v902, %v898
        %v904 = vrot.slane %v903, 4
        %v906 = vshll.u32 %v543, 16
        %v908 = vrot.slane %v906, 5
        %v909 = vsel %vm549, %v904, %v908
        %v911 = vshrl.u32 %v544, 16
        %v913 = vrot.slane %v911, 4
        %v914 = vshll.u32 %v544, 16
        %v916 = vrot.slane %v914, 5
        %v917 = vor.u32 %v913, %v916
        %v918 = vrot.slane %v917, 4
        %v920 = vshll.u32 %v545, 16
        %v922 = vrot.slane %v920, 5
        %v923 = vsel %vm549, %v918, %v922
        %v924 = vshrl.u32 %v545, 16
        %v926 = vrot.slane %v924, 4
        %v927 = vor.u32 %v926, %v922
        %v928 = vrot.slane %v927, 4
        %v930 = vshll.u32 %v546, 16
        %v932 = vrot.slane %v930, 5
        %v933 = vsel %vm549, %v928, %v932
        %s934 = scalar_lea.vmem %s1, 2
        %v935 = vld [vmem:[%s934] sm:$0x3]
        %v936 = vunpack.c.l.b16 %v563
        %v937 = vunpack.c.l.b16 %v573
        %v938 = vunpack.c.l.b16 %v587
        %v939 = vunpack.c.l.b16 %v597
        %v940 = vunpack.c.l.b16 %v611
        %v941 = vunpack.c.l.b16 %v621
        %v942 = vunpack.c.l.b16 %v635
        %v943 = vunpack.c.l.b16 %v645
        %v944 = vunpack.c.l.b16 %v659
        %v945 = vunpack.c.l.b16 %v669
        %v946 = vunpack.c.l.b16 %v683
        %v947 = vunpack.c.l.b16 %v693
        %v948 = vunpack.c.l.b16 %v707
        %v949 = vunpack.c.l.b16 %v717
        %v950 = vunpack.c.l.b16 %v731
        %v951 = vunpack.c.l.b16 %v741
        %v952 = vunpack.c.l.b16 %v755
        %v953 = vunpack.c.l.b16 %v765
        %v954 = vunpack.c.l.b16 %v779
        %v955 = vunpack.c.l.b16 %v789
        %v956 = vunpack.c.l.b16 %v803
        %v957 = vunpack.c.l.b16 %v813
        %v958 = vunpack.c.l.b16 %v827
        %v959 = vunpack.c.l.b16 %v837
        %v960 = vunpack.c.l.b16 %v851
        %v961 = vunpack.c.l.b16 %v861
        %v962 = vunpack.c.l.b16 %v875
        %v963 = vunpack.c.l.b16 %v885
        %v964 = vunpack.c.l.b16 %v899
        %v965 = vunpack.c.l.b16 %v909
        %v966 = vunpack.c.l.b16 %v923
        %v967 = vunpack.c.l.b16 %v933
        %v968 = vpack.c.b16 %v937, %v936
        %v969 = vpack.c.b16 %v939, %v938
        %v970 = vpack.c.b16 %v941, %v940
        %v971 = vpack.c.b16 %v943, %v942
        %v972 = vpack.c.b16 %v945, %v944
        %v973 = vpack.c.b16 %v947, %v946
        %v974 = vpack.c.b16 %v949, %v948
        %v975 = vpack.c.b16 %v951, %v950
        %v976 = vpack.c.b16 %v953, %v952
        %v977 = vpack.c.b16 %v955, %v954
        %v978 = vpack.c.b16 %v957, %v956
        %v979 = vpack.c.b16 %v959, %v958
        %v980 = vpack.c.b16 %v961, %v960
        %v981 = vpack.c.b16 %v963, %v962
        %v982 = vpack.c.b16 %v965, %v964
        %v983 = vpack.c.b16 %v967, %v966
        %v985 = vsel %vm325, %v968, 0
        %v988 = vsel %vm325, %v969, 0
        %v991 = vsel %vm325, %v970, 0
        %v994 = vsel %vm325, %v971, 0
        %v997 = vsel %vm325, %v972, 0
        %v1000 = vsel %vm325, %v973, 0
        %v1003 = vsel %vm325, %v974, 0
        %v1006 = vsel %vm325, %v975, 0
        %v1009 = vsel %vm325, %v976, 0
        %v1012 = vsel %vm325, %v977, 0
        %v1015 = vsel %vm325, %v978, 0
        %v1018 = vsel %vm325, %v979, 0
        %v1021 = vsel %vm325, %v980, 0
        %v1024 = vsel %vm325, %v981, 0
        %v1027 = vsel %vm325, %v982, 0
        %v1030 = vsel %vm325, %v983, 0
        %v1033 = vsel %vm374, %v935, 0
        %1035 = vmatpush.bf16.msra.mxu0 0
        %1036 = vmatpush.bf16.msra.mxu0 0
        %1037 = vmatpush.bf16.msra.mxu0 0
        %1038 = vmatpush.bf16.msra.mxu0 0
        %1039 = vmatpush.bf16.msra.mxu0 0
        %1040 = vmatpush.bf16.msra.mxu0 0
        %1041 = vmatpush.bf16.msra.mxu0 0
        %1042 = vmatpush.bf16.msra.mxu0 %v1033
        %1043 = vmatmul.bf16.gmra.mxu0 %v985
        %v1044 = vpop.f32.mrf.mxu0
        %v1045 = vadd.f32 0.0, %v1044
        %v1046 = vpop.f32.mrf.mxu0
        %v1047 = vadd.f32 0.0, %v1046
        %1048 = vmatmul.bf16.gmra.mxu0 %v988
        %v1049 = vpop.f32.mrf.mxu0
        %v1050 = vadd.f32 0.0, %v1049
        %v1051 = vpop.f32.mrf.mxu0
        %v1052 = vadd.f32 0.0, %v1051
        %1053 = vmatmul.bf16.gmra.mxu0 %v991
        %v1054 = vpop.f32.mrf.mxu0
        %v1055 = vadd.f32 0.0, %v1054
        %v1056 = vpop.f32.mrf.mxu0
        %v1057 = vadd.f32 0.0, %v1056
        %1058 = vmatmul.bf16.gmra.mxu0 %v994
        %v1059 = vpop.f32.mrf.mxu0
        %v1060 = vadd.f32 0.0, %v1059
        %v1061 = vpop.f32.mrf.mxu0
        %v1062 = vadd.f32 0.0, %v1061
        %1063 = vmatmul.bf16.gmra.mxu0 %v997
        %v1064 = vpop.f32.mrf.mxu0
        %v1065 = vadd.f32 0.0, %v1064
        %v1066 = vpop.f32.mrf.mxu0
        %v1067 = vadd.f32 0.0, %v1066
        %1068 = vmatmul.bf16.gmra.mxu0 %v1000
        %v1069 = vpop.f32.mrf.mxu0
        %v1070 = vadd.f32 0.0, %v1069
        %v1071 = vpop.f32.mrf.mxu0
        %v1072 = vadd.f32 0.0, %v1071
        %1073 = vmatmul.bf16.gmra.mxu0 %v1003
        %v1074 = vpop.f32.mrf.mxu0
        %v1075 = vadd.f32 0.0, %v1074
        %v1076 = vpop.f32.mrf.mxu0
        %v1077 = vadd.f32 0.0, %v1076
        %1078 = vmatmul.bf16.gmra.mxu0 %v1006
        %v1079 = vpop.f32.mrf.mxu0
        %v1080 = vadd.f32 0.0, %v1079
        %v1081 = vpop.f32.mrf.mxu0
        %v1082 = vadd.f32 0.0, %v1081
        %1083 = vmatmul.bf16.gmra.mxu0 %v1009
        %v1084 = vpop.f32.mrf.mxu0
        %v1085 = vadd.f32 0.0, %v1084
        %v1086 = vpop.f32.mrf.mxu0
        %v1087 = vadd.f32 0.0, %v1086
        %1088 = vmatmul.bf16.gmra.mxu0 %v1012
        %v1089 = vpop.f32.mrf.mxu0
        %v1090 = vadd.f32 0.0, %v1089
        %v1091 = vpop.f32.mrf.mxu0
        %v1092 = vadd.f32 0.0, %v1091
        %1093 = vmatmul.bf16.gmra.mxu0 %v1015
        %v1094 = vpop.f32.mrf.mxu0
        %v1095 = vadd.f32 0.0, %v1094
        %v1096 = vpop.f32.mrf.mxu0
        %v1097 = vadd.f32 0.0, %v1096
        %1098 = vmatmul.bf16.gmra.mxu0 %v1018
        %v1099 = vpop.f32.mrf.mxu0
        %v1100 = vadd.f32 0.0, %v1099
        %v1101 = vpop.f32.mrf.mxu0
        %v1102 = vadd.f32 0.0, %v1101
        %1103 = vmatmul.bf16.gmra.mxu0 %v1021
        %v1104 = vpop.f32.mrf.mxu0
        %v1105 = vadd.f32 0.0, %v1104
        %v1106 = vpop.f32.mrf.mxu0
        %v1107 = vadd.f32 0.0, %v1106
        %1108 = vmatmul.bf16.gmra.mxu0 %v1024
        %v1109 = vpop.f32.mrf.mxu0
        %v1110 = vadd.f32 0.0, %v1109
        %v1111 = vpop.f32.mrf.mxu0
        %v1112 = vadd.f32 0.0, %v1111
        %1113 = vmatmul.bf16.gmra.mxu0 %v1027
        %v1114 = vpop.f32.mrf.mxu0
        %v1115 = vadd.f32 0.0, %v1114
        %v1116 = vpop.f32.mrf.mxu0
        %v1117 = vadd.f32 0.0, %v1116
        %1118 = vmatmul.bf16.gmra.mxu0 %v1030
        %v1119 = vpop.f32.mrf.mxu0
        %v1120 = vadd.f32 0.0, %v1119
        %v1121 = vpop.f32.mrf.mxu0
        %v1122 = vadd.f32 0.0, %v1121
        %1123 = vdwg.mxu0
        %v1124 = vld [vmem:[#allocation2] sm:$0xff]
        %v1125 = vld [vmem:[#allocation2 + $0x8] sm:$0xff]
        %v1126 = vld [vmem:[#allocation2 + $0x10] sm:$0xff]
        %v1127 = vld [vmem:[#allocation2 + $0x18] sm:$0xff]
        %v1128 = vld [vmem:[#allocation2 + $0x20] sm:$0xff]
        %v1129 = vld [vmem:[#allocation2 + $0x28] sm:$0xff]
        %v1130 = vld [vmem:[#allocation2 + $0x30] sm:$0xff]
        %v1131 = vld [vmem:[#allocation2 + $0x38] sm:$0xff]
        %v1132 = vld [vmem:[#allocation2 + $0x40] sm:$0xff]
        %v1133 = vld [vmem:[#allocation2 + $0x48] sm:$0xff]
        %v1134 = vld [vmem:[#allocation2 + $0x50] sm:$0xff]
        %v1135 = vld [vmem:[#allocation2 + $0x58] sm:$0xff]
        %v1136 = vld [vmem:[#allocation2 + $0x60] sm:$0xff]
        %v1137 = vld [vmem:[#allocation2 + $0x68] sm:$0xff]
        %v1138 = vld [vmem:[#allocation2 + $0x70] sm:$0xff]
        %v1139 = vld [vmem:[#allocation2 + $0x78] sm:$0xff]
        %v1140 = vld [vmem:[#allocation2 + $0x80] sm:$0xff]
        %v1141 = vld [vmem:[#allocation2 + $0x88] sm:$0xff]
        %v1142 = vld [vmem:[#allocation2 + $0x90] sm:$0xff]
        %v1143 = vld [vmem:[#allocation2 + $0x98] sm:$0xff]
        %v1144 = vld [vmem:[#allocation2 + $0xa0] sm:$0xff]
        %v1145 = vld [vmem:[#allocation2 + $0xa8] sm:$0xff]
        %v1146 = vld [vmem:[#allocation2 + $0xb0] sm:$0xff]
        %v1147 = vld [vmem:[#allocation2 + $0xb8] sm:$0xff]
        %v1148 = vld [vmem:[#allocation2 + $0xc0] sm:$0xff]
        %v1149 = vld [vmem:[#allocation2 + $0xc8] sm:$0xff]
        %v1150 = vld [vmem:[#allocation2 + $0xd0] sm:$0xff]
        %v1151 = vld [vmem:[#allocation2 + $0xd8] sm:$0xff]
        %v1152 = vld [vmem:[#allocation2 + $0xe0] sm:$0xff]
        %v1153 = vld [vmem:[#allocation2 + $0xe8] sm:$0xff]
        %v1154 = vld [vmem:[#allocation2 + $0xf0] sm:$0xff]
        %v1155 = vld [vmem:[#allocation2 + $0xf8] sm:$0xff]
        %v1156 = vadd.f32 %v1124, %v1045
        %v1157 = vadd.f32 %v1125, %v1047
        %v1158 = vadd.f32 %v1126, %v1050
        %v1159 = vadd.f32 %v1127, %v1052
        %v1160 = vadd.f32 %v1128, %v1055
        %v1161 = vadd.f32 %v1129, %v1057
        %v1162 = vadd.f32 %v1130, %v1060
        %v1163 = vadd.f32 %v1131, %v1062
        %v1164 = vadd.f32 %v1132, %v1065
        %v1165 = vadd.f32 %v1133, %v1067
        %v1166 = vadd.f32 %v1134, %v1070
        %v1167 = vadd.f32 %v1135, %v1072
        %v1168 = vadd.f32 %v1136, %v1075
        %v1169 = vadd.f32 %v1137, %v1077
        %v1170 = vadd.f32 %v1138, %v1080
        %v1171 = vadd.f32 %v1139, %v1082
        %v1172 = vadd.f32 %v1140, %v1085
        %v1173 = vadd.f32 %v1141, %v1087
        %v1174 = vadd.f32 %v1142, %v1090
        %v1175 = vadd.f32 %v1143, %v1092
        %v1176 = vadd.f32 %v1144, %v1095
        %v1177 = vadd.f32 %v1145, %v1097
        %v1178 = vadd.f32 %v1146, %v1100
        %v1179 = vadd.f32 %v1147, %v1102
        %v1180 = vadd.f32 %v1148, %v1105
        %v1181 = vadd.f32 %v1149, %v1107
        %v1182 = vadd.f32 %v1150, %v1110
        %v1183 = vadd.f32 %v1151, %v1112
        %v1184 = vadd.f32 %v1152, %v1115
        %v1185 = vadd.f32 %v1153, %v1117
        %v1186 = vadd.f32 %v1154, %v1120
        %v1187 = vadd.f32 %v1155, %v1122
        %1188 = vst [vmem:[#allocation2] sm:$0xff] %v1156
        %1189 = vst [vmem:[#allocation2 + $0x8] sm:$0xff] %v1157
        %1190 = vst [vmem:[#allocation2 + $0x10] sm:$0xff] %v1158
        %1191 = vst [vmem:[#allocation2 + $0x18] sm:$0xff] %v1159
        %1192 = vst [vmem:[#allocation2 + $0x20] sm:$0xff] %v1160
        %1193 = vst [vmem:[#allocation2 + $0x28] sm:$0xff] %v1161
        %1194 = vst [vmem:[#allocation2 + $0x30] sm:$0xff] %v1162
        %1195 = vst [vmem:[#allocation2 + $0x38] sm:$0xff] %v1163
        %1196 = vst [vmem:[#allocation2 + $0x40] sm:$0xff] %v1164
        %1197 = vst [vmem:[#allocation2 + $0x48] sm:$0xff] %v1165
        %1198 = vst [vmem:[#allocation2 + $0x50] sm:$0xff] %v1166
        %1199 = vst [vmem:[#allocation2 + $0x58] sm:$0xff] %v1167
        %1200 = vst [vmem:[#allocation2 + $0x60] sm:$0xff] %v1168
        %1201 = vst [vmem:[#allocation2 + $0x68] sm:$0xff] %v1169
        %1202 = vst [vmem:[#allocation2 + $0x70] sm:$0xff] %v1170
        %1203 = vst [vmem:[#allocation2 + $0x78] sm:$0xff] %v1171
        %1204 = vst [vmem:[#allocation2 + $0x80] sm:$0xff] %v1172
        %1205 = vst [vmem:[#allocation2 + $0x88] sm:$0xff] %v1173
        %1206 = vst [vmem:[#allocation2 + $0x90] sm:$0xff] %v1174
        %1207 = vst [vmem:[#allocation2 + $0x98] sm:$0xff] %v1175
        %1208 = vst [vmem:[#allocation2 + $0xa0] sm:$0xff] %v1176
        %1209 = vst [vmem:[#allocation2 + $0xa8] sm:$0xff] %v1177
        %1210 = vst [vmem:[#allocation2 + $0xb0] sm:$0xff] %v1178
        %1211 = vst [vmem:[#allocation2 + $0xb8] sm:$0xff] %v1179
        %1212 = vst [vmem:[#allocation2 + $0xc0] sm:$0xff] %v1180
        %1213 = vst [vmem:[#allocation2 + $0xc8] sm:$0xff] %v1181
        %1214 = vst [vmem:[#allocation2 + $0xd0] sm:$0xff] %v1182
        %1215 = vst [vmem:[#allocation2 + $0xd8] sm:$0xff] %v1183
        %1216 = vst [vmem:[#allocation2 + $0xe0] sm:$0xff] %v1184
        %1217 = vst [vmem:[#allocation2 + $0xe8] sm:$0xff] %v1185
        %1218 = vst [vmem:[#allocation2 + $0xf0] sm:$0xff] %v1186
        %1219 = vst [vmem:[#allocation2 + $0xf8] sm:$0xff] %v1187
        %v1220 = vld [vmem:[%s210] sm:$0xe]
        %v1221 = vld [vmem:[%s210 + $0x4] sm:$0xf]
        %v1222 = vld [vmem:[%s210 + $0x8] sm:$0x1]
        %v1223 = vld [vmem:[%s210 + $0xc] sm:$0xe]
        %v1224 = vld [vmem:[%s210 + $0x10] sm:$0xf]
        %v1225 = vld [vmem:[%s210 + $0x14] sm:$0x1]
        %v1226 = vld [vmem:[%s210 + $0x18] sm:$0xe]
        %v1227 = vld [vmem:[%s210 + $0x1c] sm:$0xf]
        %v1228 = vld [vmem:[%s210 + $0x20] sm:$0x1]
        %v1229 = vld [vmem:[%s210 + $0x24] sm:$0xe]
        %v1230 = vld [vmem:[%s210 + $0x28] sm:$0xf]
        %v1231 = vld [vmem:[%s210 + $0x2c] sm:$0x1]
        %v1232 = vld [vmem:[%s210 + $0x30] sm:$0xe]
        %v1233 = vld [vmem:[%s210 + $0x34] sm:$0xf]
        %v1234 = vld [vmem:[%s210 + $0x38] sm:$0x1]
        %v1235 = vld [vmem:[%s210 + $0x3c] sm:$0xe]
        %v1236 = vld [vmem:[%s210 + $0x40] sm:$0xf]
        %v1237 = vld [vmem:[%s210 + $0x44] sm:$0x1]
        %v1238 = vld [vmem:[%s210 + $0x48] sm:$0xe]
        %v1239 = vld [vmem:[%s210 + $0x4c] sm:$0xf]
        %v1240 = vld [vmem:[%s210 + $0x50] sm:$0x1]
        %v1241 = vld [vmem:[%s210 + $0x54] sm:$0xe]
        %v1242 = vld [vmem:[%s210 + $0x58] sm:$0xf]
        %v1243 = vld [vmem:[%s210 + $0x5c] sm:$0x1]
        %v1244 = vld [vmem:[%s210 + $0x60] sm:$0xe]
        %v1245 = vld [vmem:[%s210 + $0x64] sm:$0xf]
        %v1246 = vld [vmem:[%s210 + $0x68] sm:$0x1]
        %v1247 = vld [vmem:[%s210 + $0x6c] sm:$0xe]
        %v1248 = vld [vmem:[%s210 + $0x70] sm:$0xf]
        %v1249 = vld [vmem:[%s210 + $0x74] sm:$0x1]
        %v1250 = vld [vmem:[%s210 + $0x78] sm:$0xe]
        %v1251 = vld [vmem:[%s210 + $0x7c] sm:$0xf]
        %v1252 = vld [vmem:[%s210 + $0x80] sm:$0x1]
        %v1253 = vld [vmem:[%s210 + $0x84] sm:$0xe]
        %v1254 = vld [vmem:[%s210 + $0x88] sm:$0xf]
        %v1255 = vld [vmem:[%s210 + $0x8c] sm:$0x1]
        %v1256 = vld [vmem:[%s210 + $0x90] sm:$0xe]
        %v1257 = vld [vmem:[%s210 + $0x94] sm:$0xf]
        %v1258 = vld [vmem:[%s210 + $0x98] sm:$0x1]
        %v1259 = vld [vmem:[%s210 + $0x9c] sm:$0xe]
        %v1260 = vld [vmem:[%s210 + $0xa0] sm:$0xf]
        %v1261 = vld [vmem:[%s210 + $0xa4] sm:$0x1]
        %v1262 = vld [vmem:[%s210 + $0xa8] sm:$0xe]
        %v1263 = vld [vmem:[%s210 + $0xac] sm:$0xf]
        %v1264 = vld [vmem:[%s210 + $0xb0] sm:$0x1]
        %v1265 = vld [vmem:[%s210 + $0xb4] sm:$0xe]
        %v1266 = vld [vmem:[%s210 + $0xb8] sm:$0xf]
        %v1267 = vld [vmem:[%s210 + $0xbc] sm:$0x1]
        %vm1316 = vcmask 1042432
        %vm1317 = vcmask 1046532
        %vm1318 = vmor %vm1316, %vm1317
        %v1319 = vrot.slane %v1220, 5
        %v1320 = vrot.slane %v1319, 4
        %v1321 = vrot.slane %v1221, 5
        %v1322 = vsel %vm1318, %v1320, %v1321
        %v1323 = vrot.slane %v1321, 4
        %v1324 = vrot.slane %v1222, 5
        %v1325 = vsel %vm1318, %v1323, %v1324
        %v1326 = vrot.slane %v1223, 5
        %v1327 = vrot.slane %v1326, 4
        %v1328 = vrot.slane %v1224, 5
        %v1329 = vsel %vm1318, %v1327, %v1328
        %v1330 = vrot.slane %v1328, 4
        %v1331 = vrot.slane %v1225, 5
        %v1332 = vsel %vm1318, %v1330, %v1331
        %v1333 = vrot.slane %v1226, 5
        %v1334 = vrot.slane %v1333, 4
        %v1335 = vrot.slane %v1227, 5
        %v1336 = vsel %vm1318, %v1334, %v1335
        %v1337 = vrot.slane %v1335, 4
        %v1338 = vrot.slane %v1228, 5
        %v1339 = vsel %vm1318, %v1337, %v1338
        %v1340 = vrot.slane %v1229, 5
        %v1341 = vrot.slane %v1340, 4
        %v1342 = vrot.slane %v1230, 5
        %v1343 = vsel %vm1318, %v1341, %v1342
        %v1344 = vrot.slane %v1342, 4
        %v1345 = vrot.slane %v1231, 5
        %v1346 = vsel %vm1318, %v1344, %v1345
        %v1347 = vrot.slane %v1232, 5
        %v1348 = vrot.slane %v1347, 4
        %v1349 = vrot.slane %v1233, 5
        %v1350 = vsel %vm1318, %v1348, %v1349
        %v1351 = vrot.slane %v1349, 4
        %v1352 = vrot.slane %v1234, 5
        %v1353 = vsel %vm1318, %v1351, %v1352
        %v1354 = vrot.slane %v1235, 5
        %v1355 = vrot.slane %v1354, 4
        %v1356 = vrot.slane %v1236, 5
        %v1357 = vsel %vm1318, %v1355, %v1356
        %v1358 = vrot.slane %v1356, 4
        %v1359 = vrot.slane %v1237, 5
        %v1360 = vsel %vm1318, %v1358, %v1359
        %v1361 = vrot.slane %v1238, 5
        %v1362 = vrot.slane %v1361, 4
        %v1363 = vrot.slane %v1239, 5
        %v1364 = vsel %vm1318, %v1362, %v1363
        %v1365 = vrot.slane %v1363, 4
        %v1366 = vrot.slane %v1240, 5
        %v1367 = vsel %vm1318, %v1365, %v1366
        %v1368 = vrot.slane %v1241, 5
        %v1369 = vrot.slane %v1368, 4
        %v1370 = vrot.slane %v1242, 5
        %v1371 = vsel %vm1318, %v1369, %v1370
        %v1372 = vrot.slane %v1370, 4
        %v1373 = vrot.slane %v1243, 5
        %v1374 = vsel %vm1318, %v1372, %v1373
        %v1375 = vrot.slane %v1244, 5
        %v1376 = vrot.slane %v1375, 4
        %v1377 = vrot.slane %v1245, 5
        %v1378 = vsel %vm1318, %v1376, %v1377
        %v1379 = vrot.slane %v1377, 4
        %v1380 = vrot.slane %v1246, 5
        %v1381 = vsel %vm1318, %v1379, %v1380
        %v1382 = vrot.slane %v1247, 5
        %v1383 = vrot.slane %v1382, 4
        %v1384 = vrot.slane %v1248, 5
        %v1385 = vsel %vm1318, %v1383, %v1384
        %v1386 = vrot.slane %v1384, 4
        %v1387 = vrot.slane %v1249, 5
        %v1388 = vsel %vm1318, %v1386, %v1387
        %v1389 = vrot.slane %v1250, 5
        %v1390 = vrot.slane %v1389, 4
        %v1391 = vrot.slane %v1251, 5
        %v1392 = vsel %vm1318, %v1390, %v1391
        %v1393 = vrot.slane %v1391, 4
        %v1394 = vrot.slane %v1252, 5
        %v1395 = vsel %vm1318, %v1393, %v1394
        %v1396 = vrot.slane %v1253, 5
        %v1397 = vrot.slane %v1396, 4
        %v1398 = vrot.slane %v1254, 5
        %v1399 = vsel %vm1318, %v1397, %v1398
        %v1400 = vrot.slane %v1398, 4
        %v1401 = vrot.slane %v1255, 5
        %v1402 = vsel %vm1318, %v1400, %v1401
        %v1403 = vrot.slane %v1256, 5
        %v1404 = vrot.slane %v1403, 4
        %v1405 = vrot.slane %v1257, 5
        %v1406 = vsel %vm1318, %v1404, %v1405
        %v1407 = vrot.slane %v1405, 4
        %v1408 = vrot.slane %v1258, 5
        %v1409 = vsel %vm1318, %v1407, %v1408
        %v1410 = vrot.slane %v1259, 5
        %v1411 = vrot.slane %v1410, 4
        %v1412 = vrot.slane %v1260, 5
        %v1413 = vsel %vm1318, %v1411, %v1412
        %v1414 = vrot.slane %v1412, 4
        %v1415 = vrot.slane %v1261, 5
        %v1416 = vsel %vm1318, %v1414, %v1415
        %v1417 = vrot.slane %v1262, 5
        %v1418 = vrot.slane %v1417, 4
        %v1419 = vrot.slane %v1263, 5
        %v1420 = vsel %vm1318, %v1418, %v1419
        %v1421 = vrot.slane %v1419, 4
        %v1422 = vrot.slane %v1264, 5
        %v1423 = vsel %vm1318, %v1421, %v1422
        %v1424 = vrot.slane %v1265, 5
        %v1425 = vrot.slane %v1424, 4
        %v1426 = vrot.slane %v1266, 5
        %v1427 = vsel %vm1318, %v1425, %v1426
        %v1428 = vrot.slane %v1426, 4
        %v1429 = vrot.slane %v1267, 5
        %v1430 = vsel %vm1318, %v1428, %v1429
        %s1431 = scalar_lea.vmem %s1, 4
        %v1432 = vld [vmem:[%s1431] sm:$0x3]
        %v1433 = vunpack.c.l.b16 %v1322
        %v1434 = vunpack.c.l.b16 %v1325
        %v1435 = vunpack.c.l.b16 %v1329
        %v1436 = vunpack.c.l.b16 %v1332
        %v1437 = vunpack.c.l.b16 %v1336
        %v1438 = vunpack.c.l.b16 %v1339
        %v1439 = vunpack.c.l.b16 %v1343
        %v1440 = vunpack.c.l.b16 %v1346
        %v1441 = vunpack.c.l.b16 %v1350
        %v1442 = vunpack.c.l.b16 %v1353
        %v1443 = vunpack.c.l.b16 %v1357
        %v1444 = vunpack.c.l.b16 %v1360
        %v1445 = vunpack.c.l.b16 %v1364
        %v1446 = vunpack.c.l.b16 %v1367
        %v1447 = vunpack.c.l.b16 %v1371
        %v1448 = vunpack.c.l.b16 %v1374
        %v1449 = vunpack.c.l.b16 %v1378
        %v1450 = vunpack.c.l.b16 %v1381
        %v1451 = vunpack.c.l.b16 %v1385
        %v1452 = vunpack.c.l.b16 %v1388
        %v1453 = vunpack.c.l.b16 %v1392
        %v1454 = vunpack.c.l.b16 %v1395
        %v1455 = vunpack.c.l.b16 %v1399
        %v1456 = vunpack.c.l.b16 %v1402
        %v1457 = vunpack.c.l.b16 %v1406
        %v1458 = vunpack.c.l.b16 %v1409
        %v1459 = vunpack.c.l.b16 %v1413
        %v1460 = vunpack.c.l.b16 %v1416
        %v1461 = vunpack.c.l.b16 %v1420
        %v1462 = vunpack.c.l.b16 %v1423
        %v1463 = vunpack.c.l.b16 %v1427
        %v1464 = vunpack.c.l.b16 %v1430
        %v1465 = vpack.c.b16 %v1434, %v1433
        %v1466 = vpack.c.b16 %v1436, %v1435
        %v1467 = vpack.c.b16 %v1438, %v1437
        %v1468 = vpack.c.b16 %v1440, %v1439
        %v1469 = vpack.c.b16 %v1442, %v1441
        %v1470 = vpack.c.b16 %v1444, %v1443
        %v1471 = vpack.c.b16 %v1446, %v1445
        %v1472 = vpack.c.b16 %v1448, %v1447
        %v1473 = vpack.c.b16 %v1450, %v1449
        %v1474 = vpack.c.b16 %v1452, %v1451
        %v1475 = vpack.c.b16 %v1454, %v1453
        %v1476 = vpack.c.b16 %v1456, %v1455
        %v1477 = vpack.c.b16 %v1458, %v1457
        %v1478 = vpack.c.b16 %v1460, %v1459
        %v1479 = vpack.c.b16 %v1462, %v1461
        %v1480 = vpack.c.b16 %v1464, %v1463
        %v1482 = vsel %vm325, %v1465, 0
        %v1485 = vsel %vm325, %v1466, 0
        %v1488 = vsel %vm325, %v1467, 0
        %v1491 = vsel %vm325, %v1468, 0
        %v1494 = vsel %vm325, %v1469, 0
        %v1497 = vsel %vm325, %v1470, 0
        %v1500 = vsel %vm325, %v1471, 0
        %v1503 = vsel %vm325, %v1472, 0
        %v1506 = vsel %vm325, %v1473, 0
        %v1509 = vsel %vm325, %v1474, 0
        %v1512 = vsel %vm325, %v1475, 0
        %v1515 = vsel %vm325, %v1476, 0
        %v1518 = vsel %vm325, %v1477, 0
        %v1521 = vsel %vm325, %v1478, 0
        %v1524 = vsel %vm325, %v1479, 0
        %v1527 = vsel %vm325, %v1480, 0
        %v1530 = vsel %vm374, %v1432, 0
        %1532 = vmatpush.bf16.msra.mxu0 0
        %1533 = vmatpush.bf16.msra.mxu0 0
        %1534 = vmatpush.bf16.msra.mxu0 0
        %1535 = vmatpush.bf16.msra.mxu0 0
        %1536 = vmatpush.bf16.msra.mxu0 0
        %1537 = vmatpush.bf16.msra.mxu0 0
        %1538 = vmatpush.bf16.msra.mxu0 0
        %1539 = vmatpush.bf16.msra.mxu0 %v1530
        %1540 = vmatmul.bf16.gmra.mxu0 %v1482
        %v1541 = vpop.f32.mrf.mxu0
        %v1542 = vadd.f32 0.0, %v1541
        %v1543 = vpop.f32.mrf.mxu0
        %v1544 = vadd.f32 0.0, %v1543
        %1545 = vmatmul.bf16.gmra.mxu0 %v1485
        %v1546 = vpop.f32.mrf.mxu0
        %v1547 = vadd.f32 0.0, %v1546
        %v1548 = vpop.f32.mrf.mxu0
        %v1549 = vadd.f32 0.0, %v1548
        %1550 = vmatmul.bf16.gmra.mxu0 %v1488
        %v1551 = vpop.f32.mrf.mxu0
        %v1552 = vadd.f32 0.0, %v1551
        %v1553 = vpop.f32.mrf.mxu0
        %v1554 = vadd.f32 0.0, %v1553
        %1555 = vmatmul.bf16.gmra.mxu0 %v1491
        %v1556 = vpop.f32.mrf.mxu0
        %v1557 = vadd.f32 0.0, %v1556
        %v1558 = vpop.f32.mrf.mxu0
        %v1559 = vadd.f32 0.0, %v1558
        %1560 = vmatmul.bf16.gmra.mxu0 %v1494
        %v1561 = vpop.f32.mrf.mxu0
        %v1562 = vadd.f32 0.0, %v1561
        %v1563 = vpop.f32.mrf.mxu0
        %v1564 = vadd.f32 0.0, %v1563
        %1565 = vmatmul.bf16.gmra.mxu0 %v1497
        %v1566 = vpop.f32.mrf.mxu0
        %v1567 = vadd.f32 0.0, %v1566
        %v1568 = vpop.f32.mrf.mxu0
        %v1569 = vadd.f32 0.0, %v1568
        %1570 = vmatmul.bf16.gmra.mxu0 %v1500
        %v1571 = vpop.f32.mrf.mxu0
        %v1572 = vadd.f32 0.0, %v1571
        %v1573 = vpop.f32.mrf.mxu0
        %v1574 = vadd.f32 0.0, %v1573
        %1575 = vmatmul.bf16.gmra.mxu0 %v1503
        %v1576 = vpop.f32.mrf.mxu0
        %v1577 = vadd.f32 0.0, %v1576
        %v1578 = vpop.f32.mrf.mxu0
        %v1579 = vadd.f32 0.0, %v1578
        %1580 = vmatmul.bf16.gmra.mxu0 %v1506
        %v1581 = vpop.f32.mrf.mxu0
        %v1582 = vadd.f32 0.0, %v1581
        %v1583 = vpop.f32.mrf.mxu0
        %v1584 = vadd.f32 0.0, %v1583
        %1585 = vmatmul.bf16.gmra.mxu0 %v1509
        %v1586 = vpop.f32.mrf.mxu0
        %v1587 = vadd.f32 0.0, %v1586
        %v1588 = vpop.f32.mrf.mxu0
        %v1589 = vadd.f32 0.0, %v1588
        %1590 = vmatmul.bf16.gmra.mxu0 %v1512
        %v1591 = vpop.f32.mrf.mxu0
        %v1592 = vadd.f32 0.0, %v1591
        %v1593 = vpop.f32.mrf.mxu0
        %v1594 = vadd.f32 0.0, %v1593
        %1595 = vmatmul.bf16.gmra.mxu0 %v1515
        %v1596 = vpop.f32.mrf.mxu0
        %v1597 = vadd.f32 0.0, %v1596
        %v1598 = vpop.f32.mrf.mxu0
        %v1599 = vadd.f32 0.0, %v1598
        %1600 = vmatmul.bf16.gmra.mxu0 %v1518
        %v1601 = vpop.f32.mrf.mxu0
        %v1602 = vadd.f32 0.0, %v1601
        %v1603 = vpop.f32.mrf.mxu0
        %v1604 = vadd.f32 0.0, %v1603
        %1605 = vmatmul.bf16.gmra.mxu0 %v1521
        %v1606 = vpop.f32.mrf.mxu0
        %v1607 = vadd.f32 0.0, %v1606
        %v1608 = vpop.f32.mrf.mxu0
        %v1609 = vadd.f32 0.0, %v1608
        %1610 = vmatmul.bf16.gmra.mxu0 %v1524
        %v1611 = vpop.f32.mrf.mxu0
        %v1612 = vadd.f32 0.0, %v1611
        %v1613 = vpop.f32.mrf.mxu0
        %v1614 = vadd.f32 0.0, %v1613
        %1615 = vmatmul.bf16.gmra.mxu0 %v1527
        %v1616 = vpop.f32.mrf.mxu0
        %v1617 = vadd.f32 0.0, %v1616
        %v1618 = vpop.f32.mrf.mxu0
        %v1619 = vadd.f32 0.0, %v1618
        %1620 = vdwg.mxu0
        %v1621 = vld [vmem:[#allocation2] sm:$0xff]
        %v1622 = vld [vmem:[#allocation2 + $0x8] sm:$0xff]
        %v1623 = vld [vmem:[#allocation2 + $0x10] sm:$0xff]
        %v1624 = vld [vmem:[#allocation2 + $0x18] sm:$0xff]
        %v1625 = vld [vmem:[#allocation2 + $0x20] sm:$0xff]
        %v1626 = vld [vmem:[#allocation2 + $0x28] sm:$0xff]
        %v1627 = vld [vmem:[#allocation2 + $0x30] sm:$0xff]
        %v1628 = vld [vmem:[#allocation2 + $0x38] sm:$0xff]
        %v1629 = vld [vmem:[#allocation2 + $0x40] sm:$0xff]
        %v1630 = vld [vmem:[#allocation2 + $0x48] sm:$0xff]
        %v1631 = vld [vmem:[#allocation2 + $0x50] sm:$0xff]
        %v1632 = vld [vmem:[#allocation2 + $0x58] sm:$0xff]
        %v1633 = vld [vmem:[#allocation2 + $0x60] sm:$0xff]
        %v1634 = vld [vmem:[#allocation2 + $0x68] sm:$0xff]
        %v1635 = vld [vmem:[#allocation2 + $0x70] sm:$0xff]
        %v1636 = vld [vmem:[#allocation2 + $0x78] sm:$0xff]
        %v1637 = vld [vmem:[#allocation2 + $0x80] sm:$0xff]
        %v1638 = vld [vmem:[#allocation2 + $0x88] sm:$0xff]
        %v1639 = vld [vmem:[#allocation2 + $0x90] sm:$0xff]
        %v1640 = vld [vmem:[#allocation2 + $0x98] sm:$0xff]
        %v1641 = vld [vmem:[#allocation2 + $0xa0] sm:$0xff]
        %v1642 = vld [vmem:[#allocation2 + $0xa8] sm:$0xff]
        %v1643 = vld [vmem:[#allocation2 + $0xb0] sm:$0xff]
        %v1644 = vld [vmem:[#allocation2 + $0xb8] sm:$0xff]
        %v1645 = vld [vmem:[#allocation2 + $0xc0] sm:$0xff]
        %v1646 = vld [vmem:[#allocation2 + $0xc8] sm:$0xff]
        %v1647 = vld [vmem:[#allocation2 + $0xd0] sm:$0xff]
        %v1648 = vld [vmem:[#allocation2 + $0xd8] sm:$0xff]
        %v1649 = vld [vmem:[#allocation2 + $0xe0] sm:$0xff]
        %v1650 = vld [vmem:[#allocation2 + $0xe8] sm:$0xff]
        %v1651 = vld [vmem:[#allocation2 + $0xf0] sm:$0xff]
        %v1652 = vld [vmem:[#allocation2 + $0xf8] sm:$0xff]
        %v1653 = vadd.f32 %v1621, %v1542
        %v1654 = vadd.f32 %v1622, %v1544
        %v1655 = vadd.f32 %v1623, %v1547
        %v1656 = vadd.f32 %v1624, %v1549
        %v1657 = vadd.f32 %v1625, %v1552
        %v1658 = vadd.f32 %v1626, %v1554
        %v1659 = vadd.f32 %v1627, %v1557
        %v1660 = vadd.f32 %v1628, %v1559
        %v1661 = vadd.f32 %v1629, %v1562
        %v1662 = vadd.f32 %v1630, %v1564
        %v1663 = vadd.f32 %v1631, %v1567
        %v1664 = vadd.f32 %v1632, %v1569
        %v1665 = vadd.f32 %v1633, %v1572
        %v1666 = vadd.f32 %v1634, %v1574
        %v1667 = vadd.f32 %v1635, %v1577
        %v1668 = vadd.f32 %v1636, %v1579
        %v1669 = vadd.f32 %v1637, %v1582
        %v1670 = vadd.f32 %v1638, %v1584
        %v1671 = vadd.f32 %v1639, %v1587
        %v1672 = vadd.f32 %v1640, %v1589
        %v1673 = vadd.f32 %v1641, %v1592
        %v1674 = vadd.f32 %v1642, %v1594
        %v1675 = vadd.f32 %v1643, %v1597
        %v1676 = vadd.f32 %v1644, %v1599
        %v1677 = vadd.f32 %v1645, %v1602
        %v1678 = vadd.f32 %v1646, %v1604
        %v1679 = vadd.f32 %v1647, %v1607
        %v1680 = vadd.f32 %v1648, %v1609
        %v1681 = vadd.f32 %v1649, %v1612
        %v1682 = vadd.f32 %v1650, %v1614
        %v1683 = vadd.f32 %v1651, %v1617
        %v1684 = vadd.f32 %v1652, %v1619
        %1685 = vst [vmem:[#allocation2] sm:$0xff] %v1653
        %1686 = vst [vmem:[#allocation2 + $0x8] sm:$0xff] %v1654
        %1687 = vst [vmem:[#allocation2 + $0x10] sm:$0xff] %v1655
        %1688 = vst [vmem:[#allocation2 + $0x18] sm:$0xff] %v1656
        %1689 = vst [vmem:[#allocation2 + $0x20] sm:$0xff] %v1657
        %1690 = vst [vmem:[#allocation2 + $0x28] sm:$0xff] %v1658
        %1691 = vst [vmem:[#allocation2 + $0x30] sm:$0xff] %v1659
        %1692 = vst [vmem:[#allocation2 + $0x38] sm:$0xff] %v1660
        %1693 = vst [vmem:[#allocation2 + $0x40] sm:$0xff] %v1661
        %1694 = vst [vmem:[#allocation2 + $0x48] sm:$0xff] %v1662
        %1695 = vst [vmem:[#allocation2 + $0x50] sm:$0xff] %v1663
        %1696 = vst [vmem:[#allocation2 + $0x58] sm:$0xff] %v1664
        %1697 = vst [vmem:[#allocation2 + $0x60] sm:$0xff] %v1665
        %1698 = vst [vmem:[#allocation2 + $0x68] sm:$0xff] %v1666
        %1699 = vst [vmem:[#allocation2 + $0x70] sm:$0xff] %v1667
        %1700 = vst [vmem:[#allocation2 + $0x78] sm:$0xff] %v1668
        %1701 = vst [vmem:[#allocation2 + $0x80] sm:$0xff] %v1669
        %1702 = vst [vmem:[#allocation2 + $0x88] sm:$0xff] %v1670
        %1703 = vst [vmem:[#allocation2 + $0x90] sm:$0xff] %v1671
        %1704 = vst [vmem:[#allocation2 + $0x98] sm:$0xff] %v1672
        %1705 = vst [vmem:[#allocation2 + $0xa0] sm:$0xff] %v1673
        %1706 = vst [vmem:[#allocation2 + $0xa8] sm:$0xff] %v1674
        %1707 = vst [vmem:[#allocation2 + $0xb0] sm:$0xff] %v1675
        %1708 = vst [vmem:[#allocation2 + $0xb8] sm:$0xff] %v1676
        %1709 = vst [vmem:[#allocation2 + $0xc0] sm:$0xff] %v1677
        %1710 = vst [vmem:[#allocation2 + $0xc8] sm:$0xff] %v1678
        %1711 = vst [vmem:[#allocation2 + $0xd0] sm:$0xff] %v1679
        %1712 = vst [vmem:[#allocation2 + $0xd8] sm:$0xff] %v1680
        %1713 = vst [vmem:[#allocation2 + $0xe0] sm:$0xff] %v1681
        %1714 = vst [vmem:[#allocation2 + $0xe8] sm:$0xff] %v1682
        %1715 = vst [vmem:[#allocation2 + $0xf0] sm:$0xff] %v1683
        %1716 = vst [vmem:[#allocation2 + $0xf8] sm:$0xff] %v1684
        %s1717 = scalar_lea.vmem %s210, 12
        %v1718 = vld [vmem:[%s1717] sm:$0xf]
        %v1719 = vld [vmem:[%s1717 + $0x4] sm:$0xf]
        %v1720 = vld [vmem:[%s1717 + $0xc] sm:$0xf]
        %v1721 = vld [vmem:[%s1717 + $0x10] sm:$0xf]
        %v1722 = vld [vmem:[%s1717 + $0x18] sm:$0xf]
        %v1723 = vld [vmem:[%s1717 + $0x1c] sm:$0xf]
        %v1724 = vld [vmem:[%s1717 + $0x24] sm:$0xf]
        %v1725 = vld [vmem:[%s1717 + $0x28] sm:$0xf]
        %v1726 = vld [vmem:[%s1717 + $0x30] sm:$0xf]
        %v1727 = vld [vmem:[%s1717 + $0x34] sm:$0xf]
        %v1728 = vld [vmem:[%s1717 + $0x3c] sm:$0xf]
        %v1729 = vld [vmem:[%s1717 + $0x40] sm:$0xf]
        %v1730 = vld [vmem:[%s1717 + $0x48] sm:$0xf]
        %v1731 = vld [vmem:[%s1717 + $0x4c] sm:$0xf]
        %v1732 = vld [vmem:[%s1717 + $0x54] sm:$0xf]
        %v1733 = vld [vmem:[%s1717 + $0x58] sm:$0xf]
        %v1734 = vld [vmem:[%s1717 + $0x60] sm:$0xf]
        %v1735 = vld [vmem:[%s1717 + $0x64] sm:$0xf]
        %v1736 = vld [vmem:[%s1717 + $0x6c] sm:$0xf]
        %v1737 = vld [vmem:[%s1717 + $0x70] sm:$0xf]
        %v1738 = vld [vmem:[%s1717 + $0x78] sm:$0xf]
        %v1739 = vld [vmem:[%s1717 + $0x7c] sm:$0xf]
        %v1740 = vld [vmem:[%s1717 + $0x84] sm:$0xf]
        %v1741 = vld [vmem:[%s1717 + $0x88] sm:$0xf]
        %v1742 = vld [vmem:[%s1717 + $0x90] sm:$0xf]
        %v1743 = vld [vmem:[%s1717 + $0x94] sm:$0xf]
        %v1744 = vld [vmem:[%s1717 + $0x9c] sm:$0xf]
        %v1745 = vld [vmem:[%s1717 + $0xa0] sm:$0xf]
        %v1746 = vld [vmem:[%s1717 + $0xa8] sm:$0xf]
        %v1747 = vld [vmem:[%s1717 + $0xac] sm:$0xf]
        %v1748 = vld [vmem:[%s1717 + $0xb4] sm:$0xf]
        %v1749 = vld [vmem:[%s1717 + $0xb8] sm:$0xf]
        %s1750 = scalar_lea.vmem %s1, 6
        %v1751 = vld [vmem:[%s1750] sm:$0x3]
        %v1784 = vunpack.c.l.b16 %v1718
        %v1785 = vunpack.c.l.b16 %v1719
        %v1786 = vunpack.c.l.b16 %v1720
        %v1787 = vunpack.c.l.b16 %v1721
        %v1788 = vunpack.c.l.b16 %v1722
        %v1789 = vunpack.c.l.b16 %v1723
        %v1790 = vunpack.c.l.b16 %v1724
        %v1791 = vunpack.c.l.b16 %v1725
        %v1792 = vunpack.c.l.b16 %v1726
        %v1793 = vunpack.c.l.b16 %v1727
        %v1794 = vunpack.c.l.b16 %v1728
        %v1795 = vunpack.c.l.b16 %v1729
        %v1796 = vunpack.c.l.b16 %v1730
        %v1797 = vunpack.c.l.b16 %v1731
        %v1798 = vunpack.c.l.b16 %v1732
        %v1799 = vunpack.c.l.b16 %v1733
        %v1800 = vunpack.c.l.b16 %v1734
        %v1801 = vunpack.c.l.b16 %v1735
        %v1802 = vunpack.c.l.b16 %v1736
        %v1803 = vunpack.c.l.b16 %v1737
        %v1804 = vunpack.c.l.b16 %v1738
        %v1805 = vunpack.c.l.b16 %v1739
        %v1806 = vunpack.c.l.b16 %v1740
        %v1807 = vunpack.c.l.b16 %v1741
        %v1808 = vunpack.c.l.b16 %v1742
        %v1809 = vunpack.c.l.b16 %v1743
        %v1810 = vunpack.c.l.b16 %v1744
        %v1811 = vunpack.c.l.b16 %v1745
        %v1812 = vunpack.c.l.b16 %v1746
        %v1813 = vunpack.c.l.b16 %v1747
        %v1814 = vunpack.c.l.b16 %v1748
        %v1815 = vunpack.c.l.b16 %v1749
        %v1816 = vpack.c.b16 %v1785, %v1784
        %v1817 = vpack.c.b16 %v1787, %v1786
        %v1818 = vpack.c.b16 %v1789, %v1788
        %v1819 = vpack.c.b16 %v1791, %v1790
        %v1820 = vpack.c.b16 %v1793, %v1792
        %v1821 = vpack.c.b16 %v1795, %v1794
        %v1822 = vpack.c.b16 %v1797, %v1796
        %v1823 = vpack.c.b16 %v1799, %v1798
        %v1824 = vpack.c.b16 %v1801, %v1800
        %v1825 = vpack.c.b16 %v1803, %v1802
        %v1826 = vpack.c.b16 %v1805, %v1804
        %v1827 = vpack.c.b16 %v1807, %v1806
        %v1828 = vpack.c.b16 %v1809, %v1808
        %v1829 = vpack.c.b16 %v1811, %v1810
        %v1830 = vpack.c.b16 %v1813, %v1812
        %v1831 = vpack.c.b16 %v1815, %v1814
        %v1833 = vsel %vm325, %v1816, 0
        %v1836 = vsel %vm325, %v1817, 0
        %v1839 = vsel %vm325, %v1818, 0
        %v1842 = vsel %vm325, %v1819, 0
        %v1845 = vsel %vm325, %v1820, 0
        %v1848 = vsel %vm325, %v1821, 0
        %v1851 = vsel %vm325, %v1822, 0
        %v1854 = vsel %vm325, %v1823, 0
        %v1857 = vsel %vm325, %v1824, 0
        %v1860 = vsel %vm325, %v1825, 0
        %v1863 = vsel %vm325, %v1826, 0
        %v1866 = vsel %vm325, %v1827, 0
        %v1869 = vsel %vm325, %v1828, 0
        %v1872 = vsel %vm325, %v1829, 0
        %v1875 = vsel %vm325, %v1830, 0
        %v1878 = vsel %vm325, %v1831, 0
        %v1881 = vsel %vm374, %v1751, 0
        %1883 = vmatpush.bf16.msra.mxu0 0
        %1884 = vmatpush.bf16.msra.mxu0 0
        %1885 = vmatpush.bf16.msra.mxu0 0
        %1886 = vmatpush.bf16.msra.mxu0 0
        %1887 = vmatpush.bf16.msra.mxu0 0
        %1888 = vmatpush.bf16.msra.mxu0 0
        %1889 = vmatpush.bf16.msra.mxu0 0
        %1890 = vmatpush.bf16.msra.mxu0 %v1881
        %1891 = vmatmul.bf16.gmra.mxu0 %v1833
        %v1892 = vpop.f32.mrf.mxu0
        %v1893 = vadd.f32 0.0, %v1892
        %v1894 = vpop.f32.mrf.mxu0
        %v1895 = vadd.f32 0.0, %v1894
        %1896 = vmatmul.bf16.gmra.mxu0 %v1836
        %v1897 = vpop.f32.mrf.mxu0
        %v1898 = vadd.f32 0.0, %v1897
        %v1899 = vpop.f32.mrf.mxu0
        %v1900 = vadd.f32 0.0, %v1899
        %1901 = vmatmul.bf16.gmra.mxu0 %v1839
        %v1902 = vpop.f32.mrf.mxu0
        %v1903 = vadd.f32 0.0, %v1902
        %v1904 = vpop.f32.mrf.mxu0
        %v1905 = vadd.f32 0.0, %v1904
        %1906 = vmatmul.bf16.gmra.mxu0 %v1842
        %v1907 = vpop.f32.mrf.mxu0
        %v1908 = vadd.f32 0.0, %v1907
        %v1909 = vpop.f32.mrf.mxu0
        %v1910 = vadd.f32 0.0, %v1909
        %1911 = vmatmul.bf16.gmra.mxu0 %v1845
        %v1912 = vpop.f32.mrf.mxu0
        %v1913 = vadd.f32 0.0, %v1912
        %v1914 = vpop.f32.mrf.mxu0
        %v1915 = vadd.f32 0.0, %v1914
        %1916 = vmatmul.bf16.gmra.mxu0 %v1848
        %v1917 = vpop.f32.mrf.mxu0
        %v1918 = vadd.f32 0.0, %v1917
        %v1919 = vpop.f32.mrf.mxu0
        %v1920 = vadd.f32 0.0, %v1919
        %1921 = vmatmul.bf16.gmra.mxu0 %v1851
        %v1922 = vpop.f32.mrf.mxu0
        %v1923 = vadd.f32 0.0, %v1922
        %v1924 = vpop.f32.mrf.mxu0
        %v1925 = vadd.f32 0.0, %v1924
        %1926 = vmatmul.bf16.gmra.mxu0 %v1854
        %v1927 = vpop.f32.mrf.mxu0
        %v1928 = vadd.f32 0.0, %v1927
        %v1929 = vpop.f32.mrf.mxu0
        %v1930 = vadd.f32 0.0, %v1929
        %1931 = vmatmul.bf16.gmra.mxu0 %v1857
        %v1932 = vpop.f32.mrf.mxu0
        %v1933 = vadd.f32 0.0, %v1932
        %v1934 = vpop.f32.mrf.mxu0
        %v1935 = vadd.f32 0.0, %v1934
        %1936 = vmatmul.bf16.gmra.mxu0 %v1860
        %v1937 = vpop.f32.mrf.mxu0
        %v1938 = vadd.f32 0.0, %v1937
        %v1939 = vpop.f32.mrf.mxu0
        %v1940 = vadd.f32 0.0, %v1939
        %1941 = vmatmul.bf16.gmra.mxu0 %v1863
        %v1942 = vpop.f32.mrf.mxu0
        %v1943 = vadd.f32 0.0, %v1942
        %v1944 = vpop.f32.mrf.mxu0
        %v1945 = vadd.f32 0.0, %v1944
        %1946 = vmatmul.bf16.gmra.mxu0 %v1866
        %v1947 = vpop.f32.mrf.mxu0
        %v1948 = vadd.f32 0.0, %v1947
        %v1949 = vpop.f32.mrf.mxu0
        %v1950 = vadd.f32 0.0, %v1949
        %1951 = vmatmul.bf16.gmra.mxu0 %v1869
        %v1952 = vpop.f32.mrf.mxu0
        %v1953 = vadd.f32 0.0, %v1952
        %v1954 = vpop.f32.mrf.mxu0
        %v1955 = vadd.f32 0.0, %v1954
        %1956 = vmatmul.bf16.gmra.mxu0 %v1872
        %v1957 = vpop.f32.mrf.mxu0
        %v1958 = vadd.f32 0.0, %v1957
        %v1959 = vpop.f32.mrf.mxu0
        %v1960 = vadd.f32 0.0, %v1959
        %1961 = vmatmul.bf16.gmra.mxu0 %v1875
        %v1962 = vpop.f32.mrf.mxu0
        %v1963 = vadd.f32 0.0, %v1962
        %v1964 = vpop.f32.mrf.mxu0
        %v1965 = vadd.f32 0.0, %v1964
        %1966 = vmatmul.bf16.gmra.mxu0 %v1878
        %v1967 = vpop.f32.mrf.mxu0
        %v1968 = vadd.f32 0.0, %v1967
        %v1969 = vpop.f32.mrf.mxu0
        %v1970 = vadd.f32 0.0, %v1969
        %1971 = vdwg.mxu0
        %v1972 = vld [vmem:[#allocation2] sm:$0xff]
        %v1973 = vld [vmem:[#allocation2 + $0x8] sm:$0xff]
        %v1974 = vld [vmem:[#allocation2 + $0x10] sm:$0xff]
        %v1975 = vld [vmem:[#allocation2 + $0x18] sm:$0xff]
        %v1976 = vld [vmem:[#allocation2 + $0x20] sm:$0xff]
        %v1977 = vld [vmem:[#allocation2 + $0x28] sm:$0xff]
        %v1978 = vld [vmem:[#allocation2 + $0x30] sm:$0xff]
        %v1979 = vld [vmem:[#allocation2 + $0x38] sm:$0xff]
        %v1980 = vld [vmem:[#allocation2 + $0x40] sm:$0xff]
        %v1981 = vld [vmem:[#allocation2 + $0x48] sm:$0xff]
        %v1982 = vld [vmem:[#allocation2 + $0x50] sm:$0xff]
        %v1983 = vld [vmem:[#allocation2 + $0x58] sm:$0xff]
        %v1984 = vld [vmem:[#allocation2 + $0x60] sm:$0xff]
        %v1985 = vld [vmem:[#allocation2 + $0x68] sm:$0xff]
        %v1986 = vld [vmem:[#allocation2 + $0x70] sm:$0xff]
        %v1987 = vld [vmem:[#allocation2 + $0x78] sm:$0xff]
        %v1988 = vld [vmem:[#allocation2 + $0x80] sm:$0xff]
        %v1989 = vld [vmem:[#allocation2 + $0x88] sm:$0xff]
        %v1990 = vld [vmem:[#allocation2 + $0x90] sm:$0xff]
        %v1991 = vld [vmem:[#allocation2 + $0x98] sm:$0xff]
        %v1992 = vld [vmem:[#allocation2 + $0xa0] sm:$0xff]
        %v1993 = vld [vmem:[#allocation2 + $0xa8] sm:$0xff]
        %v1994 = vld [vmem:[#allocation2 + $0xb0] sm:$0xff]
        %v1995 = vld [vmem:[#allocation2 + $0xb8] sm:$0xff]
        %v1996 = vld [vmem:[#allocation2 + $0xc0] sm:$0xff]
        %v1997 = vld [vmem:[#allocation2 + $0xc8] sm:$0xff]
        %v1998 = vld [vmem:[#allocation2 + $0xd0] sm:$0xff]
        %v1999 = vld [vmem:[#allocation2 + $0xd8] sm:$0xff]
        %v2000 = vld [vmem:[#allocation2 + $0xe0] sm:$0xff]
        %v2001 = vld [vmem:[#allocation2 + $0xe8] sm:$0xff]
        %v2002 = vld [vmem:[#allocation2 + $0xf0] sm:$0xff]
        %v2003 = vld [vmem:[#allocation2 + $0xf8] sm:$0xff]
        %v2004 = vadd.f32 %v1972, %v1893
        %v2005 = vadd.f32 %v1973, %v1895
        %v2006 = vadd.f32 %v1974, %v1898
        %v2007 = vadd.f32 %v1975, %v1900
        %v2008 = vadd.f32 %v1976, %v1903
        %v2009 = vadd.f32 %v1977, %v1905
        %v2010 = vadd.f32 %v1978, %v1908
        %v2011 = vadd.f32 %v1979, %v1910
        %v2012 = vadd.f32 %v1980, %v1913
        %v2013 = vadd.f32 %v1981, %v1915
        %v2014 = vadd.f32 %v1982, %v1918
        %v2015 = vadd.f32 %v1983, %v1920
        %v2016 = vadd.f32 %v1984, %v1923
        %v2017 = vadd.f32 %v1985, %v1925
        %v2018 = vadd.f32 %v1986, %v1928
        %v2019 = vadd.f32 %v1987, %v1930
        %v2020 = vadd.f32 %v1988, %v1933
        %v2021 = vadd.f32 %v1989, %v1935
        %v2022 = vadd.f32 %v1990, %v1938
        %v2023 = vadd.f32 %v1991, %v1940
        %v2024 = vadd.f32 %v1992, %v1943
        %v2025 = vadd.f32 %v1993, %v1945
        %v2026 = vadd.f32 %v1994, %v1948
        %v2027 = vadd.f32 %v1995, %v1950
        %v2028 = vadd.f32 %v1996, %v1953
        %v2029 = vadd.f32 %v1997, %v1955
        %v2030 = vadd.f32 %v1998, %v1958
        %v2031 = vadd.f32 %v1999, %v1960
        %v2032 = vadd.f32 %v2000, %v1963
        %v2033 = vadd.f32 %v2001, %v1965
        %v2034 = vadd.f32 %v2002, %v1968
        %v2035 = vadd.f32 %v2003, %v1970
        %2036 = vst [vmem:[#allocation2] sm:$0xff] %v2004
        %2037 = vst [vmem:[#allocation2 + $0x8] sm:$0xff] %v2005
        %2038 = vst [vmem:[#allocation2 + $0x10] sm:$0xff] %v2006
        %2039 = vst [vmem:[#allocation2 + $0x18] sm:$0xff] %v2007
        %2040 = vst [vmem:[#allocation2 + $0x20] sm:$0xff] %v2008
        %2041 = vst [vmem:[#allocation2 + $0x28] sm:$0xff] %v2009
        %2042 = vst [vmem:[#allocation2 + $0x30] sm:$0xff] %v2010
        %2043 = vst [vmem:[#allocation2 + $0x38] sm:$0xff] %v2011
        %2044 = vst [vmem:[#allocation2 + $0x40] sm:$0xff] %v2012
        %2045 = vst [vmem:[#allocation2 + $0x48] sm:$0xff] %v2013
        %2046 = vst [vmem:[#allocation2 + $0x50] sm:$0xff] %v2014
        %2047 = vst [vmem:[#allocation2 + $0x58] sm:$0xff] %v2015
        %2048 = vst [vmem:[#allocation2 + $0x60] sm:$0xff] %v2016
        %2049 = vst [vmem:[#allocation2 + $0x68] sm:$0xff] %v2017
        %2050 = vst [vmem:[#allocation2 + $0x70] sm:$0xff] %v2018
        %2051 = vst [vmem:[#allocation2 + $0x78] sm:$0xff] %v2019
        %2052 = vst [vmem:[#allocation2 + $0x80] sm:$0xff] %v2020
        %2053 = vst [vmem:[#allocation2 + $0x88] sm:$0xff] %v2021
        %2054 = vst [vmem:[#allocation2 + $0x90] sm:$0xff] %v2022
        %2055 = vst [vmem:[#allocation2 + $0x98] sm:$0xff] %v2023
        %2056 = vst [vmem:[#allocation2 + $0xa0] sm:$0xff] %v2024
        %2057 = vst [vmem:[#allocation2 + $0xa8] sm:$0xff] %v2025
        %2058 = vst [vmem:[#allocation2 + $0xb0] sm:$0xff] %v2026
        %2059 = vst [vmem:[#allocation2 + $0xb8] sm:$0xff] %v2027
        %2060 = vst [vmem:[#allocation2 + $0xc0] sm:$0xff] %v2028
        %2061 = vst [vmem:[#allocation2 + $0xc8] sm:$0xff] %v2029
        %2062 = vst [vmem:[#allocation2 + $0xd0] sm:$0xff] %v2030
        %2063 = vst [vmem:[#allocation2 + $0xd8] sm:$0xff] %v2031
        %2064 = vst [vmem:[#allocation2 + $0xe0] sm:$0xff] %v2032
        %2065 = vst [vmem:[#allocation2 + $0xe8] sm:$0xff] %v2033
        %2066 = vst [vmem:[#allocation2 + $0xf0] sm:$0xff] %v2034
        %2067 = vst [vmem:[#allocation2 + $0xf8] sm:$0xff] %v2035
        %v2068 = vld [vmem:[%s1717] sm:$0xf]
        %v2069 = vld [vmem:[%s1717 + $0x4] sm:$0xf]
        %v2070 = vld [vmem:[%s1717 + $0x8] sm:$0x1]
        %v2071 = vld [vmem:[%s1717 + $0xc] sm:$0xf]
        %v2072 = vld [vmem:[%s1717 + $0x10] sm:$0xf]
        %v2073 = vld [vmem:[%s1717 + $0x14] sm:$0x1]
        %v2074 = vld [vmem:[%s1717 + $0x18] sm:$0xf]
        %v2075 = vld [vmem:[%s1717 + $0x1c] sm:$0xf]
        %v2076 = vld [vmem:[%s1717 + $0x20] sm:$0x1]
        %v2077 = vld [vmem:[%s1717 + $0x24] sm:$0xf]
        %v2078 = vld [vmem:[%s1717 + $0x28] sm:$0xf]
        %v2079 = vld [vmem:[%s1717 + $0x2c] sm:$0x1]
        %v2080 = vld [vmem:[%s1717 + $0x30] sm:$0xf]
        %v2081 = vld [vmem:[%s1717 + $0x34] sm:$0xf]
        %v2082 = vld [vmem:[%s1717 + $0x38] sm:$0x1]
        %v2083 = vld [vmem:[%s1717 + $0x3c] sm:$0xf]
        %v2084 = vld [vmem:[%s1717 + $0x40] sm:$0xf]
        %v2085 = vld [vmem:[%s1717 + $0x44] sm:$0x1]
        %v2086 = vld [vmem:[%s1717 + $0x48] sm:$0xf]
        %v2087 = vld [vmem:[%s1717 + $0x4c] sm:$0xf]
        %v2088 = vld [vmem:[%s1717 + $0x50] sm:$0x1]
        %v2089 = vld [vmem:[%s1717 + $0x54] sm:$0xf]
        %v2090 = vld [vmem:[%s1717 + $0x58] sm:$0xf]
        %v2091 = vld [vmem:[%s1717 + $0x5c] sm:$0x1]
        %v2092 = vld [vmem:[%s1717 + $0x60] sm:$0xf]
        %v2093 = vld [vmem:[%s1717 + $0x64] sm:$0xf]
        %v2094 = vld [vmem:[%s1717 + $0x68] sm:$0x1]
        %v2095 = vld [vmem:[%s1717 + $0x6c] sm:$0xf]
        %v2096 = vld [vmem:[%s1717 + $0x70] sm:$0xf]
        %v2097 = vld [vmem:[%s1717 + $0x74] sm:$0x1]
        %v2098 = vld [vmem:[%s1717 + $0x78] sm:$0xf]
        %v2099 = vld [vmem:[%s1717 + $0x7c] sm:$0xf]
        %v2100 = vld [vmem:[%s1717 + $0x80] sm:$0x1]
        %v2101 = vld [vmem:[%s1717 + $0x84] sm:$0xf]
        %v2102 = vld [vmem:[%s1717 + $0x88] sm:$0xf]
        %v2103 = vld [vmem:[%s1717 + $0x8c] sm:$0x1]
        %v2104 = vld [vmem:[%s1717 + $0x90] sm:$0xf]
        %v2105 = vld [vmem:[%s1717 + $0x94] sm:$0xf]
        %v2106 = vld [vmem:[%s1717 + $0x98] sm:$0x1]
        %v2107 = vld [vmem:[%s1717 + $0x9c] sm:$0xf]
        %v2108 = vld [vmem:[%s1717 + $0xa0] sm:$0xf]
        %v2109 = vld [vmem:[%s1717 + $0xa4] sm:$0x1]
        %v2110 = vld [vmem:[%s1717 + $0xa8] sm:$0xf]
        %v2111 = vld [vmem:[%s1717 + $0xac] sm:$0xf]
        %v2112 = vld [vmem:[%s1717 + $0xb0] sm:$0x1]
        %v2113 = vld [vmem:[%s1717 + $0xb4] sm:$0xf]
        %v2114 = vld [vmem:[%s1717 + $0xb8] sm:$0xf]
        %v2115 = vld [vmem:[%s1717 + $0xbc] sm:$0x1]
        %v2117 = vshrl.u32 %v2068, 16
        %v2119 = vrot.slane %v2117, 4
        %v2120 = vshll.u32 %v2068, 16
        %v2122 = vrot.slane %v2120, 5
        %v2123 = vor.u32 %v2119, %v2122
        %v2124 = vrot.slane %v2123, 4
        %v2126 = vshll.u32 %v2069, 16
        %v2128 = vrot.slane %v2126, 5
        %v2129 = vsel %vm549, %v2124, %v2128
        %v2130 = vshrl.u32 %v2069, 16
        %v2132 = vrot.slane %v2130, 4
        %v2133 = vor.u32 %v2132, %v2128
        %v2134 = vrot.slane %v2133, 4
        %v2136 = vshll.u32 %v2070, 16
        %v2138 = vrot.slane %v2136, 5
        %v2139 = vsel %vm549, %v2134, %v2138
        %v2141 = vshrl.u32 %v2071, 16
        %v2143 = vrot.slane %v2141, 4
        %v2144 = vshll.u32 %v2071, 16
        %v2146 = vrot.slane %v2144, 5
        %v2147 = vor.u32 %v2143, %v2146
        %v2148 = vrot.slane %v2147, 4
        %v2150 = vshll.u32 %v2072, 16
        %v2152 = vrot.slane %v2150, 5
        %v2153 = vsel %vm549, %v2148, %v2152
        %v2154 = vshrl.u32 %v2072, 16
        %v2156 = vrot.slane %v2154, 4
        %v2157 = vor.u32 %v2156, %v2152
        %v2158 = vrot.slane %v2157, 4
        %v2160 = vshll.u32 %v2073, 16
        %v2162 = vrot.slane %v2160, 5
        %v2163 = vsel %vm549, %v2158, %v2162
        %v2165 = vshrl.u32 %v2074, 16
        %v2167 = vrot.slane %v2165, 4
        %v2168 = vshll.u32 %v2074, 16
        %v2170 = vrot.slane %v2168, 5
        %v2171 = vor.u32 %v2167, %v2170
        %v2172 = vrot.slane %v2171, 4
        %v2174 = vshll.u32 %v2075, 16
        %v2176 = vrot.slane %v2174, 5
        %v2177 = vsel %vm549, %v2172, %v2176
        %v2178 = vshrl.u32 %v2075, 16
        %v2180 = vrot.slane %v2178, 4
        %v2181 = vor.u32 %v2180, %v2176
        %v2182 = vrot.slane %v2181, 4
        %v2184 = vshll.u32 %v2076, 16
        %v2186 = vrot.slane %v2184, 5
        %v2187 = vsel %vm549, %v2182, %v2186
        %v2189 = vshrl.u32 %v2077, 16
        %v2191 = vrot.slane %v2189, 4
        %v2192 = vshll.u32 %v2077, 16
        %v2194 = vrot.slane %v2192, 5
        %v2195 = vor.u32 %v2191, %v2194
        %v2196 = vrot.slane %v2195, 4
        %v2198 = vshll.u32 %v2078, 16
        %v2200 = vrot.slane %v2198, 5
        %v2201 = vsel %vm549, %v2196, %v2200
        %v2202 = vshrl.u32 %v2078, 16
        %v2204 = vrot.slane %v2202, 4
        %v2205 = vor.u32 %v2204, %v2200
        %v2206 = vrot.slane %v2205, 4
        %v2208 = vshll.u32 %v2079, 16
        %v2210 = vrot.slane %v2208, 5
        %v2211 = vsel %vm549, %v2206, %v2210
        %v2213 = vshrl.u32 %v2080, 16
        %v2215 = vrot.slane %v2213, 4
        %v2216 = vshll.u32 %v2080, 16
        %v2218 = vrot.slane %v2216, 5
        %v2219 = vor.u32 %v2215, %v2218
        %v2220 = vrot.slane %v2219, 4
        %v2222 = vshll.u32 %v2081, 16
        %v2224 = vrot.slane %v2222, 5
        %v2225 = vsel %vm549, %v2220, %v2224
        %v2226 = vshrl.u32 %v2081, 16
        %v2228 = vrot.slane %v2226, 4
        %v2229 = vor.u32 %v2228, %v2224
        %v2230 = vrot.slane %v2229, 4
        %v2232 = vshll.u32 %v2082, 16
        %v2234 = vrot.slane %v2232, 5
        %v2235 = vsel %vm549, %v2230, %v2234
        %v2237 = vshrl.u32 %v2083, 16
        %v2239 = vrot.slane %v2237, 4
        %v2240 = vshll.u32 %v2083, 16
        %v2242 = vrot.slane %v2240, 5
        %v2243 = vor.u32 %v2239, %v2242
        %v2244 = vrot.slane %v2243, 4
        %v2246 = vshll.u32 %v2084, 16
        %v2248 = vrot.slane %v2246, 5
        %v2249 = vsel %vm549, %v2244, %v2248
        %v2250 = vshrl.u32 %v2084, 16
        %v2252 = vrot.slane %v2250, 4
        %v2253 = vor.u32 %v2252, %v2248
        %v2254 = vrot.slane %v2253, 4
        %v2256 = vshll.u32 %v2085, 16
        %v2258 = vrot.slane %v2256, 5
        %v2259 = vsel %vm549, %v2254, %v2258
        %v2261 = vshrl.u32 %v2086, 16
        %v2263 = vrot.slane %v2261, 4
        %v2264 = vshll.u32 %v2086, 16
        %v2266 = vrot.slane %v2264, 5
        %v2267 = vor.u32 %v2263, %v2266
        %v2268 = vrot.slane %v2267, 4
        %v2270 = vshll.u32 %v2087, 16
        %v2272 = vrot.slane %v2270, 5
        %v2273 = vsel %vm549, %v2268, %v2272
        %v2274 = vshrl.u32 %v2087, 16
        %v2276 = vrot.slane %v2274, 4
        %v2277 = vor.u32 %v2276, %v2272
        %v2278 = vrot.slane %v2277, 4
        %v2280 = vshll.u32 %v2088, 16
        %v2282 = vrot.slane %v2280, 5
        %v2283 = vsel %vm549, %v2278, %v2282
        %v2285 = vshrl.u32 %v2089, 16
        %v2287 = vrot.slane %v2285, 4
        %v2288 = vshll.u32 %v2089, 16
        %v2290 = vrot.slane %v2288, 5
        %v2291 = vor.u32 %v2287, %v2290
        %v2292 = vrot.slane %v2291, 4
        %v2294 = vshll.u32 %v2090, 16
        %v2296 = vrot.slane %v2294, 5
        %v2297 = vsel %vm549, %v2292, %v2296
        %v2298 = vshrl.u32 %v2090, 16
        %v2300 = vrot.slane %v2298, 4
        %v2301 = vor.u32 %v2300, %v2296
        %v2302 = vrot.slane %v2301, 4
        %v2304 = vshll.u32 %v2091, 16
        %v2306 = vrot.slane %v2304, 5
        %v2307 = vsel %vm549, %v2302, %v2306
        %v2309 = vshrl.u32 %v2092, 16
        %v2311 = vrot.slane %v2309, 4
        %v2312 = vshll.u32 %v2092, 16
        %v2314 = vrot.slane %v2312, 5
        %v2315 = vor.u32 %v2311, %v2314
        %v2316 = vrot.slane %v2315, 4
        %v2318 = vshll.u32 %v2093, 16
        %v2320 = vrot.slane %v2318, 5
        %v2321 = vsel %vm549, %v2316, %v2320
        %v2322 = vshrl.u32 %v2093, 16
        %v2324 = vrot.slane %v2322, 4
        %v2325 = vor.u32 %v2324, %v2320
        %v2326 = vrot.slane %v2325, 4
        %v2328 = vshll.u32 %v2094, 16
        %v2330 = vrot.slane %v2328, 5
        %v2331 = vsel %vm549, %v2326, %v2330
        %v2333 = vshrl.u32 %v2095, 16
        %v2335 = vrot.slane %v2333, 4
        %v2336 = vshll.u32 %v2095, 16
        %v2338 = vrot.slane %v2336, 5
        %v2339 = vor.u32 %v2335, %v2338
        %v2340 = vrot.slane %v2339, 4
        %v2342 = vshll.u32 %v2096, 16
        %v2344 = vrot.slane %v2342, 5
        %v2345 = vsel %vm549, %v2340, %v2344
        %v2346 = vshrl.u32 %v2096, 16
        %v2348 = vrot.slane %v2346, 4
        %v2349 = vor.u32 %v2348, %v2344
        %v2350 = vrot.slane %v2349, 4
        %v2352 = vshll.u32 %v2097, 16
        %v2354 = vrot.slane %v2352, 5
        %v2355 = vsel %vm549, %v2350, %v2354
        %v2357 = vshrl.u32 %v2098, 16
        %v2359 = vrot.slane %v2357, 4
        %v2360 = vshll.u32 %v2098, 16
        %v2362 = vrot.slane %v2360, 5
        %v2363 = vor.u32 %v2359, %v2362
        %v2364 = vrot.slane %v2363, 4
        %v2366 = vshll.u32 %v2099, 16
        %v2368 = vrot.slane %v2366, 5
        %v2369 = vsel %vm549, %v2364, %v2368
        %v2370 = vshrl.u32 %v2099, 16
        %v2372 = vrot.slane %v2370, 4
        %v2373 = vor.u32 %v2372, %v2368
        %v2374 = vrot.slane %v2373, 4
        %v2376 = vshll.u32 %v2100, 16
        %v2378 = vrot.slane %v2376, 5
        %v2379 = vsel %vm549, %v2374, %v2378
        %v2381 = vshrl.u32 %v2101, 16
        %v2383 = vrot.slane %v2381, 4
        %v2384 = vshll.u32 %v2101, 16
        %v2386 = vrot.slane %v2384, 5
        %v2387 = vor.u32 %v2383, %v2386
        %v2388 = vrot.slane %v2387, 4
        %v2390 = vshll.u32 %v2102, 16
        %v2392 = vrot.slane %v2390, 5
        %v2393 = vsel %vm549, %v2388, %v2392
        %v2394 = vshrl.u32 %v2102, 16
        %v2396 = vrot.slane %v2394, 4
        %v2397 = vor.u32 %v2396, %v2392
        %v2398 = vrot.slane %v2397, 4
        %v2400 = vshll.u32 %v2103, 16
        %v2402 = vrot.slane %v2400, 5
        %v2403 = vsel %vm549, %v2398, %v2402
        %v2405 = vshrl.u32 %v2104, 16
        %v2407 = vrot.slane %v2405, 4
        %v2408 = vshll.u32 %v2104, 16
        %v2410 = vrot.slane %v2408, 5
        %v2411 = vor.u32 %v2407, %v2410
        %v2412 = vrot.slane %v2411, 4
        %v2414 = vshll.u32 %v2105, 16
        %v2416 = vrot.slane %v2414, 5
        %v2417 = vsel %vm549, %v2412, %v2416
        %v2418 = vshrl.u32 %v2105, 16
        %v2420 = vrot.slane %v2418, 4
        %v2421 = vor.u32 %v2420, %v2416
        %v2422 = vrot.slane %v2421, 4
        %v2424 = vshll.u32 %v2106, 16
        %v2426 = vrot.slane %v2424, 5
        %v2427 = vsel %vm549, %v2422, %v2426
        %v2429 = vshrl.u32 %v2107, 16
        %v2431 = vrot.slane %v2429, 4
        %v2432 = vshll.u32 %v2107, 16
        %v2434 = vrot.slane %v2432, 5
        %v2435 = vor.u32 %v2431, %v2434
        %v2436 = vrot.slane %v2435, 4
        %v2438 = vshll.u32 %v2108, 16
        %v2440 = vrot.slane %v2438, 5
        %v2441 = vsel %vm549, %v2436, %v2440
        %v2442 = vshrl.u32 %v2108, 16
        %v2444 = vrot.slane %v2442, 4
        %v2445 = vor.u32 %v2444, %v2440
        %v2446 = vrot.slane %v2445, 4
        %v2448 = vshll.u32 %v2109, 16
        %v2450 = vrot.slane %v2448, 5
        %v2451 = vsel %vm549, %v2446, %v2450
        %v2453 = vshrl.u32 %v2110, 16
        %v2455 = vrot.slane %v2453, 4
        %v2456 = vshll.u32 %v2110, 16
        %v2458 = vrot.slane %v2456, 5
        %v2459 = vor.u32 %v2455, %v2458
        %v2460 = vrot.slane %v2459, 4
        %v2462 = vshll.u32 %v2111, 16
        %v2464 = vrot.slane %v2462, 5
        %v2465 = vsel %vm549, %v2460, %v2464
        %v2466 = vshrl.u32 %v2111, 16
        %v2468 = vrot.slane %v2466, 4
        %v2469 = vor.u32 %v2468, %v2464
        %v2470 = vrot.slane %v2469, 4
        %v2472 = vshll.u32 %v2112, 16
        %v2474 = vrot.slane %v2472, 5
        %v2475 = vsel %vm549, %v2470, %v2474
        %v2477 = vshrl.u32 %v2113, 16
        %v2479 = vrot.slane %v2477, 4
        %v2480 = vshll.u32 %v2113, 16
        %v2482 = vrot.slane %v2480, 5
        %v2483 = vor.u32 %v2479, %v2482
        %v2484 = vrot.slane %v2483, 4
        %v2486 = vshll.u32 %v2114, 16
        %v2488 = vrot.slane %v2486, 5
        %v2489 = vsel %vm549, %v2484, %v2488
        %v2490 = vshrl.u32 %v2114, 16
        %v2492 = vrot.slane %v2490, 4
        %v2493 = vor.u32 %v2492, %v2488
        %v2494 = vrot.slane %v2493, 4
        %v2496 = vshll.u32 %v2115, 16
        %v2498 = vrot.slane %v2496, 5
        %v2499 = vsel %vm549, %v2494, %v2498
        %s2500 = scalar_lea.vmem %s1, 8
        %v2501 = vld [vmem:[%s2500] sm:$0x3]
        %v2502 = vunpack.c.l.b16 %v2129
        %v2503 = vunpack.c.l.b16 %v2139
        %v2504 = vunpack.c.l.b16 %v2153
        %v2505 = vunpack.c.l.b16 %v2163
        %v2506 = vunpack.c.l.b16 %v2177
        %v2507 = vunpack.c.l.b16 %v2187
        %v2508 = vunpack.c.l.b16 %v2201
        %v2509 = vunpack.c.l.b16 %v2211
        %v2510 = vunpack.c.l.b16 %v2225
        %v2511 = vunpack.c.l.b16 %v2235
        %v2512 = vunpack.c.l.b16 %v2249
        %v2513 = vunpack.c.l.b16 %v2259
        %v2514 = vunpack.c.l.b16 %v2273
        %v2515 = vunpack.c.l.b16 %v2283
        %v2516 = vunpack.c.l.b16 %v2297
        %v2517 = vunpack.c.l.b16 %v2307
        %v2518 = vunpack.c.l.b16 %v2321
        %v2519 = vunpack.c.l.b16 %v2331
        %v2520 = vunpack.c.l.b16 %v2345
        %v2521 = vunpack.c.l.b16 %v2355
        %v2522 = vunpack.c.l.b16 %v2369
        %v2523 = vunpack.c.l.b16 %v2379
        %v2524 = vunpack.c.l.b16 %v2393
        %v2525 = vunpack.c.l.b16 %v2403
        %v2526 = vunpack.c.l.b16 %v2417
        %v2527 = vunpack.c.l.b16 %v2427
        %v2528 = vunpack.c.l.b16 %v2441
        %v2529 = vunpack.c.l.b16 %v2451
        %v2530 = vunpack.c.l.b16 %v2465
        %v2531 = vunpack.c.l.b16 %v2475
        %v2532 = vunpack.c.l.b16 %v2489
        %v2533 = vunpack.c.l.b16 %v2499
        %v2534 = vpack.c.b16 %v2503, %v2502
        %v2535 = vpack.c.b16 %v2505, %v2504
        %v2536 = vpack.c.b16 %v2507, %v2506
        %v2537 = vpack.c.b16 %v2509, %v2508
        %v2538 = vpack.c.b16 %v2511, %v2510
        %v2539 = vpack.c.b16 %v2513, %v2512
        %v2540 = vpack.c.b16 %v2515, %v2514
        %v2541 = vpack.c.b16 %v2517, %v2516
        %v2542 = vpack.c.b16 %v2519, %v2518
        %v2543 = vpack.c.b16 %v2521, %v2520
        %v2544 = vpack.c.b16 %v2523, %v2522
        %v2545 = vpack.c.b16 %v2525, %v2524
        %v2546 = vpack.c.b16 %v2527, %v2526
        %v2547 = vpack.c.b16 %v2529, %v2528
        %v2548 = vpack.c.b16 %v2531, %v2530
        %v2549 = vpack.c.b16 %v2533, %v2532
        %v2551 = vsel %vm325, %v2534, 0
        %v2554 = vsel %vm325, %v2535, 0
        %v2557 = vsel %vm325, %v2536, 0
        %v2560 = vsel %vm325, %v2537, 0
        %v2563 = vsel %vm325, %v2538, 0
        %v2566 = vsel %vm325, %v2539, 0
        %v2569 = vsel %vm325, %v2540, 0
        %v2572 = vsel %vm325, %v2541, 0
        %v2575 = vsel %vm325, %v2542, 0
        %v2578 = vsel %vm325, %v2543, 0
        %v2581 = vsel %vm325, %v2544, 0
        %v2584 = vsel %vm325, %v2545, 0
        %v2587 = vsel %vm325, %v2546, 0
        %v2590 = vsel %vm325, %v2547, 0
        %v2593 = vsel %vm325, %v2548, 0
        %v2596 = vsel %vm325, %v2549, 0
        %v2599 = vsel %vm374, %v2501, 0
        %2601 = vmatpush.bf16.msra.mxu0 0
        %2602 = vmatpush.bf16.msra.mxu0 0
        %2603 = vmatpush.bf16.msra.mxu0 0
        %2604 = vmatpush.bf16.msra.mxu0 0
        %2605 = vmatpush.bf16.msra.mxu0 0
        %2606 = vmatpush.bf16.msra.mxu0 0
        %2607 = vmatpush.bf16.msra.mxu0 0
        %2608 = vmatpush.bf16.msra.mxu0 %v2599
        %2609 = vmatmul.bf16.gmra.mxu0 %v2551
        %v2610 = vpop.f32.mrf.mxu0
        %v2611 = vadd.f32 0.0, %v2610
        %v2612 = vpop.f32.mrf.mxu0
        %v2613 = vadd.f32 0.0, %v2612
        %2614 = vmatmul.bf16.gmra.mxu0 %v2554
        %v2615 = vpop.f32.mrf.mxu0
        %v2616 = vadd.f32 0.0, %v2615
        %v2617 = vpop.f32.mrf.mxu0
        %v2618 = vadd.f32 0.0, %v2617
        %2619 = vmatmul.bf16.gmra.mxu0 %v2557
        %v2620 = vpop.f32.mrf.mxu0
        %v2621 = vadd.f32 0.0, %v2620
        %v2622 = vpop.f32.mrf.mxu0
        %v2623 = vadd.f32 0.0, %v2622
        %2624 = vmatmul.bf16.gmra.mxu0 %v2560
        %v2625 = vpop.f32.mrf.mxu0
        %v2626 = vadd.f32 0.0, %v2625
        %v2627 = vpop.f32.mrf.mxu0
        %v2628 = vadd.f32 0.0, %v2627
        %2629 = vmatmul.bf16.gmra.mxu0 %v2563
        %v2630 = vpop.f32.mrf.mxu0
        %v2631 = vadd.f32 0.0, %v2630
        %v2632 = vpop.f32.mrf.mxu0
        %v2633 = vadd.f32 0.0, %v2632
        %2634 = vmatmul.bf16.gmra.mxu0 %v2566
        %v2635 = vpop.f32.mrf.mxu0
        %v2636 = vadd.f32 0.0, %v2635
        %v2637 = vpop.f32.mrf.mxu0
        %v2638 = vadd.f32 0.0, %v2637
        %2639 = vmatmul.bf16.gmra.mxu0 %v2569
        %v2640 = vpop.f32.mrf.mxu0
        %v2641 = vadd.f32 0.0, %v2640
        %v2642 = vpop.f32.mrf.mxu0
        %v2643 = vadd.f32 0.0, %v2642
        %2644 = vmatmul.bf16.gmra.mxu0 %v2572
        %v2645 = vpop.f32.mrf.mxu0
        %v2646 = vadd.f32 0.0, %v2645
        %v2647 = vpop.f32.mrf.mxu0
        %v2648 = vadd.f32 0.0, %v2647
        %2649 = vmatmul.bf16.gmra.mxu0 %v2575
        %v2650 = vpop.f32.mrf.mxu0
        %v2651 = vadd.f32 0.0, %v2650
        %v2652 = vpop.f32.mrf.mxu0
        %v2653 = vadd.f32 0.0, %v2652
        %2654 = vmatmul.bf16.gmra.mxu0 %v2578
        %v2655 = vpop.f32.mrf.mxu0
        %v2656 = vadd.f32 0.0, %v2655
        %v2657 = vpop.f32.mrf.mxu0
        %v2658 = vadd.f32 0.0, %v2657
        %2659 = vmatmul.bf16.gmra.mxu0 %v2581
        %v2660 = vpop.f32.mrf.mxu0
        %v2661 = vadd.f32 0.0, %v2660
        %v2662 = vpop.f32.mrf.mxu0
        %v2663 = vadd.f32 0.0, %v2662
        %2664 = vmatmul.bf16.gmra.mxu0 %v2584
        %v2665 = vpop.f32.mrf.mxu0
        %v2666 = vadd.f32 0.0, %v2665
        %v2667 = vpop.f32.mrf.mxu0
        %v2668 = vadd.f32 0.0, %v2667
        %2669 = vmatmul.bf16.gmra.mxu0 %v2587
        %v2670 = vpop.f32.mrf.mxu0
        %v2671 = vadd.f32 0.0, %v2670
        %v2672 = vpop.f32.mrf.mxu0
        %v2673 = vadd.f32 0.0, %v2672
        %2674 = vmatmul.bf16.gmra.mxu0 %v2590
        %v2675 = vpop.f32.mrf.mxu0
        %v2676 = vadd.f32 0.0, %v2675
        %v2677 = vpop.f32.mrf.mxu0
        %v2678 = vadd.f32 0.0, %v2677
        %2679 = vmatmul.bf16.gmra.mxu0 %v2593
        %v2680 = vpop.f32.mrf.mxu0
        %v2681 = vadd.f32 0.0, %v2680
        %v2682 = vpop.f32.mrf.mxu0
        %v2683 = vadd.f32 0.0, %v2682
        %2684 = vmatmul.bf16.gmra.mxu0 %v2596
        %v2685 = vpop.f32.mrf.mxu0
        %v2686 = vadd.f32 0.0, %v2685
        %v2687 = vpop.f32.mrf.mxu0
        %v2688 = vadd.f32 0.0, %v2687
        %2689 = vdwg.mxu0
        %v2690 = vld [vmem:[#allocation2] sm:$0xff]
        %v2691 = vld [vmem:[#allocation2 + $0x8] sm:$0xff]
        %v2692 = vld [vmem:[#allocation2 + $0x10] sm:$0xff]
        %v2693 = vld [vmem:[#allocation2 + $0x18] sm:$0xff]
        %v2694 = vld [vmem:[#allocation2 + $0x20] sm:$0xff]
        %v2695 = vld [vmem:[#allocation2 + $0x28] sm:$0xff]
        %v2696 = vld [vmem:[#allocation2 + $0x30] sm:$0xff]
        %v2697 = vld [vmem:[#allocation2 + $0x38] sm:$0xff]
        %v2698 = vld [vmem:[#allocation2 + $0x40] sm:$0xff]
        %v2699 = vld [vmem:[#allocation2 + $0x48] sm:$0xff]
        %v2700 = vld [vmem:[#allocation2 + $0x50] sm:$0xff]
        %v2701 = vld [vmem:[#allocation2 + $0x58] sm:$0xff]
        %v2702 = vld [vmem:[#allocation2 + $0x60] sm:$0xff]
        %v2703 = vld [vmem:[#allocation2 + $0x68] sm:$0xff]
        %v2704 = vld [vmem:[#allocation2 + $0x70] sm:$0xff]
        %v2705 = vld [vmem:[#allocation2 + $0x78] sm:$0xff]
        %v2706 = vld [vmem:[#allocation2 + $0x80] sm:$0xff]
        %v2707 = vld [vmem:[#allocation2 + $0x88] sm:$0xff]
        %v2708 = vld [vmem:[#allocation2 + $0x90] sm:$0xff]
        %v2709 = vld [vmem:[#allocation2 + $0x98] sm:$0xff]
        %v2710 = vld [vmem:[#allocation2 + $0xa0] sm:$0xff]
        %v2711 = vld [vmem:[#allocation2 + $0xa8] sm:$0xff]
        %v2712 = vld [vmem:[#allocation2 + $0xb0] sm:$0xff]
        %v2713 = vld [vmem:[#allocation2 + $0xb8] sm:$0xff]
        %v2714 = vld [vmem:[#allocation2 + $0xc0] sm:$0xff]
        %v2715 = vld [vmem:[#allocation2 + $0xc8] sm:$0xff]
        %v2716 = vld [vmem:[#allocation2 + $0xd0] sm:$0xff]
        %v2717 = vld [vmem:[#allocation2 + $0xd8] sm:$0xff]
        %v2718 = vld [vmem:[#allocation2 + $0xe0] sm:$0xff]
        %v2719 = vld [vmem:[#allocation2 + $0xe8] sm:$0xff]
        %v2720 = vld [vmem:[#allocation2 + $0xf0] sm:$0xff]
        %v2721 = vld [vmem:[#allocation2 + $0xf8] sm:$0xff]
        %v2722 = vadd.f32 %v2690, %v2611
        %v2723 = vadd.f32 %v2691, %v2613
        %v2724 = vadd.f32 %v2692, %v2616
        %v2725 = vadd.f32 %v2693, %v2618
        %v2726 = vadd.f32 %v2694, %v2621
        %v2727 = vadd.f32 %v2695, %v2623
        %v2728 = vadd.f32 %v2696, %v2626
        %v2729 = vadd.f32 %v2697, %v2628
        %v2730 = vadd.f32 %v2698, %v2631
        %v2731 = vadd.f32 %v2699, %v2633
        %v2732 = vadd.f32 %v2700, %v2636
        %v2733 = vadd.f32 %v2701, %v2638
        %v2734 = vadd.f32 %v2702, %v2641
        %v2735 = vadd.f32 %v2703, %v2643
        %v2736 = vadd.f32 %v2704, %v2646
        %v2737 = vadd.f32 %v2705, %v2648
        %v2738 = vadd.f32 %v2706, %v2651
        %v2739 = vadd.f32 %v2707, %v2653
        %v2740 = vadd.f32 %v2708, %v2656
        %v2741 = vadd.f32 %v2709, %v2658
        %v2742 = vadd.f32 %v2710, %v2661
        %v2743 = vadd.f32 %v2711, %v2663
        %v2744 = vadd.f32 %v2712, %v2666
        %v2745 = vadd.f32 %v2713, %v2668
        %v2746 = vadd.f32 %v2714, %v2671
        %v2747 = vadd.f32 %v2715, %v2673
        %v2748 = vadd.f32 %v2716, %v2676
        %v2749 = vadd.f32 %v2717, %v2678
        %v2750 = vadd.f32 %v2718, %v2681
        %v2751 = vadd.f32 %v2719, %v2683
        %v2752 = vadd.f32 %v2720, %v2686
        %v2753 = vadd.f32 %v2721, %v2688
        %2754 = vst [vmem:[#allocation2] sm:$0xff] %v2722
        %2755 = vst [vmem:[#allocation2 + $0x8] sm:$0xff] %v2723
        %2756 = vst [vmem:[#allocation2 + $0x10] sm:$0xff] %v2724
        %2757 = vst [vmem:[#allocation2 + $0x18] sm:$0xff] %v2725
        %2758 = vst [vmem:[#allocation2 + $0x20] sm:$0xff] %v2726
        %2759 = vst [vmem:[#allocation2 + $0x28] sm:$0xff] %v2727
        %2760 = vst [vmem:[#allocation2 + $0x30] sm:$0xff] %v2728
        %2761 = vst [vmem:[#allocation2 + $0x38] sm:$0xff] %v2729
        %2762 = vst [vmem:[#allocation2 + $0x40] sm:$0xff] %v2730
        %2763 = vst [vmem:[#allocation2 + $0x48] sm:$0xff] %v2731
        %2764 = vst [vmem:[#allocation2 + $0x50] sm:$0xff] %v2732
        %2765 = vst [vmem:[#allocation2 + $0x58] sm:$0xff] %v2733
        %2766 = vst [vmem:[#allocation2 + $0x60] sm:$0xff] %v2734
        %2767 = vst [vmem:[#allocation2 + $0x68] sm:$0xff] %v2735
        %2768 = vst [vmem:[#allocation2 + $0x70] sm:$0xff] %v2736
        %2769 = vst [vmem:[#allocation2 + $0x78] sm:$0xff] %v2737
        %2770 = vst [vmem:[#allocation2 + $0x80] sm:$0xff] %v2738
        %2771 = vst [vmem:[#allocation2 + $0x88] sm:$0xff] %v2739
        %2772 = vst [vmem:[#allocation2 + $0x90] sm:$0xff] %v2740
        %2773 = vst [vmem:[#allocation2 + $0x98] sm:$0xff] %v2741
        %2774 = vst [vmem:[#allocation2 + $0xa0] sm:$0xff] %v2742
        %2775 = vst [vmem:[#allocation2 + $0xa8] sm:$0xff] %v2743
        %2776 = vst [vmem:[#allocation2 + $0xb0] sm:$0xff] %v2744
        %2777 = vst [vmem:[#allocation2 + $0xb8] sm:$0xff] %v2745
        %2778 = vst [vmem:[#allocation2 + $0xc0] sm:$0xff] %v2746
        %2779 = vst [vmem:[#allocation2 + $0xc8] sm:$0xff] %v2747
        %2780 = vst [vmem:[#allocation2 + $0xd0] sm:$0xff] %v2748
        %2781 = vst [vmem:[#allocation2 + $0xd8] sm:$0xff] %v2749
        %2782 = vst [vmem:[#allocation2 + $0xe0] sm:$0xff] %v2750
        %2783 = vst [vmem:[#allocation2 + $0xe8] sm:$0xff] %v2751
        %2784 = vst [vmem:[#allocation2 + $0xf0] sm:$0xff] %v2752
        %2785 = vst [vmem:[#allocation2 + $0xf8] sm:$0xff] %v2753
        %v2786 = vld [vmem:[%s1717] sm:$0xe]
        %v2787 = vld [vmem:[%s1717 + $0x4] sm:$0xf]
        %v2788 = vld [vmem:[%s1717 + $0x8] sm:$0x1]
        %v2789 = vld [vmem:[%s1717 + $0xc] sm:$0xe]
        %v2790 = vld [vmem:[%s1717 + $0x10] sm:$0xf]
        %v2791 = vld [vmem:[%s1717 + $0x14] sm:$0x1]
        %v2792 = vld [vmem:[%s1717 + $0x18] sm:$0xe]
        %v2793 = vld [vmem:[%s1717 + $0x1c] sm:$0xf]
        %v2794 = vld [vmem:[%s1717 + $0x20] sm:$0x1]
        %v2795 = vld [vmem:[%s1717 + $0x24] sm:$0xe]
        %v2796 = vld [vmem:[%s1717 + $0x28] sm:$0xf]
        %v2797 = vld [vmem:[%s1717 + $0x2c] sm:$0x1]
        %v2798 = vld [vmem:[%s1717 + $0x30] sm:$0xe]
        %v2799 = vld [vmem:[%s1717 + $0x34] sm:$0xf]
        %v2800 = vld [vmem:[%s1717 + $0x38] sm:$0x1]
        %v2801 = vld [vmem:[%s1717 + $0x3c] sm:$0xe]
        %v2802 = vld [vmem:[%s1717 + $0x40] sm:$0xf]
        %v2803 = vld [vmem:[%s1717 + $0x44] sm:$0x1]
        %v2804 = vld [vmem:[%s1717 + $0x48] sm:$0xe]
        %v2805 = vld [vmem:[%s1717 + $0x4c] sm:$0xf]
        %v2806 = vld [vmem:[%s1717 + $0x50] sm:$0x1]
        %v2807 = vld [vmem:[%s1717 + $0x54] sm:$0xe]
        %v2808 = vld [vmem:[%s1717 + $0x58] sm:$0xf]
        %v2809 = vld [vmem:[%s1717 + $0x5c] sm:$0x1]
        %v2810 = vld [vmem:[%s1717 + $0x60] sm:$0xe]
        %v2811 = vld [vmem:[%s1717 + $0x64] sm:$0xf]
        %v2812 = vld [vmem:[%s1717 + $0x68] sm:$0x1]
        %v2813 = vld [vmem:[%s1717 + $0x6c] sm:$0xe]
        %v2814 = vld [vmem:[%s1717 + $0x70] sm:$0xf]
        %v2815 = vld [vmem:[%s1717 + $0x74] sm:$0x1]
        %v2816 = vld [vmem:[%s1717 + $0x78] sm:$0xe]
        %v2817 = vld [vmem:[%s1717 + $0x7c] sm:$0xf]
        %v2818 = vld [vmem:[%s1717 + $0x80] sm:$0x1]
        %v2819 = vld [vmem:[%s1717 + $0x84] sm:$0xe]
        %v2820 = vld [vmem:[%s1717 + $0x88] sm:$0xf]
        %v2821 = vld [vmem:[%s1717 + $0x8c] sm:$0x1]
        %v2822 = vld [vmem:[%s1717 + $0x90] sm:$0xe]
        %v2823 = vld [vmem:[%s1717 + $0x94] sm:$0xf]
        %v2824 = vld [vmem:[%s1717 + $0x98] sm:$0x1]
        %v2825 = vld [vmem:[%s1717 + $0x9c] sm:$0xe]
        %v2826 = vld [vmem:[%s1717 + $0xa0] sm:$0xf]
        %v2827 = vld [vmem:[%s1717 + $0xa4] sm:$0x1]
        %v2828 = vld [vmem:[%s1717 + $0xa8] sm:$0xe]
        %v2829 = vld [vmem:[%s1717 + $0xac] sm:$0xf]
        %v2830 = vld [vmem:[%s1717 + $0xb0] sm:$0x1]
        %v2831 = vld [vmem:[%s1717 + $0xb4] sm:$0xe]
        %v2832 = vld [vmem:[%s1717 + $0xb8] sm:$0xf]
        %v2833 = vld [vmem:[%s1717 + $0xbc] sm:$0x1]
        %v2882 = vrot.slane %v2786, 5
        %v2883 = vrot.slane %v2882, 4
        %v2884 = vrot.slane %v2787, 5
        %v2885 = vsel %vm1318, %v2883, %v2884
        %v2886 = vrot.slane %v2884, 4
        %v2887 = vrot.slane %v2788, 5
        %v2888 = vsel %vm1318, %v2886, %v2887
        %v2889 = vrot.slane %v2789, 5
        %v2890 = vrot.slane %v2889, 4
        %v2891 = vrot.slane %v2790, 5
        %v2892 = vsel %vm1318, %v2890, %v2891
        %v2893 = vrot.slane %v2891, 4
        %v2894 = vrot.slane %v2791, 5
        %v2895 = vsel %vm1318, %v2893, %v2894
        %v2896 = vrot.slane %v2792, 5
        %v2897 = vrot.slane %v2896, 4
        %v2898 = vrot.slane %v2793, 5
        %v2899 = vsel %vm1318, %v2897, %v2898
        %v2900 = vrot.slane %v2898, 4
        %v2901 = vrot.slane %v2794, 5
        %v2902 = vsel %vm1318, %v2900, %v2901
        %v2903 = vrot.slane %v2795, 5
        %v2904 = vrot.slane %v2903, 4
        %v2905 = vrot.slane %v2796, 5
        %v2906 = vsel %vm1318, %v2904, %v2905
        %v2907 = vrot.slane %v2905, 4
        %v2908 = vrot.slane %v2797, 5
        %v2909 = vsel %vm1318, %v2907, %v2908
        %v2910 = vrot.slane %v2798, 5
        %v2911 = vrot.slane %v2910, 4
        %v2912 = vrot.slane %v2799, 5
        %v2913 = vsel %vm1318, %v2911, %v2912
        %v2914 = vrot.slane %v2912, 4
        %v2915 = vrot.slane %v2800, 5
        %v2916 = vsel %vm1318, %v2914, %v2915
        %v2917 = vrot.slane %v2801, 5
        %v2918 = vrot.slane %v2917, 4
        %v2919 = vrot.slane %v2802, 5
        %v2920 = vsel %vm1318, %v2918, %v2919
        %v2921 = vrot.slane %v2919, 4
        %v2922 = vrot.slane %v2803, 5
        %v2923 = vsel %vm1318, %v2921, %v2922
        %v2924 = vrot.slane %v2804, 5
        %v2925 = vrot.slane %v2924, 4
        %v2926 = vrot.slane %v2805, 5
        %v2927 = vsel %vm1318, %v2925, %v2926
        %v2928 = vrot.slane %v2926, 4
        %v2929 = vrot.slane %v2806, 5
        %v2930 = vsel %vm1318, %v2928, %v2929
        %v2931 = vrot.slane %v2807, 5
        %v2932 = vrot.slane %v2931, 4
        %v2933 = vrot.slane %v2808, 5
        %v2934 = vsel %vm1318, %v2932, %v2933
        %v2935 = vrot.slane %v2933, 4
        %v2936 = vrot.slane %v2809, 5
        %v2937 = vsel %vm1318, %v2935, %v2936
        %v2938 = vrot.slane %v2810, 5
        %v2939 = vrot.slane %v2938, 4
        %v2940 = vrot.slane %v2811, 5
        %v2941 = vsel %vm1318, %v2939, %v2940
        %v2942 = vrot.slane %v2940, 4
        %v2943 = vrot.slane %v2812, 5
        %v2944 = vsel %vm1318, %v2942, %v2943
        %v2945 = vrot.slane %v2813, 5
        %v2946 = vrot.slane %v2945, 4
        %v2947 = vrot.slane %v2814, 5
        %v2948 = vsel %vm1318, %v2946, %v2947
        %v2949 = vrot.slane %v2947, 4
        %v2950 = vrot.slane %v2815, 5
        %v2951 = vsel %vm1318, %v2949, %v2950
        %v2952 = vrot.slane %v2816, 5
        %v2953 = vrot.slane %v2952, 4
        %v2954 = vrot.slane %v2817, 5
        %v2955 = vsel %vm1318, %v2953, %v2954
        %v2956 = vrot.slane %v2954, 4
        %v2957 = vrot.slane %v2818, 5
        %v2958 = vsel %vm1318, %v2956, %v2957
        %v2959 = vrot.slane %v2819, 5
        %v2960 = vrot.slane %v2959, 4
        %v2961 = vrot.slane %v2820, 5
        %v2962 = vsel %vm1318, %v2960, %v2961
        %v2963 = vrot.slane %v2961, 4
        %v2964 = vrot.slane %v2821, 5
        %v2965 = vsel %vm1318, %v2963, %v2964
        %v2966 = vrot.slane %v2822, 5
        %v2967 = vrot.slane %v2966, 4
        %v2968 = vrot.slane %v2823, 5
        %v2969 = vsel %vm1318, %v2967, %v2968
        %v2970 = vrot.slane %v2968, 4
        %v2971 = vrot.slane %v2824, 5
        %v2972 = vsel %vm1318, %v2970, %v2971
        %v2973 = vrot.slane %v2825, 5
        %v2974 = vrot.slane %v2973, 4
        %v2975 = vrot.slane %v2826, 5
        %v2976 = vsel %vm1318, %v2974, %v2975
        %v2977 = vrot.slane %v2975, 4
        %v2978 = vrot.slane %v2827, 5
        %v2979 = vsel %vm1318, %v2977, %v2978
        %v2980 = vrot.slane %v2828, 5
        %v2981 = vrot.slane %v2980, 4
        %v2982 = vrot.slane %v2829, 5
        %v2983 = vsel %vm1318, %v2981, %v2982
        %v2984 = vrot.slane %v2982, 4
        %v2985 = vrot.slane %v2830, 5
        %v2986 = vsel %vm1318, %v2984, %v2985
        %v2987 = vrot.slane %v2831, 5
        %v2988 = vrot.slane %v2987, 4
        %v2989 = vrot.slane %v2832, 5
        %v2990 = vsel %vm1318, %v2988, %v2989
        %v2991 = vrot.slane %v2989, 4
        %v2992 = vrot.slane %v2833, 5
        %v2993 = vsel %vm1318, %v2991, %v2992
        %s2994 = scalar_lea.vmem %s1, 10
        %v2995 = vld [vmem:[%s2994] sm:$0x3]
        %v2996 = vunpack.c.l.b16 %v2885
        %v2997 = vunpack.c.l.b16 %v2888
        %v2998 = vunpack.c.l.b16 %v2892
        %v2999 = vunpack.c.l.b16 %v2895
        %v3000 = vunpack.c.l.b16 %v2899
        %v3001 = vunpack.c.l.b16 %v2902
        %v3002 = vunpack.c.l.b16 %v2906
        %v3003 = vunpack.c.l.b16 %v2909
        %v3004 = vunpack.c.l.b16 %v2913
        %v3005 = vunpack.c.l.b16 %v2916
        %v3006 = vunpack.c.l.b16 %v2920
        %v3007 = vunpack.c.l.b16 %v2923
        %v3008 = vunpack.c.l.b16 %v2927
        %v3009 = vunpack.c.l.b16 %v2930
        %v3010 = vunpack.c.l.b16 %v2934
        %v3011 = vunpack.c.l.b16 %v2937
        %v3012 = vunpack.c.l.b16 %v2941
        %v3013 = vunpack.c.l.b16 %v2944
        %v3014 = vunpack.c.l.b16 %v2948
        %v3015 = vunpack.c.l.b16 %v2951
        %v3016 = vunpack.c.l.b16 %v2955
        %v3017 = vunpack.c.l.b16 %v2958
        %v3018 = vunpack.c.l.b16 %v2962
        %v3019 = vunpack.c.l.b16 %v2965
        %v3020 = vunpack.c.l.b16 %v2969
        %v3021 = vunpack.c.l.b16 %v2972
        %v3022 = vunpack.c.l.b16 %v2976
        %v3023 = vunpack.c.l.b16 %v2979
        %v3024 = vunpack.c.l.b16 %v2983
        %v3025 = vunpack.c.l.b16 %v2986
        %v3026 = vunpack.c.l.b16 %v2990
        %v3027 = vunpack.c.l.b16 %v2993
        %v3028 = vpack.c.b16 %v2997, %v2996
        %v3029 = vpack.c.b16 %v2999, %v2998
        %v3030 = vpack.c.b16 %v3001, %v3000
        %v3031 = vpack.c.b16 %v3003, %v3002
        %v3032 = vpack.c.b16 %v3005, %v3004
        %v3033 = vpack.c.b16 %v3007, %v3006
        %v3034 = vpack.c.b16 %v3009, %v3008
        %v3035 = vpack.c.b16 %v3011, %v3010
        %v3036 = vpack.c.b16 %v3013, %v3012
        %v3037 = vpack.c.b16 %v3015, %v3014
        %v3038 = vpack.c.b16 %v3017, %v3016
        %v3039 = vpack.c.b16 %v3019, %v3018
        %v3040 = vpack.c.b16 %v3021, %v3020
        %v3041 = vpack.c.b16 %v3023, %v3022
        %v3042 = vpack.c.b16 %v3025, %v3024
        %v3043 = vpack.c.b16 %v3027, %v3026
        %v3045 = vsel %vm325, %v3028, 0
        %v3048 = vsel %vm325, %v3029, 0
        %v3051 = vsel %vm325, %v3030, 0
        %v3054 = vsel %vm325, %v3031, 0
        %v3057 = vsel %vm325, %v3032, 0
        %v3060 = vsel %vm325, %v3033, 0
        %v3063 = vsel %vm325, %v3034, 0
        %v3066 = vsel %vm325, %v3035, 0
        %v3069 = vsel %vm325, %v3036, 0
        %v3072 = vsel %vm325, %v3037, 0
        %v3075 = vsel %vm325, %v3038, 0
        %v3078 = vsel %vm325, %v3039, 0
        %v3081 = vsel %vm325, %v3040, 0
        %v3084 = vsel %vm325, %v3041, 0
        %v3087 = vsel %vm325, %v3042, 0
        %v3090 = vsel %vm325, %v3043, 0
        %v3093 = vsel %vm374, %v2995, 0
        %3095 = vmatpush.bf16.msra.mxu0 0
        %3096 = vmatpush.bf16.msra.mxu0 0
        %3097 = vmatpush.bf16.msra.mxu0 0
        %3098 = vmatpush.bf16.msra.mxu0 0
        %3099 = vmatpush.bf16.msra.mxu0 0
        %3100 = vmatpush.bf16.msra.mxu0 0
        %3101 = vmatpush.bf16.msra.mxu0 0
        %3102 = vmatpush.bf16.msra.mxu0 %v3093
        %3103 = vmatmul.bf16.gmra.mxu0 %v3045
        %v3104 = vpop.f32.mrf.mxu0
        %v3105 = vadd.f32 0.0, %v3104
        %v3106 = vpop.f32.mrf.mxu0
        %v3107 = vadd.f32 0.0, %v3106
        %3108 = vmatmul.bf16.gmra.mxu0 %v3048
        %v3109 = vpop.f32.mrf.mxu0
        %v3110 = vadd.f32 0.0, %v3109
        %v3111 = vpop.f32.mrf.mxu0
        %v3112 = vadd.f32 0.0, %v3111
        %3113 = vmatmul.bf16.gmra.mxu0 %v3051
        %v3114 = vpop.f32.mrf.mxu0
        %v3115 = vadd.f32 0.0, %v3114
        %v3116 = vpop.f32.mrf.mxu0
        %v3117 = vadd.f32 0.0, %v3116
        %3118 = vmatmul.bf16.gmra.mxu0 %v3054
        %v3119 = vpop.f32.mrf.mxu0
        %v3120 = vadd.f32 0.0, %v3119
        %v3121 = vpop.f32.mrf.mxu0
        %v3122 = vadd.f32 0.0, %v3121
        %3123 = vmatmul.bf16.gmra.mxu0 %v3057
        %v3124 = vpop.f32.mrf.mxu0
        %v3125 = vadd.f32 0.0, %v3124
        %v3126 = vpop.f32.mrf.mxu0
        %v3127 = vadd.f32 0.0, %v3126
        %3128 = vmatmul.bf16.gmra.mxu0 %v3060
        %v3129 = vpop.f32.mrf.mxu0
        %v3130 = vadd.f32 0.0, %v3129
        %v3131 = vpop.f32.mrf.mxu0
        %v3132 = vadd.f32 0.0, %v3131
        %3133 = vmatmul.bf16.gmra.mxu0 %v3063
        %v3134 = vpop.f32.mrf.mxu0
        %v3135 = vadd.f32 0.0, %v3134
        %v3136 = vpop.f32.mrf.mxu0
        %v3137 = vadd.f32 0.0, %v3136
        %3138 = vmatmul.bf16.gmra.mxu0 %v3066
        %v3139 = vpop.f32.mrf.mxu0
        %v3140 = vadd.f32 0.0, %v3139
        %v3141 = vpop.f32.mrf.mxu0
        %v3142 = vadd.f32 0.0, %v3141
        %3143 = vmatmul.bf16.gmra.mxu0 %v3069
        %v3144 = vpop.f32.mrf.mxu0
        %v3145 = vadd.f32 0.0, %v3144
        %v3146 = vpop.f32.mrf.mxu0
        %v3147 = vadd.f32 0.0, %v3146
        %3148 = vmatmul.bf16.gmra.mxu0 %v3072
        %v3149 = vpop.f32.mrf.mxu0
        %v3150 = vadd.f32 0.0, %v3149
        %v3151 = vpop.f32.mrf.mxu0
        %v3152 = vadd.f32 0.0, %v3151
        %3153 = vmatmul.bf16.gmra.mxu0 %v3075
        %v3154 = vpop.f32.mrf.mxu0
        %v3155 = vadd.f32 0.0, %v3154
        %v3156 = vpop.f32.mrf.mxu0
        %v3157 = vadd.f32 0.0, %v3156
        %3158 = vmatmul.bf16.gmra.mxu0 %v3078
        %v3159 = vpop.f32.mrf.mxu0
        %v3160 = vadd.f32 0.0, %v3159
        %v3161 = vpop.f32.mrf.mxu0
        %v3162 = vadd.f32 0.0, %v3161
        %3163 = vmatmul.bf16.gmra.mxu0 %v3081
        %v3164 = vpop.f32.mrf.mxu0
        %v3165 = vadd.f32 0.0, %v3164
        %v3166 = vpop.f32.mrf.mxu0
        %v3167 = vadd.f32 0.0, %v3166
        %3168 = vmatmul.bf16.gmra.mxu0 %v3084
        %v3169 = vpop.f32.mrf.mxu0
        %v3170 = vadd.f32 0.0, %v3169
        %v3171 = vpop.f32.mrf.mxu0
        %v3172 = vadd.f32 0.0, %v3171
        %3173 = vmatmul.bf16.gmra.mxu0 %v3087
        %v3174 = vpop.f32.mrf.mxu0
        %v3175 = vadd.f32 0.0, %v3174
        %v3176 = vpop.f32.mrf.mxu0
        %v3177 = vadd.f32 0.0, %v3176
        %3178 = vmatmul.bf16.gmra.mxu0 %v3090
        %v3179 = vpop.f32.mrf.mxu0
        %v3180 = vadd.f32 0.0, %v3179
        %v3181 = vpop.f32.mrf.mxu0
        %v3182 = vadd.f32 0.0, %v3181
        %3183 = vdwg.mxu0
        %v3184 = vld [vmem:[#allocation2] sm:$0xff]
        %v3185 = vld [vmem:[#allocation2 + $0x8] sm:$0xff]
        %v3186 = vld [vmem:[#allocation2 + $0x10] sm:$0xff]
        %v3187 = vld [vmem:[#allocation2 + $0x18] sm:$0xff]
        %v3188 = vld [vmem:[#allocation2 + $0x20] sm:$0xff]
        %v3189 = vld [vmem:[#allocation2 + $0x28] sm:$0xff]
        %v3190 = vld [vmem:[#allocation2 + $0x30] sm:$0xff]
        %v3191 = vld [vmem:[#allocation2 + $0x38] sm:$0xff]
        %v3192 = vld [vmem:[#allocation2 + $0x40] sm:$0xff]
        %v3193 = vld [vmem:[#allocation2 + $0x48] sm:$0xff]
        %v3194 = vld [vmem:[#allocation2 + $0x50] sm:$0xff]
        %v3195 = vld [vmem:[#allocation2 + $0x58] sm:$0xff]
        %v3196 = vld [vmem:[#allocation2 + $0x60] sm:$0xff]
        %v3197 = vld [vmem:[#allocation2 + $0x68] sm:$0xff]
        %v3198 = vld [vmem:[#allocation2 + $0x70] sm:$0xff]
        %v3199 = vld [vmem:[#allocation2 + $0x78] sm:$0xff]
        %v3200 = vld [vmem:[#allocation2 + $0x80] sm:$0xff]
        %v3201 = vld [vmem:[#allocation2 + $0x88] sm:$0xff]
        %v3202 = vld [vmem:[#allocation2 + $0x90] sm:$0xff]
        %v3203 = vld [vmem:[#allocation2 + $0x98] sm:$0xff]
        %v3204 = vld [vmem:[#allocation2 + $0xa0] sm:$0xff]
        %v3205 = vld [vmem:[#allocation2 + $0xa8] sm:$0xff]
        %v3206 = vld [vmem:[#allocation2 + $0xb0] sm:$0xff]
        %v3207 = vld [vmem:[#allocation2 + $0xb8] sm:$0xff]
        %v3208 = vld [vmem:[#allocation2 + $0xc0] sm:$0xff]
        %v3209 = vld [vmem:[#allocation2 + $0xc8] sm:$0xff]
        %v3210 = vld [vmem:[#allocation2 + $0xd0] sm:$0xff]
        %v3211 = vld [vmem:[#allocation2 + $0xd8] sm:$0xff]
        %v3212 = vld [vmem:[#allocation2 + $0xe0] sm:$0xff]
        %v3213 = vld [vmem:[#allocation2 + $0xe8] sm:$0xff]
        %v3214 = vld [vmem:[#allocation2 + $0xf0] sm:$0xff]
        %v3215 = vld [vmem:[#allocation2 + $0xf8] sm:$0xff]
        %v3216 = vadd.f32 %v3184, %v3105
        %v3217 = vadd.f32 %v3185, %v3107
        %v3218 = vadd.f32 %v3186, %v3110
        %v3219 = vadd.f32 %v3187, %v3112
        %v3220 = vadd.f32 %v3188, %v3115
        %v3221 = vadd.f32 %v3189, %v3117
        %v3222 = vadd.f32 %v3190, %v3120
        %v3223 = vadd.f32 %v3191, %v3122
        %v3224 = vadd.f32 %v3192, %v3125
        %v3225 = vadd.f32 %v3193, %v3127
        %v3226 = vadd.f32 %v3194, %v3130
        %v3227 = vadd.f32 %v3195, %v3132
        %v3228 = vadd.f32 %v3196, %v3135
        %v3229 = vadd.f32 %v3197, %v3137
        %v3230 = vadd.f32 %v3198, %v3140
        %v3231 = vadd.f32 %v3199, %v3142
        %v3232 = vadd.f32 %v3200, %v3145
        %v3233 = vadd.f32 %v3201, %v3147
        %v3234 = vadd.f32 %v3202, %v3150
        %v3235 = vadd.f32 %v3203, %v3152
        %v3236 = vadd.f32 %v3204, %v3155
        %v3237 = vadd.f32 %v3205, %v3157
        %v3238 = vadd.f32 %v3206, %v3160
        %v3239 = vadd.f32 %v3207, %v3162
        %v3240 = vadd.f32 %v3208, %v3165
        %v3241 = vadd.f32 %v3209, %v3167
        %v3242 = vadd.f32 %v3210, %v3170
        %v3243 = vadd.f32 %v3211, %v3172
        %v3244 = vadd.f32 %v3212, %v3175
        %v3245 = vadd.f32 %v3213, %v3177
        %v3246 = vadd.f32 %v3214, %v3180
        %v3247 = vadd.f32 %v3215, %v3182
        %3248 = vst [vmem:[#allocation2] sm:$0xff] %v3216
        %3249 = vst [vmem:[#allocation2 + $0x8] sm:$0xff] %v3217
        %3250 = vst [vmem:[#allocation2 + $0x10] sm:$0xff] %v3218
        %3251 = vst [vmem:[#allocation2 + $0x18] sm:$0xff] %v3219
        %3252 = vst [vmem:[#allocation2 + $0x20] sm:$0xff] %v3220
        %3253 = vst [vmem:[#allocation2 + $0x28] sm:$0xff] %v3221
        %3254 = vst [vmem:[#allocation2 + $0x30] sm:$0xff] %v3222
        %3255 = vst [vmem:[#allocation2 + $0x38] sm:$0xff] %v3223
        %3256 = vst [vmem:[#allocation2 + $0x40] sm:$0xff] %v3224
        %3257 = vst [vmem:[#allocation2 + $0x48] sm:$0xff] %v3225
        %3258 = vst [vmem:[#allocation2 + $0x50] sm:$0xff] %v3226
        %3259 = vst [vmem:[#allocation2 + $0x58] sm:$0xff] %v3227
        %3260 = vst [vmem:[#allocation2 + $0x60] sm:$0xff] %v3228
        %3261 = vst [vmem:[#allocation2 + $0x68] sm:$0xff] %v3229
        %3262 = vst [vmem:[#allocation2 + $0x70] sm:$0xff] %v3230
        %3263 = vst [vmem:[#allocation2 + $0x78] sm:$0xff] %v3231
        %3264 = vst [vmem:[#allocation2 + $0x80] sm:$0xff] %v3232
        %3265 = vst [vmem:[#allocation2 + $0x88] sm:$0xff] %v3233
        %3266 = vst [vmem:[#allocation2 + $0x90] sm:$0xff] %v3234
        %3267 = vst [vmem:[#allocation2 + $0x98] sm:$0xff] %v3235
        %3268 = vst [vmem:[#allocation2 + $0xa0] sm:$0xff] %v3236
        %3269 = vst [vmem:[#allocation2 + $0xa8] sm:$0xff] %v3237
        %3270 = vst [vmem:[#allocation2 + $0xb0] sm:$0xff] %v3238
        %3271 = vst [vmem:[#allocation2 + $0xb8] sm:$0xff] %v3239
        %3272 = vst [vmem:[#allocation2 + $0xc0] sm:$0xff] %v3240
        %3273 = vst [vmem:[#allocation2 + $0xc8] sm:$0xff] %v3241
        %3274 = vst [vmem:[#allocation2 + $0xd0] sm:$0xff] %v3242
        %3275 = vst [vmem:[#allocation2 + $0xd8] sm:$0xff] %v3243
        %3276 = vst [vmem:[#allocation2 + $0xe0] sm:$0xff] %v3244
        %3277 = vst [vmem:[#allocation2 + $0xe8] sm:$0xff] %v3245
        %3278 = vst [vmem:[#allocation2 + $0xf0] sm:$0xff] %v3246
        %3279 = vst [vmem:[#allocation2 + $0xf8] sm:$0xff] %v3247
        %s3280 = scalar_lea.vmem %s210, 24
        %v3281 = vld [vmem:[%s3280] sm:$0xf]
        %v3282 = vld [vmem:[%s3280 + $0x4] sm:$0xf]
        %v3283 = vld [vmem:[%s3280 + $0xc] sm:$0xf]
        %v3284 = vld [vmem:[%s3280 + $0x10] sm:$0xf]
        %v3285 = vld [vmem:[%s3280 + $0x18] sm:$0xf]
        %v3286 = vld [vmem:[%s3280 + $0x1c] sm:$0xf]
        %v3287 = vld [vmem:[%s3280 + $0x24] sm:$0xf]
        %v3288 = vld [vmem:[%s3280 + $0x28] sm:$0xf]
        %v3289 = vld [vmem:[%s3280 + $0x30] sm:$0xf]
        %v3290 = vld [vmem:[%s3280 + $0x34] sm:$0xf]
        %v3291 = vld [vmem:[%s3280 + $0x3c] sm:$0xf]
        %v3292 = vld [vmem:[%s3280 + $0x40] sm:$0xf]
        %v3293 = vld [vmem:[%s3280 + $0x48] sm:$0xf]
        %v3294 = vld [vmem:[%s3280 + $0x4c] sm:$0xf]
        %v3295 = vld [vmem:[%s3280 + $0x54] sm:$0xf]
        %v3296 = vld [vmem:[%s3280 + $0x58] sm:$0xf]
        %v3297 = vld [vmem:[%s3280 + $0x60] sm:$0xf]
        %v3298 = vld [vmem:[%s3280 + $0x64] sm:$0xf]
        %v3299 = vld [vmem:[%s3280 + $0x6c] sm:$0xf]
        %v3300 = vld [vmem:[%s3280 + $0x70] sm:$0xf]
        %v3301 = vld [vmem:[%s3280 + $0x78] sm:$0xf]
        %v3302 = vld [vmem:[%s3280 + $0x7c] sm:$0xf]
        %v3303 = vld [vmem:[%s3280 + $0x84] sm:$0xf]
        %v3304 = vld [vmem:[%s3280 + $0x88] sm:$0xf]
        %v3305 = vld [vmem:[%s3280 + $0x90] sm:$0xf]
        %v3306 = vld [vmem:[%s3280 + $0x94] sm:$0xf]
        %v3307 = vld [vmem:[%s3280 + $0x9c] sm:$0xf]
        %v3308 = vld [vmem:[%s3280 + $0xa0] sm:$0xf]
        %v3309 = vld [vmem:[%s3280 + $0xa8] sm:$0xf]
        %v3310 = vld [vmem:[%s3280 + $0xac] sm:$0xf]
        %v3311 = vld [vmem:[%s3280 + $0xb4] sm:$0xf]
        %v3312 = vld [vmem:[%s3280 + $0xb8] sm:$0xf]
        %s3313 = scalar_lea.vmem %s1, 12
        %v3314 = vld [vmem:[%s3313] sm:$0x3]
        %v3347 = vunpack.c.l.b16 %v3281
        %v3348 = vunpack.c.l.b16 %v3282
        %v3349 = vunpack.c.l.b16 %v3283
        %v3350 = vunpack.c.l.b16 %v3284
        %v3351 = vunpack.c.l.b16 %v3285
        %v3352 = vunpack.c.l.b16 %v3286
        %v3353 = vunpack.c.l.b16 %v3287
        %v3354 = vunpack.c.l.b16 %v3288
        %v3355 = vunpack.c.l.b16 %v3289
        %v3356 = vunpack.c.l.b16 %v3290
        %v3357 = vunpack.c.l.b16 %v3291
        %v3358 = vunpack.c.l.b16 %v3292
        %v3359 = vunpack.c.l.b16 %v3293
        %v3360 = vunpack.c.l.b16 %v3294
        %v3361 = vunpack.c.l.b16 %v3295
        %v3362 = vunpack.c.l.b16 %v3296
        %v3363 = vunpack.c.l.b16 %v3297
        %v3364 = vunpack.c.l.b16 %v3298
        %v3365 = vunpack.c.l.b16 %v3299
        %v3366 = vunpack.c.l.b16 %v3300
        %v3367 = vunpack.c.l.b16 %v3301
        %v3368 = vunpack.c.l.b16 %v3302
        %v3369 = vunpack.c.l.b16 %v3303
        %v3370 = vunpack.c.l.b16 %v3304
        %v3371 = vunpack.c.l.b16 %v3305
        %v3372 = vunpack.c.l.b16 %v3306
        %v3373 = vunpack.c.l.b16 %v3307
        %v3374 = vunpack.c.l.b16 %v3308
        %v3375 = vunpack.c.l.b16 %v3309
        %v3376 = vunpack.c.l.b16 %v3310
        %v3377 = vunpack.c.l.b16 %v3311
        %v3378 = vunpack.c.l.b16 %v3312
        %v3379 = vpack.c.b16 %v3348, %v3347
        %v3380 = vpack.c.b16 %v3350, %v3349
        %v3381 = vpack.c.b16 %v3352, %v3351
        %v3382 = vpack.c.b16 %v3354, %v3353
        %v3383 = vpack.c.b16 %v3356, %v3355
        %v3384 = vpack.c.b16 %v3358, %v3357
        %v3385 = vpack.c.b16 %v3360, %v3359
        %v3386 = vpack.c.b16 %v3362, %v3361
        %v3387 = vpack.c.b16 %v3364, %v3363
        %v3388 = vpack.c.b16 %v3366, %v3365
        %v3389 = vpack.c.b16 %v3368, %v3367
        %v3390 = vpack.c.b16 %v3370, %v3369
        %v3391 = vpack.c.b16 %v3372, %v3371
        %v3392 = vpack.c.b16 %v3374, %v3373
        %v3393 = vpack.c.b16 %v3376, %v3375
        %v3394 = vpack.c.b16 %v3378, %v3377
        %v3396 = vsel %vm325, %v3379, 0
        %v3399 = vsel %vm325, %v3380, 0
        %v3402 = vsel %vm325, %v3381, 0
        %v3405 = vsel %vm325, %v3382, 0
        %v3408 = vsel %vm325, %v3383, 0
        %v3411 = vsel %vm325, %v3384, 0
        %v3414 = vsel %vm325, %v3385, 0
        %v3417 = vsel %vm325, %v3386, 0
        %v3420 = vsel %vm325, %v3387, 0
        %v3423 = vsel %vm325, %v3388, 0
        %v3426 = vsel %vm325, %v3389, 0
        %v3429 = vsel %vm325, %v3390, 0
        %v3432 = vsel %vm325, %v3391, 0
        %v3435 = vsel %vm325, %v3392, 0
        %v3438 = vsel %vm325, %v3393, 0
        %v3441 = vsel %vm325, %v3394, 0
        %v3444 = vsel %vm374, %v3314, 0
        %3446 = vmatpush.bf16.msra.mxu0 0
        %3447 = vmatpush.bf16.msra.mxu0 0
        %3448 = vmatpush.bf16.msra.mxu0 0
        %3449 = vmatpush.bf16.msra.mxu0 0
        %3450 = vmatpush.bf16.msra.mxu0 0
        %3451 = vmatpush.bf16.msra.mxu0 0
        %3452 = vmatpush.bf16.msra.mxu0 0
        %3453 = vmatpush.bf16.msra.mxu0 %v3444
        %3454 = vmatmul.bf16.gmra.mxu0 %v3396
        %v3455 = vpop.f32.mrf.mxu0
        %v3456 = vadd.f32 0.0, %v3455
        %v3457 = vpop.f32.mrf.mxu0
        %v3458 = vadd.f32 0.0, %v3457
        %3459 = vmatmul.bf16.gmra.mxu0 %v3399
        %v3460 = vpop.f32.mrf.mxu0
        %v3461 = vadd.f32 0.0, %v3460
        %v3462 = vpop.f32.mrf.mxu0
        %v3463 = vadd.f32 0.0, %v3462
        %3464 = vmatmul.bf16.gmra.mxu0 %v3402
        %v3465 = vpop.f32.mrf.mxu0
        %v3466 = vadd.f32 0.0, %v3465
        %v3467 = vpop.f32.mrf.mxu0
        %v3468 = vadd.f32 0.0, %v3467
        %3469 = vmatmul.bf16.gmra.mxu0 %v3405
        %v3470 = vpop.f32.mrf.mxu0
        %v3471 = vadd.f32 0.0, %v3470
        %v3472 = vpop.f32.mrf.mxu0
        %v3473 = vadd.f32 0.0, %v3472
        %3474 = vmatmul.bf16.gmra.mxu0 %v3408
        %v3475 = vpop.f32.mrf.mxu0
        %v3476 = vadd.f32 0.0, %v3475
        %v3477 = vpop.f32.mrf.mxu0
        %v3478 = vadd.f32 0.0, %v3477
        %3479 = vmatmul.bf16.gmra.mxu0 %v3411
        %v3480 = vpop.f32.mrf.mxu0
        %v3481 = vadd.f32 0.0, %v3480
        %v3482 = vpop.f32.mrf.mxu0
        %v3483 = vadd.f32 0.0, %v3482
        %3484 = vmatmul.bf16.gmra.mxu0 %v3414
        %v3485 = vpop.f32.mrf.mxu0
        %v3486 = vadd.f32 0.0, %v3485
        %v3487 = vpop.f32.mrf.mxu0
        %v3488 = vadd.f32 0.0, %v3487
        %3489 = vmatmul.bf16.gmra.mxu0 %v3417
        %v3490 = vpop.f32.mrf.mxu0
        %v3491 = vadd.f32 0.0, %v3490
        %v3492 = vpop.f32.mrf.mxu0
        %v3493 = vadd.f32 0.0, %v3492
        %3494 = vmatmul.bf16.gmra.mxu0 %v3420
        %v3495 = vpop.f32.mrf.mxu0
        %v3496 = vadd.f32 0.0, %v3495
        %v3497 = vpop.f32.mrf.mxu0
        %v3498 = vadd.f32 0.0, %v3497
        %3499 = vmatmul.bf16.gmra.mxu0 %v3423
        %v3500 = vpop.f32.mrf.mxu0
        %v3501 = vadd.f32 0.0, %v3500
        %v3502 = vpop.f32.mrf.mxu0
        %v3503 = vadd.f32 0.0, %v3502
        %3504 = vmatmul.bf16.gmra.mxu0 %v3426
        %v3505 = vpop.f32.mrf.mxu0
        %v3506 = vadd.f32 0.0, %v3505
        %v3507 = vpop.f32.mrf.mxu0
        %v3508 = vadd.f32 0.0, %v3507
        %3509 = vmatmul.bf16.gmra.mxu0 %v3429
        %v3510 = vpop.f32.mrf.mxu0
        %v3511 = vadd.f32 0.0, %v3510
        %v3512 = vpop.f32.mrf.mxu0
        %v3513 = vadd.f32 0.0, %v3512
        %3514 = vmatmul.bf16.gmra.mxu0 %v3432
        %v3515 = vpop.f32.mrf.mxu0
        %v3516 = vadd.f32 0.0, %v3515
        %v3517 = vpop.f32.mrf.mxu0
        %v3518 = vadd.f32 0.0, %v3517
        %3519 = vmatmul.bf16.gmra.mxu0 %v3435
        %v3520 = vpop.f32.mrf.mxu0
        %v3521 = vadd.f32 0.0, %v3520
        %v3522 = vpop.f32.mrf.mxu0
        %v3523 = vadd.f32 0.0, %v3522
        %3524 = vmatmul.bf16.gmra.mxu0 %v3438
        %v3525 = vpop.f32.mrf.mxu0
        %v3526 = vadd.f32 0.0, %v3525
        %v3527 = vpop.f32.mrf.mxu0
        %v3528 = vadd.f32 0.0, %v3527
        %3529 = vmatmul.bf16.gmra.mxu0 %v3441
        %v3530 = vpop.f32.mrf.mxu0
        %v3531 = vadd.f32 0.0, %v3530
        %v3532 = vpop.f32.mrf.mxu0
        %v3533 = vadd.f32 0.0, %v3532
        %3534 = vdwg.mxu0
        %v3535 = vld [vmem:[#allocation2] sm:$0xff]
        %v3536 = vld [vmem:[#allocation2 + $0x8] sm:$0xff]
        %v3537 = vld [vmem:[#allocation2 + $0x10] sm:$0xff]
        %v3538 = vld [vmem:[#allocation2 + $0x18] sm:$0xff]
        %v3539 = vld [vmem:[#allocation2 + $0x20] sm:$0xff]
        %v3540 = vld [vmem:[#allocation2 + $0x28] sm:$0xff]
        %v3541 = vld [vmem:[#allocation2 + $0x30] sm:$0xff]
        %v3542 = vld [vmem:[#allocation2 + $0x38] sm:$0xff]
        %v3543 = vld [vmem:[#allocation2 + $0x40] sm:$0xff]
        %v3544 = vld [vmem:[#allocation2 + $0x48] sm:$0xff]
        %v3545 = vld [vmem:[#allocation2 + $0x50] sm:$0xff]
        %v3546 = vld [vmem:[#allocation2 + $0x58] sm:$0xff]
        %v3547 = vld [vmem:[#allocation2 + $0x60] sm:$0xff]
        %v3548 = vld [vmem:[#allocation2 + $0x68] sm:$0xff]
        %v3549 = vld [vmem:[#allocation2 + $0x70] sm:$0xff]
        %v3550 = vld [vmem:[#allocation2 + $0x78] sm:$0xff]
        %v3551 = vld [vmem:[#allocation2 + $0x80] sm:$0xff]
        %v3552 = vld [vmem:[#allocation2 + $0x88] sm:$0xff]
        %v3553 = vld [vmem:[#allocation2 + $0x90] sm:$0xff]
        %v3554 = vld [vmem:[#allocation2 + $0x98] sm:$0xff]
        %v3555 = vld [vmem:[#allocation2 + $0xa0] sm:$0xff]
        %v3556 = vld [vmem:[#allocation2 + $0xa8] sm:$0xff]
        %v3557 = vld [vmem:[#allocation2 + $0xb0] sm:$0xff]
        %v3558 = vld [vmem:[#allocation2 + $0xb8] sm:$0xff]
        %v3559 = vld [vmem:[#allocation2 + $0xc0] sm:$0xff]
        %v3560 = vld [vmem:[#allocation2 + $0xc8] sm:$0xff]
        %v3561 = vld [vmem:[#allocation2 + $0xd0] sm:$0xff]
        %v3562 = vld [vmem:[#allocation2 + $0xd8] sm:$0xff]
        %v3563 = vld [vmem:[#allocation2 + $0xe0] sm:$0xff]
        %v3564 = vld [vmem:[#allocation2 + $0xe8] sm:$0xff]
        %v3565 = vld [vmem:[#allocation2 + $0xf0] sm:$0xff]
        %v3566 = vld [vmem:[#allocation2 + $0xf8] sm:$0xff]
        %v3567 = vadd.f32 %v3535, %v3456
        %v3568 = vadd.f32 %v3536, %v3458
        %v3569 = vadd.f32 %v3537, %v3461
        %v3570 = vadd.f32 %v3538, %v3463
        %v3571 = vadd.f32 %v3539, %v3466
        %v3572 = vadd.f32 %v3540, %v3468
        %v3573 = vadd.f32 %v3541, %v3471
        %v3574 = vadd.f32 %v3542, %v3473
        %v3575 = vadd.f32 %v3543, %v3476
        %v3576 = vadd.f32 %v3544, %v3478
        %v3577 = vadd.f32 %v3545, %v3481
        %v3578 = vadd.f32 %v3546, %v3483
        %v3579 = vadd.f32 %v3547, %v3486
        %v3580 = vadd.f32 %v3548, %v3488
        %v3581 = vadd.f32 %v3549, %v3491
        %v3582 = vadd.f32 %v3550, %v3493
        %v3583 = vadd.f32 %v3551, %v3496
        %v3584 = vadd.f32 %v3552, %v3498
        %v3585 = vadd.f32 %v3553, %v3501
        %v3586 = vadd.f32 %v3554, %v3503
        %v3587 = vadd.f32 %v3555, %v3506
        %v3588 = vadd.f32 %v3556, %v3508
        %v3589 = vadd.f32 %v3557, %v3511
        %v3590 = vadd.f32 %v3558, %v3513
        %v3591 = vadd.f32 %v3559, %v3516
        %v3592 = vadd.f32 %v3560, %v3518
        %v3593 = vadd.f32 %v3561, %v3521
        %v3594 = vadd.f32 %v3562, %v3523
        %v3595 = vadd.f32 %v3563, %v3526
        %v3596 = vadd.f32 %v3564, %v3528
        %v3597 = vadd.f32 %v3565, %v3531
        %v3598 = vadd.f32 %v3566, %v3533
        %3599 = vst [vmem:[#allocation2] sm:$0xff] %v3567
        %3600 = vst [vmem:[#allocation2 + $0x8] sm:$0xff] %v3568
        %3601 = vst [vmem:[#allocation2 + $0x10] sm:$0xff] %v3569
        %3602 = vst [vmem:[#allocation2 + $0x18] sm:$0xff] %v3570
        %3603 = vst [vmem:[#allocation2 + $0x20] sm:$0xff] %v3571
        %3604 = vst [vmem:[#allocation2 + $0x28] sm:$0xff] %v3572
        %3605 = vst [vmem:[#allocation2 + $0x30] sm:$0xff] %v3573
        %3606 = vst [vmem:[#allocation2 + $0x38] sm:$0xff] %v3574
        %3607 = vst [vmem:[#allocation2 + $0x40] sm:$0xff] %v3575
        %3608 = vst [vmem:[#allocation2 + $0x48] sm:$0xff] %v3576
        %3609 = vst [vmem:[#allocation2 + $0x50] sm:$0xff] %v3577
        %3610 = vst [vmem:[#allocation2 + $0x58] sm:$0xff] %v3578
        %3611 = vst [vmem:[#allocation2 + $0x60] sm:$0xff] %v3579
        %3612 = vst [vmem:[#allocation2 + $0x68] sm:$0xff] %v3580
        %3613 = vst [vmem:[#allocation2 + $0x70] sm:$0xff] %v3581
        %3614 = vst [vmem:[#allocation2 + $0x78] sm:$0xff] %v3582
        %3615 = vst [vmem:[#allocation2 + $0x80] sm:$0xff] %v3583
        %3616 = vst [vmem:[#allocation2 + $0x88] sm:$0xff] %v3584
        %3617 = vst [vmem:[#allocation2 + $0x90] sm:$0xff] %v3585
        %3618 = vst [vmem:[#allocation2 + $0x98] sm:$0xff] %v3586
        %3619 = vst [vmem:[#allocation2 + $0xa0] sm:$0xff] %v3587
        %3620 = vst [vmem:[#allocation2 + $0xa8] sm:$0xff] %v3588
        %3621 = vst [vmem:[#allocation2 + $0xb0] sm:$0xff] %v3589
        %3622 = vst [vmem:[#allocation2 + $0xb8] sm:$0xff] %v3590
        %3623 = vst [vmem:[#allocation2 + $0xc0] sm:$0xff] %v3591
        %3624 = vst [vmem:[#allocation2 + $0xc8] sm:$0xff] %v3592
        %3625 = vst [vmem:[#allocation2 + $0xd0] sm:$0xff] %v3593
        %3626 = vst [vmem:[#allocation2 + $0xd8] sm:$0xff] %v3594
        %3627 = vst [vmem:[#allocation2 + $0xe0] sm:$0xff] %v3595
        %3628 = vst [vmem:[#allocation2 + $0xe8] sm:$0xff] %v3596
        %3629 = vst [vmem:[#allocation2 + $0xf0] sm:$0xff] %v3597
        %3630 = vst [vmem:[#allocation2 + $0xf8] sm:$0xff] %v3598
        %v3631 = vld [vmem:[%s3280] sm:$0xf]
        %v3632 = vld [vmem:[%s3280 + $0x4] sm:$0xf]
        %v3633 = vld [vmem:[%s3280 + $0x8] sm:$0x1]
        %v3634 = vld [vmem:[%s3280 + $0xc] sm:$0xf]
        %v3635 = vld [vmem:[%s3280 + $0x10] sm:$0xf]
        %v3636 = vld [vmem:[%s3280 + $0x14] sm:$0x1]
        %v3637 = vld [vmem:[%s3280 + $0x18] sm:$0xf]
        %v3638 = vld [vmem:[%s3280 + $0x1c] sm:$0xf]
        %v3639 = vld [vmem:[%s3280 + $0x20] sm:$0x1]
        %v3640 = vld [vmem:[%s3280 + $0x24] sm:$0xf]
        %v3641 = vld [vmem:[%s3280 + $0x28] sm:$0xf]
        %v3642 = vld [vmem:[%s3280 + $0x2c] sm:$0x1]
        %v3643 = vld [vmem:[%s3280 + $0x30] sm:$0xf]
        %v3644 = vld [vmem:[%s3280 + $0x34] sm:$0xf]
        %v3645 = vld [vmem:[%s3280 + $0x38] sm:$0x1]
        %v3646 = vld [vmem:[%s3280 + $0x3c] sm:$0xf]
        %v3647 = vld [vmem:[%s3280 + $0x40] sm:$0xf]
        %v3648 = vld [vmem:[%s3280 + $0x44] sm:$0x1]
        %v3649 = vld [vmem:[%s3280 + $0x48] sm:$0xf]
        %v3650 = vld [vmem:[%s3280 + $0x4c] sm:$0xf]
        %v3651 = vld [vmem:[%s3280 + $0x50] sm:$0x1]
        %v3652 = vld [vmem:[%s3280 + $0x54] sm:$0xf]
        %v3653 = vld [vmem:[%s3280 + $0x58] sm:$0xf]
        %v3654 = vld [vmem:[%s3280 + $0x5c] sm:$0x1]
        %v3655 = vld [vmem:[%s3280 + $0x60] sm:$0xf]
        %v3656 = vld [vmem:[%s3280 + $0x64] sm:$0xf]
        %v3657 = vld [vmem:[%s3280 + $0x68] sm:$0x1]
        %v3658 = vld [vmem:[%s3280 + $0x6c] sm:$0xf]
        %v3659 = vld [vmem:[%s3280 + $0x70] sm:$0xf]
        %v3660 = vld [vmem:[%s3280 + $0x74] sm:$0x1]
        %v3661 = vld [vmem:[%s3280 + $0x78] sm:$0xf]
        %v3662 = vld [vmem:[%s3280 + $0x7c] sm:$0xf]
        %v3663 = vld [vmem:[%s3280 + $0x80] sm:$0x1]
        %v3664 = vld [vmem:[%s3280 + $0x84] sm:$0xf]
        %v3665 = vld [vmem:[%s3280 + $0x88] sm:$0xf]
        %v3666 = vld [vmem:[%s3280 + $0x8c] sm:$0x1]
        %v3667 = vld [vmem:[%s3280 + $0x90] sm:$0xf]
        %v3668 = vld [vmem:[%s3280 + $0x94] sm:$0xf]
        %v3669 = vld [vmem:[%s3280 + $0x98] sm:$0x1]
        %v3670 = vld [vmem:[%s3280 + $0x9c] sm:$0xf]
        %v3671 = vld [vmem:[%s3280 + $0xa0] sm:$0xf]
        %v3672 = vld [vmem:[%s3280 + $0xa4] sm:$0x1]
        %v3673 = vld [vmem:[%s3280 + $0xa8] sm:$0xf]
        %v3674 = vld [vmem:[%s3280 + $0xac] sm:$0xf]
        %v3675 = vld [vmem:[%s3280 + $0xb0] sm:$0x1]
        %v3676 = vld [vmem:[%s3280 + $0xb4] sm:$0xf]
        %v3677 = vld [vmem:[%s3280 + $0xb8] sm:$0xf]
        %v3678 = vld [vmem:[%s3280 + $0xbc] sm:$0x1]
        %v3680 = vshrl.u32 %v3631, 16
        %v3682 = vrot.slane %v3680, 4
        %v3683 = vshll.u32 %v3631, 16
        %v3685 = vrot.slane %v3683, 5
        %v3686 = vor.u32 %v3682, %v3685
        %v3687 = vrot.slane %v3686, 4
        %v3689 = vshll.u32 %v3632, 16
        %v3691 = vrot.slane %v3689, 5
        %v3692 = vsel %vm549, %v3687, %v3691
        %v3693 = vshrl.u32 %v3632, 16
        %v3695 = vrot.slane %v3693, 4
        %v3696 = vor.u32 %v3695, %v3691
        %v3697 = vrot.slane %v3696, 4
        %v3699 = vshll.u32 %v3633, 16
        %v3701 = vrot.slane %v3699, 5
        %v3702 = vsel %vm549, %v3697, %v3701
        %v3704 = vshrl.u32 %v3634, 16
        %v3706 = vrot.slane %v3704, 4
        %v3707 = vshll.u32 %v3634, 16
        %v3709 = vrot.slane %v3707, 5
        %v3710 = vor.u32 %v3706, %v3709
        %v3711 = vrot.slane %v3710, 4
        %v3713 = vshll.u32 %v3635, 16
        %v3715 = vrot.slane %v3713, 5
        %v3716 = vsel %vm549, %v3711, %v3715
        %v3717 = vshrl.u32 %v3635, 16
        %v3719 = vrot.slane %v3717, 4
        %v3720 = vor.u32 %v3719, %v3715
        %v3721 = vrot.slane %v3720, 4
        %v3723 = vshll.u32 %v3636, 16
        %v3725 = vrot.slane %v3723, 5
        %v3726 = vsel %vm549, %v3721, %v3725
        %v3728 = vshrl.u32 %v3637, 16
        %v3730 = vrot.slane %v3728, 4
        %v3731 = vshll.u32 %v3637, 16
        %v3733 = vrot.slane %v3731, 5
        %v3734 = vor.u32 %v3730, %v3733
        %v3735 = vrot.slane %v3734, 4
        %v3737 = vshll.u32 %v3638, 16
        %v3739 = vrot.slane %v3737, 5
        %v3740 = vsel %vm549, %v3735, %v3739
        %v3741 = vshrl.u32 %v3638, 16
        %v3743 = vrot.slane %v3741, 4
        %v3744 = vor.u32 %v3743, %v3739
        %v3745 = vrot.slane %v3744, 4
        %v3747 = vshll.u32 %v3639, 16
        %v3749 = vrot.slane %v3747, 5
        %v3750 = vsel %vm549, %v3745, %v3749
        %v3752 = vshrl.u32 %v3640, 16
        %v3754 = vrot.slane %v3752, 4
        %v3755 = vshll.u32 %v3640, 16
        %v3757 = vrot.slane %v3755, 5
        %v3758 = vor.u32 %v3754, %v3757
        %v3759 = vrot.slane %v3758, 4
        %v3761 = vshll.u32 %v3641, 16
        %v3763 = vrot.slane %v3761, 5
        %v3764 = vsel %vm549, %v3759, %v3763
        %v3765 = vshrl.u32 %v3641, 16
        %v3767 = vrot.slane %v3765, 4
        %v3768 = vor.u32 %v3767, %v3763
        %v3769 = vrot.slane %v3768, 4
        %v3771 = vshll.u32 %v3642, 16
        %v3773 = vrot.slane %v3771, 5
        %v3774 = vsel %vm549, %v3769, %v3773
        %v3776 = vshrl.u32 %v3643, 16
        %v3778 = vrot.slane %v3776, 4
        %v3779 = vshll.u32 %v3643, 16
        %v3781 = vrot.slane %v3779, 5
        %v3782 = vor.u32 %v3778, %v3781
        %v3783 = vrot.slane %v3782, 4
        %v3785 = vshll.u32 %v3644, 16
        %v3787 = vrot.slane %v3785, 5
        %v3788 = vsel %vm549, %v3783, %v3787
        %v3789 = vshrl.u32 %v3644, 16
        %v3791 = vrot.slane %v3789, 4
        %v3792 = vor.u32 %v3791, %v3787
        %v3793 = vrot.slane %v3792, 4
        %v3795 = vshll.u32 %v3645, 16
        %v3797 = vrot.slane %v3795, 5
        %v3798 = vsel %vm549, %v3793, %v3797
        %v3800 = vshrl.u32 %v3646, 16
        %v3802 = vrot.slane %v3800, 4
        %v3803 = vshll.u32 %v3646, 16
        %v3805 = vrot.slane %v3803, 5
        %v3806 = vor.u32 %v3802, %v3805
        %v3807 = vrot.slane %v3806, 4
        %v3809 = vshll.u32 %v3647, 16
        %v3811 = vrot.slane %v3809, 5
        %v3812 = vsel %vm549, %v3807, %v3811
        %v3813 = vshrl.u32 %v3647, 16
        %v3815 = vrot.slane %v3813, 4
        %v3816 = vor.u32 %v3815, %v3811
        %v3817 = vrot.slane %v3816, 4
        %v3819 = vshll.u32 %v3648, 16
        %v3821 = vrot.slane %v3819, 5
        %v3822 = vsel %vm549, %v3817, %v3821
        %v3824 = vshrl.u32 %v3649, 16
        %v3826 = vrot.slane %v3824, 4
        %v3827 = vshll.u32 %v3649, 16
        %v3829 = vrot.slane %v3827, 5
        %v3830 = vor.u32 %v3826, %v3829
        %v3831 = vrot.slane %v3830, 4
        %v3833 = vshll.u32 %v3650, 16
        %v3835 = vrot.slane %v3833, 5
        %v3836 = vsel %vm549, %v3831, %v3835
        %v3837 = vshrl.u32 %v3650, 16
        %v3839 = vrot.slane %v3837, 4
        %v3840 = vor.u32 %v3839, %v3835
        %v3841 = vrot.slane %v3840, 4
        %v3843 = vshll.u32 %v3651, 16
        %v3845 = vrot.slane %v3843, 5
        %v3846 = vsel %vm549, %v3841, %v3845
        %v3848 = vshrl.u32 %v3652, 16
        %v3850 = vrot.slane %v3848, 4
        %v3851 = vshll.u32 %v3652, 16
        %v3853 = vrot.slane %v3851, 5
        %v3854 = vor.u32 %v3850, %v3853
        %v3855 = vrot.slane %v3854, 4
        %v3857 = vshll.u32 %v3653, 16
        %v3859 = vrot.slane %v3857, 5
        %v3860 = vsel %vm549, %v3855, %v3859
        %v3861 = vshrl.u32 %v3653, 16
        %v3863 = vrot.slane %v3861, 4
        %v3864 = vor.u32 %v3863, %v3859
        %v3865 = vrot.slane %v3864, 4
        %v3867 = vshll.u32 %v3654, 16
        %v3869 = vrot.slane %v3867, 5
        %v3870 = vsel %vm549, %v3865, %v3869
        %v3872 = vshrl.u32 %v3655, 16
        %v3874 = vrot.slane %v3872, 4
        %v3875 = vshll.u32 %v3655, 16
        %v3877 = vrot.slane %v3875, 5
        %v3878 = vor.u32 %v3874, %v3877
        %v3879 = vrot.slane %v3878, 4
        %v3881 = vshll.u32 %v3656, 16
        %v3883 = vrot.slane %v3881, 5
        %v3884 = vsel %vm549, %v3879, %v3883
        %v3885 = vshrl.u32 %v3656, 16
        %v3887 = vrot.slane %v3885, 4
        %v3888 = vor.u32 %v3887, %v3883
        %v3889 = vrot.slane %v3888, 4
        %v3891 = vshll.u32 %v3657, 16
        %v3893 = vrot.slane %v3891, 5
        %v3894 = vsel %vm549, %v3889, %v3893
        %v3896 = vshrl.u32 %v3658, 16
        %v3898 = vrot.slane %v3896, 4
        %v3899 = vshll.u32 %v3658, 16
        %v3901 = vrot.slane %v3899, 5
        %v3902 = vor.u32 %v3898, %v3901
        %v3903 = vrot.slane %v3902, 4
        %v3905 = vshll.u32 %v3659, 16
        %v3907 = vrot.slane %v3905, 5
        %v3908 = vsel %vm549, %v3903, %v3907
        %v3909 = vshrl.u32 %v3659, 16
        %v3911 = vrot.slane %v3909, 4
        %v3912 = vor.u32 %v3911, %v3907
        %v3913 = vrot.slane %v3912, 4
        %v3915 = vshll.u32 %v3660, 16
        %v3917 = vrot.slane %v3915, 5
        %v3918 = vsel %vm549, %v3913, %v3917
        %v3920 = vshrl.u32 %v3661, 16
        %v3922 = vrot.slane %v3920, 4
        %v3923 = vshll.u32 %v3661, 16
        %v3925 = vrot.slane %v3923, 5
        %v3926 = vor.u32 %v3922, %v3925
        %v3927 = vrot.slane %v3926, 4
        %v3929 = vshll.u32 %v3662, 16
        %v3931 = vrot.slane %v3929, 5
        %v3932 = vsel %vm549, %v3927, %v3931
        %v3933 = vshrl.u32 %v3662, 16
        %v3935 = vrot.slane %v3933, 4
        %v3936 = vor.u32 %v3935, %v3931
        %v3937 = vrot.slane %v3936, 4
        %v3939 = vshll.u32 %v3663, 16
        %v3941 = vrot.slane %v3939, 5
        %v3942 = vsel %vm549, %v3937, %v3941
        %v3944 = vshrl.u32 %v3664, 16
        %v3946 = vrot.slane %v3944, 4
        %v3947 = vshll.u32 %v3664, 16
        %v3949 = vrot.slane %v3947, 5
        %v3950 = vor.u32 %v3946, %v3949
        %v3951 = vrot.slane %v3950, 4
        %v3953 = vshll.u32 %v3665, 16
        %v3955 = vrot.slane %v3953, 5
        %v3956 = vsel %vm549, %v3951, %v3955
        %v3957 = vshrl.u32 %v3665, 16
        %v3959 = vrot.slane %v3957, 4
        %v3960 = vor.u32 %v3959, %v3955
        %v3961 = vrot.slane %v3960, 4
        %v3963 = vshll.u32 %v3666, 16
        %v3965 = vrot.slane %v3963, 5
        %v3966 = vsel %vm549, %v3961, %v3965
        %v3968 = vshrl.u32 %v3667, 16
        %v3970 = vrot.slane %v3968, 4
        %v3971 = vshll.u32 %v3667, 16
        %v3973 = vrot.slane %v3971, 5
        %v3974 = vor.u32 %v3970, %v3973
        %v3975 = vrot.slane %v3974, 4
        %v3977 = vshll.u32 %v3668, 16
        %v3979 = vrot.slane %v3977, 5
        %v3980 = vsel %vm549, %v3975, %v3979
        %v3981 = vshrl.u32 %v3668, 16
        %v3983 = vrot.slane %v3981, 4
        %v3984 = vor.u32 %v3983, %v3979
        %v3985 = vrot.slane %v3984, 4
        %v3987 = vshll.u32 %v3669, 16
        %v3989 = vrot.slane %v3987, 5
        %v3990 = vsel %vm549, %v3985, %v3989
        %v3992 = vshrl.u32 %v3670, 16
        %v3994 = vrot.slane %v3992, 4
        %v3995 = vshll.u32 %v3670, 16
        %v3997 = vrot.slane %v3995, 5
        %v3998 = vor.u32 %v3994, %v3997
        %v3999 = vrot.slane %v3998, 4
        %v4001 = vshll.u32 %v3671, 16
        %v4003 = vrot.slane %v4001, 5
        %v4004 = vsel %vm549, %v3999, %v4003
        %v4005 = vshrl.u32 %v3671, 16
        %v4007 = vrot.slane %v4005, 4
        %v4008 = vor.u32 %v4007, %v4003
        %v4009 = vrot.slane %v4008, 4
        %v4011 = vshll.u32 %v3672, 16
        %v4013 = vrot.slane %v4011, 5
        %v4014 = vsel %vm549, %v4009, %v4013
        %v4016 = vshrl.u32 %v3673, 16
        %v4018 = vrot.slane %v4016, 4
        %v4019 = vshll.u32 %v3673, 16
        %v4021 = vrot.slane %v4019, 5
        %v4022 = vor.u32 %v4018, %v4021
        %v4023 = vrot.slane %v4022, 4
        %v4025 = vshll.u32 %v3674, 16
        %v4027 = vrot.slane %v4025, 5
        %v4028 = vsel %vm549, %v4023, %v4027
        %v4029 = vshrl.u32 %v3674, 16
        %v4031 = vrot.slane %v4029, 4
        %v4032 = vor.u32 %v4031, %v4027
        %v4033 = vrot.slane %v4032, 4
        %v4035 = vshll.u32 %v3675, 16
        %v4037 = vrot.slane %v4035, 5
        %v4038 = vsel %vm549, %v4033, %v4037
        %v4040 = vshrl.u32 %v3676, 16
        %v4042 = vrot.slane %v4040, 4
        %v4043 = vshll.u32 %v3676, 16
        %v4045 = vrot.slane %v4043, 5
        %v4046 = vor.u32 %v4042, %v4045
        %v4047 = vrot.slane %v4046, 4
        %v4049 = vshll.u32 %v3677, 16
        %v4051 = vrot.slane %v4049, 5
        %v4052 = vsel %vm549, %v4047, %v4051
        %v4053 = vshrl.u32 %v3677, 16
        %v4055 = vrot.slane %v4053, 4
        %v4056 = vor.u32 %v4055, %v4051
        %v4057 = vrot.slane %v4056, 4
        %v4059 = vshll.u32 %v3678, 16
        %v4061 = vrot.slane %v4059, 5
        %v4062 = vsel %vm549, %v4057, %v4061
        %s4063 = scalar_lea.vmem %s1, 14
        %v4064 = vld [vmem:[%s4063] sm:$0x3]
        %v4065 = vunpack.c.l.b16 %v3692
        %v4066 = vunpack.c.l.b16 %v3702
        %v4067 = vunpack.c.l.b16 %v3716
        %v4068 = vunpack.c.l.b16 %v3726
        %v4069 = vunpack.c.l.b16 %v3740
        %v4070 = vunpack.c.l.b16 %v3750
        %v4071 = vunpack.c.l.b16 %v3764
        %v4072 = vunpack.c.l.b16 %v3774
        %v4073 = vunpack.c.l.b16 %v3788
        %v4074 = vunpack.c.l.b16 %v3798
        %v4075 = vunpack.c.l.b16 %v3812
        %v4076 = vunpack.c.l.b16 %v3822
        %v4077 = vunpack.c.l.b16 %v3836
        %v4078 = vunpack.c.l.b16 %v3846
        %v4079 = vunpack.c.l.b16 %v3860
        %v4080 = vunpack.c.l.b16 %v3870
        %v4081 = vunpack.c.l.b16 %v3884
        %v4082 = vunpack.c.l.b16 %v3894
        %v4083 = vunpack.c.l.b16 %v3908
        %v4084 = vunpack.c.l.b16 %v3918
        %v4085 = vunpack.c.l.b16 %v3932
        %v4086 = vunpack.c.l.b16 %v3942
        %v4087 = vunpack.c.l.b16 %v3956
        %v4088 = vunpack.c.l.b16 %v3966
        %v4089 = vunpack.c.l.b16 %v3980
        %v4090 = vunpack.c.l.b16 %v3990
        %v4091 = vunpack.c.l.b16 %v4004
        %v4092 = vunpack.c.l.b16 %v4014
        %v4093 = vunpack.c.l.b16 %v4028
        %v4094 = vunpack.c.l.b16 %v4038
        %v4095 = vunpack.c.l.b16 %v4052
        %v4096 = vunpack.c.l.b16 %v4062
        %v4097 = vpack.c.b16 %v4066, %v4065
        %v4098 = vpack.c.b16 %v4068, %v4067
        %v4099 = vpack.c.b16 %v4070, %v4069
        %v4100 = vpack.c.b16 %v4072, %v4071
        %v4101 = vpack.c.b16 %v4074, %v4073
        %v4102 = vpack.c.b16 %v4076, %v4075
        %v4103 = vpack.c.b16 %v4078, %v4077
        %v4104 = vpack.c.b16 %v4080, %v4079
        %v4105 = vpack.c.b16 %v4082, %v4081
        %v4106 = vpack.c.b16 %v4084, %v4083
        %v4107 = vpack.c.b16 %v4086, %v4085
        %v4108 = vpack.c.b16 %v4088, %v4087
        %v4109 = vpack.c.b16 %v4090, %v4089
        %v4110 = vpack.c.b16 %v4092, %v4091
        %v4111 = vpack.c.b16 %v4094, %v4093
        %v4112 = vpack.c.b16 %v4096, %v4095
        %v4114 = vsel %vm325, %v4097, 0
        %v4117 = vsel %vm325, %v4098, 0
        %v4120 = vsel %vm325, %v4099, 0
        %v4123 = vsel %vm325, %v4100, 0
        %v4126 = vsel %vm325, %v4101, 0
        %v4129 = vsel %vm325, %v4102, 0
        %v4132 = vsel %vm325, %v4103, 0
        %v4135 = vsel %vm325, %v4104, 0
        %v4138 = vsel %vm325, %v4105, 0
        %v4141 = vsel %vm325, %v4106, 0
        %v4144 = vsel %vm325, %v4107, 0
        %v4147 = vsel %vm325, %v4108, 0
        %v4150 = vsel %vm325, %v4109, 0
        %v4153 = vsel %vm325, %v4110, 0
        %v4156 = vsel %vm325, %v4111, 0
        %v4159 = vsel %vm325, %v4112, 0
        %v4162 = vsel %vm374, %v4064, 0
        %4164 = vmatpush.bf16.msra.mxu0 0
        %4165 = vmatpush.bf16.msra.mxu0 0
        %4166 = vmatpush.bf16.msra.mxu0 0
        %4167 = vmatpush.bf16.msra.mxu0 0
        %4168 = vmatpush.bf16.msra.mxu0 0
        %4169 = vmatpush.bf16.msra.mxu0 0
        %4170 = vmatpush.bf16.msra.mxu0 0
        %4171 = vmatpush.bf16.msra.mxu0 %v4162
        %4172 = vmatmul.bf16.gmra.mxu0 %v4114
        %v4173 = vpop.f32.mrf.mxu0
        %v4174 = vadd.f32 0.0, %v4173
        %v4175 = vpop.f32.mrf.mxu0
        %v4176 = vadd.f32 0.0, %v4175
        %4177 = vmatmul.bf16.gmra.mxu0 %v4117
        %v4178 = vpop.f32.mrf.mxu0
        %v4179 = vadd.f32 0.0, %v4178
        %v4180 = vpop.f32.mrf.mxu0
        %v4181 = vadd.f32 0.0, %v4180
        %4182 = vmatmul.bf16.gmra.mxu0 %v4120
        %v4183 = vpop.f32.mrf.mxu0
        %v4184 = vadd.f32 0.0, %v4183
        %v4185 = vpop.f32.mrf.mxu0
        %v4186 = vadd.f32 0.0, %v4185
        %4187 = vmatmul.bf16.gmra.mxu0 %v4123
        %v4188 = vpop.f32.mrf.mxu0
        %v4189 = vadd.f32 0.0, %v4188
        %v4190 = vpop.f32.mrf.mxu0
        %v4191 = vadd.f32 0.0, %v4190
        %4192 = vmatmul.bf16.gmra.mxu0 %v4126
        %v4193 = vpop.f32.mrf.mxu0
        %v4194 = vadd.f32 0.0, %v4193
        %v4195 = vpop.f32.mrf.mxu0
        %v4196 = vadd.f32 0.0, %v4195
        %4197 = vmatmul.bf16.gmra.mxu0 %v4129
        %v4198 = vpop.f32.mrf.mxu0
        %v4199 = vadd.f32 0.0, %v4198
        %v4200 = vpop.f32.mrf.mxu0
        %v4201 = vadd.f32 0.0, %v4200
        %4202 = vmatmul.bf16.gmra.mxu0 %v4132
        %v4203 = vpop.f32.mrf.mxu0
        %v4204 = vadd.f32 0.0, %v4203
        %v4205 = vpop.f32.mrf.mxu0
        %v4206 = vadd.f32 0.0, %v4205
        %4207 = vmatmul.bf16.gmra.mxu0 %v4135
        %v4208 = vpop.f32.mrf.mxu0
        %v4209 = vadd.f32 0.0, %v4208
        %v4210 = vpop.f32.mrf.mxu0
        %v4211 = vadd.f32 0.0, %v4210
        %4212 = vmatmul.bf16.gmra.mxu0 %v4138
        %v4213 = vpop.f32.mrf.mxu0
        %v4214 = vadd.f32 0.0, %v4213
        %v4215 = vpop.f32.mrf.mxu0
        %v4216 = vadd.f32 0.0, %v4215
        %4217 = vmatmul.bf16.gmra.mxu0 %v4141
        %v4218 = vpop.f32.mrf.mxu0
        %v4219 = vadd.f32 0.0, %v4218
        %v4220 = vpop.f32.mrf.mxu0
        %v4221 = vadd.f32 0.0, %v4220
        %4222 = vmatmul.bf16.gmra.mxu0 %v4144
        %v4223 = vpop.f32.mrf.mxu0
        %v4224 = vadd.f32 0.0, %v4223
        %v4225 = vpop.f32.mrf.mxu0
        %v4226 = vadd.f32 0.0, %v4225
        %4227 = vmatmul.bf16.gmra.mxu0 %v4147
        %v4228 = vpop.f32.mrf.mxu0
        %v4229 = vadd.f32 0.0, %v4228
        %v4230 = vpop.f32.mrf.mxu0
        %v4231 = vadd.f32 0.0, %v4230
        %4232 = vmatmul.bf16.gmra.mxu0 %v4150
        %v4233 = vpop.f32.mrf.mxu0
        %v4234 = vadd.f32 0.0, %v4233
        %v4235 = vpop.f32.mrf.mxu0
        %v4236 = vadd.f32 0.0, %v4235
        %4237 = vmatmul.bf16.gmra.mxu0 %v4153
        %v4238 = vpop.f32.mrf.mxu0
        %v4239 = vadd.f32 0.0, %v4238
        %v4240 = vpop.f32.mrf.mxu0
        %v4241 = vadd.f32 0.0, %v4240
        %4242 = vmatmul.bf16.gmra.mxu0 %v4156
        %v4243 = vpop.f32.mrf.mxu0
        %v4244 = vadd.f32 0.0, %v4243
        %v4245 = vpop.f32.mrf.mxu0
        %v4246 = vadd.f32 0.0, %v4245
        %4247 = vmatmul.bf16.gmra.mxu0 %v4159
        %v4248 = vpop.f32.mrf.mxu0
        %v4249 = vadd.f32 0.0, %v4248
        %v4250 = vpop.f32.mrf.mxu0
        %v4251 = vadd.f32 0.0, %v4250
        %4252 = vdwg.mxu0
        %v4253 = vld [vmem:[#allocation2] sm:$0xff]
        %v4254 = vld [vmem:[#allocation2 + $0x8] sm:$0xff]
        %v4255 = vld [vmem:[#allocation2 + $0x10] sm:$0xff]
        %v4256 = vld [vmem:[#allocation2 + $0x18] sm:$0xff]
        %v4257 = vld [vmem:[#allocation2 + $0x20] sm:$0xff]
        %v4258 = vld [vmem:[#allocation2 + $0x28] sm:$0xff]
        %v4259 = vld [vmem:[#allocation2 + $0x30] sm:$0xff]
        %v4260 = vld [vmem:[#allocation2 + $0x38] sm:$0xff]
        %v4261 = vld [vmem:[#allocation2 + $0x40] sm:$0xff]
        %v4262 = vld [vmem:[#allocation2 + $0x48] sm:$0xff]
        %v4263 = vld [vmem:[#allocation2 + $0x50] sm:$0xff]
        %v4264 = vld [vmem:[#allocation2 + $0x58] sm:$0xff]
        %v4265 = vld [vmem:[#allocation2 + $0x60] sm:$0xff]
        %v4266 = vld [vmem:[#allocation2 + $0x68] sm:$0xff]
        %v4267 = vld [vmem:[#allocation2 + $0x70] sm:$0xff]
        %v4268 = vld [vmem:[#allocation2 + $0x78] sm:$0xff]
        %v4269 = vld [vmem:[#allocation2 + $0x80] sm:$0xff]
        %v4270 = vld [vmem:[#allocation2 + $0x88] sm:$0xff]
        %v4271 = vld [vmem:[#allocation2 + $0x90] sm:$0xff]
        %v4272 = vld [vmem:[#allocation2 + $0x98] sm:$0xff]
        %v4273 = vld [vmem:[#allocation2 + $0xa0] sm:$0xff]
        %v4274 = vld [vmem:[#allocation2 + $0xa8] sm:$0xff]
        %v4275 = vld [vmem:[#allocation2 + $0xb0] sm:$0xff]
        %v4276 = vld [vmem:[#allocation2 + $0xb8] sm:$0xff]
        %v4277 = vld [vmem:[#allocation2 + $0xc0] sm:$0xff]
        %v4278 = vld [vmem:[#allocation2 + $0xc8] sm:$0xff]
        %v4279 = vld [vmem:[#allocation2 + $0xd0] sm:$0xff]
        %v4280 = vld [vmem:[#allocation2 + $0xd8] sm:$0xff]
        %v4281 = vld [vmem:[#allocation2 + $0xe0] sm:$0xff]
        %v4282 = vld [vmem:[#allocation2 + $0xe8] sm:$0xff]
        %v4283 = vld [vmem:[#allocation2 + $0xf0] sm:$0xff]
        %v4284 = vld [vmem:[#allocation2 + $0xf8] sm:$0xff]
        %v4285 = vadd.f32 %v4253, %v4174
        %v4286 = vadd.f32 %v4254, %v4176
        %v4287 = vadd.f32 %v4255, %v4179
        %v4288 = vadd.f32 %v4256, %v4181
        %v4289 = vadd.f32 %v4257, %v4184
        %v4290 = vadd.f32 %v4258, %v4186
        %v4291 = vadd.f32 %v4259, %v4189
        %v4292 = vadd.f32 %v4260, %v4191
        %v4293 = vadd.f32 %v4261, %v4194
        %v4294 = vadd.f32 %v4262, %v4196
        %v4295 = vadd.f32 %v4263, %v4199
        %v4296 = vadd.f32 %v4264, %v4201
        %v4297 = vadd.f32 %v4265, %v4204
        %v4298 = vadd.f32 %v4266, %v4206
        %v4299 = vadd.f32 %v4267, %v4209
        %v4300 = vadd.f32 %v4268, %v4211
        %v4301 = vadd.f32 %v4269, %v4214
        %v4302 = vadd.f32 %v4270, %v4216
        %v4303 = vadd.f32 %v4271, %v4219
        %v4304 = vadd.f32 %v4272, %v4221
        %v4305 = vadd.f32 %v4273, %v4224
        %v4306 = vadd.f32 %v4274, %v4226
        %v4307 = vadd.f32 %v4275, %v4229
        %v4308 = vadd.f32 %v4276, %v4231
        %v4309 = vadd.f32 %v4277, %v4234
        %v4310 = vadd.f32 %v4278, %v4236
        %v4311 = vadd.f32 %v4279, %v4239
        %v4312 = vadd.f32 %v4280, %v4241
        %v4313 = vadd.f32 %v4281, %v4244
        %v4314 = vadd.f32 %v4282, %v4246
        %v4315 = vadd.f32 %v4283, %v4249
        %v4316 = vadd.f32 %v4284, %v4251
        %4317 = vst [vmem:[#allocation2] sm:$0xff] %v4285
        %4318 = vst [vmem:[#allocation2 + $0x8] sm:$0xff] %v4286
        %4319 = vst [vmem:[#allocation2 + $0x10] sm:$0xff] %v4287
        %4320 = vst [vmem:[#allocation2 + $0x18] sm:$0xff] %v4288
        %4321 = vst [vmem:[#allocation2 + $0x20] sm:$0xff] %v4289
        %4322 = vst [vmem:[#allocation2 + $0x28] sm:$0xff] %v4290
        %4323 = vst [vmem:[#allocation2 + $0x30] sm:$0xff] %v4291
        %4324 = vst [vmem:[#allocation2 + $0x38] sm:$0xff] %v4292
        %4325 = vst [vmem:[#allocation2 + $0x40] sm:$0xff] %v4293
        %4326 = vst [vmem:[#allocation2 + $0x48] sm:$0xff] %v4294
        %4327 = vst [vmem:[#allocation2 + $0x50] sm:$0xff] %v4295
        %4328 = vst [vmem:[#allocation2 + $0x58] sm:$0xff] %v4296
        %4329 = vst [vmem:[#allocation2 + $0x60] sm:$0xff] %v4297
        %4330 = vst [vmem:[#allocation2 + $0x68] sm:$0xff] %v4298
        %4331 = vst [vmem:[#allocation2 + $0x70] sm:$0xff] %v4299
        %4332 = vst [vmem:[#allocation2 + $0x78] sm:$0xff] %v4300
        %4333 = vst [vmem:[#allocation2 + $0x80] sm:$0xff] %v4301
        %4334 = vst [vmem:[#allocation2 + $0x88] sm:$0xff] %v4302
        %4335 = vst [vmem:[#allocation2 + $0x90] sm:$0xff] %v4303
        %4336 = vst [vmem:[#allocation2 + $0x98] sm:$0xff] %v4304
        %4337 = vst [vmem:[#allocation2 + $0xa0] sm:$0xff] %v4305
        %4338 = vst [vmem:[#allocation2 + $0xa8] sm:$0xff] %v4306
        %4339 = vst [vmem:[#allocation2 + $0xb0] sm:$0xff] %v4307
        %4340 = vst [vmem:[#allocation2 + $0xb8] sm:$0xff] %v4308
        %4341 = vst [vmem:[#allocation2 + $0xc0] sm:$0xff] %v4309
        %4342 = vst [vmem:[#allocation2 + $0xc8] sm:$0xff] %v4310
        %4343 = vst [vmem:[#allocation2 + $0xd0] sm:$0xff] %v4311
        %4344 = vst [vmem:[#allocation2 + $0xd8] sm:$0xff] %v4312
        %4345 = vst [vmem:[#allocation2 + $0xe0] sm:$0xff] %v4313
        %4346 = vst [vmem:[#allocation2 + $0xe8] sm:$0xff] %v4314
        %4347 = vst [vmem:[#allocation2 + $0xf0] sm:$0xff] %v4315
        %4348 = vst [vmem:[#allocation2 + $0xf8] sm:$0xff] %v4316
        %v4349 = vld [vmem:[%s3280] sm:$0xe]
        %v4350 = vld [vmem:[%s3280 + $0x4] sm:$0xf]
        %v4351 = vld [vmem:[%s3280 + $0x8] sm:$0x1]
        %v4352 = vld [vmem:[%s3280 + $0xc] sm:$0xe]
        %v4353 = vld [vmem:[%s3280 + $0x10] sm:$0xf]
        %v4354 = vld [vmem:[%s3280 + $0x14] sm:$0x1]
        %v4355 = vld [vmem:[%s3280 + $0x18] sm:$0xe]
        %v4356 = vld [vmem:[%s3280 + $0x1c] sm:$0xf]
        %v4357 = vld [vmem:[%s3280 + $0x20] sm:$0x1]
        %v4358 = vld [vmem:[%s3280 + $0x24] sm:$0xe]
        %v4359 = vld [vmem:[%s3280 + $0x28] sm:$0xf]
        %v4360 = vld [vmem:[%s3280 + $0x2c] sm:$0x1]
        %v4361 = vld [vmem:[%s3280 + $0x30] sm:$0xe]
        %v4362 = vld [vmem:[%s3280 + $0x34] sm:$0xf]
        %v4363 = vld [vmem:[%s3280 + $0x38] sm:$0x1]
        %v4364 = vld [vmem:[%s3280 + $0x3c] sm:$0xe]
        %v4365 = vld [vmem:[%s3280 + $0x40] sm:$0xf]
        %v4366 = vld [vmem:[%s3280 + $0x44] sm:$0x1]
        %v4367 = vld [vmem:[%s3280 + $0x48] sm:$0xe]
        %v4368 = vld [vmem:[%s3280 + $0x4c] sm:$0xf]
        %v4369 = vld [vmem:[%s3280 + $0x50] sm:$0x1]
        %v4370 = vld [vmem:[%s3280 + $0x54] sm:$0xe]
        %v4371 = vld [vmem:[%s3280 + $0x58] sm:$0xf]
        %v4372 = vld [vmem:[%s3280 + $0x5c] sm:$0x1]
        %v4373 = vld [vmem:[%s3280 + $0x60] sm:$0xe]
        %v4374 = vld [vmem:[%s3280 + $0x64] sm:$0xf]
        %v4375 = vld [vmem:[%s3280 + $0x68] sm:$0x1]
        %v4376 = vld [vmem:[%s3280 + $0x6c] sm:$0xe]
        %v4377 = vld [vmem:[%s3280 + $0x70] sm:$0xf]
        %v4378 = vld [vmem:[%s3280 + $0x74] sm:$0x1]
        %v4379 = vld [vmem:[%s3280 + $0x78] sm:$0xe]
        %v4380 = vld [vmem:[%s3280 + $0x7c] sm:$0xf]
        %v4381 = vld [vmem:[%s3280 + $0x80] sm:$0x1]
        %v4382 = vld [vmem:[%s3280 + $0x84] sm:$0xe]
        %v4383 = vld [vmem:[%s3280 + $0x88] sm:$0xf]
        %v4384 = vld [vmem:[%s3280 + $0x8c] sm:$0x1]
        %v4385 = vld [vmem:[%s3280 + $0x90] sm:$0xe]
        %v4386 = vld [vmem:[%s3280 + $0x94] sm:$0xf]
        %v4387 = vld [vmem:[%s3280 + $0x98] sm:$0x1]
        %v4388 = vld [vmem:[%s3280 + $0x9c] sm:$0xe]
        %v4389 = vld [vmem:[%s3280 + $0xa0] sm:$0xf]
        %v4390 = vld [vmem:[%s3280 + $0xa4] sm:$0x1]
        %v4391 = vld [vmem:[%s3280 + $0xa8] sm:$0xe]
        %v4392 = vld [vmem:[%s3280 + $0xac] sm:$0xf]
        %v4393 = vld [vmem:[%s3280 + $0xb0] sm:$0x1]
        %v4394 = vld [vmem:[%s3280 + $0xb4] sm:$0xe]
        %v4395 = vld [vmem:[%s3280 + $0xb8] sm:$0xf]
        %v4396 = vld [vmem:[%s3280 + $0xbc] sm:$0x1]
        %v4445 = vrot.slane %v4349, 5
        %v4446 = vrot.slane %v4445, 4
        %v4447 = vrot.slane %v4350, 5
        %v4448 = vsel %vm1318, %v4446, %v4447
        %v4449 = vrot.slane %v4447, 4
        %v4450 = vrot.slane %v4351, 5
        %v4451 = vsel %vm1318, %v4449, %v4450
        %v4452 = vrot.slane %v4352, 5
        %v4453 = vrot.slane %v4452, 4
        %v4454 = vrot.slane %v4353, 5
        %v4455 = vsel %vm1318, %v4453, %v4454
        %v4456 = vrot.slane %v4454, 4
        %v4457 = vrot.slane %v4354, 5
        %v4458 = vsel %vm1318, %v4456, %v4457
        %v4459 = vrot.slane %v4355, 5
        %v4460 = vrot.slane %v4459, 4
        %v4461 = vrot.slane %v4356, 5
        %v4462 = vsel %vm1318, %v4460, %v4461
        %v4463 = vrot.slane %v4461, 4
        %v4464 = vrot.slane %v4357, 5
        %v4465 = vsel %vm1318, %v4463, %v4464
        %v4466 = vrot.slane %v4358, 5
        %v4467 = vrot.slane %v4466, 4
        %v4468 = vrot.slane %v4359, 5
        %v4469 = vsel %vm1318, %v4467, %v4468
        %v4470 = vrot.slane %v4468, 4
        %v4471 = vrot.slane %v4360, 5
        %v4472 = vsel %vm1318, %v4470, %v4471
        %v4473 = vrot.slane %v4361, 5
        %v4474 = vrot.slane %v4473, 4
        %v4475 = vrot.slane %v4362, 5
        %v4476 = vsel %vm1318, %v4474, %v4475
        %v4477 = vrot.slane %v4475, 4
        %v4478 = vrot.slane %v4363, 5
        %v4479 = vsel %vm1318, %v4477, %v4478
        %v4480 = vrot.slane %v4364, 5
        %v4481 = vrot.slane %v4480, 4
        %v4482 = vrot.slane %v4365, 5
        %v4483 = vsel %vm1318, %v4481, %v4482
        %v4484 = vrot.slane %v4482, 4
        %v4485 = vrot.slane %v4366, 5
        %v4486 = vsel %vm1318, %v4484, %v4485
        %v4487 = vrot.slane %v4367, 5
        %v4488 = vrot.slane %v4487, 4
        %v4489 = vrot.slane %v4368, 5
        %v4490 = vsel %vm1318, %v4488, %v4489
        %v4491 = vrot.slane %v4489, 4
        %v4492 = vrot.slane %v4369, 5
        %v4493 = vsel %vm1318, %v4491, %v4492
        %v4494 = vrot.slane %v4370, 5
        %v4495 = vrot.slane %v4494, 4
        %v4496 = vrot.slane %v4371, 5
        %v4497 = vsel %vm1318, %v4495, %v4496
        %v4498 = vrot.slane %v4496, 4
        %v4499 = vrot.slane %v4372, 5
        %v4500 = vsel %vm1318, %v4498, %v4499
        %v4501 = vrot.slane %v4373, 5
        %v4502 = vrot.slane %v4501, 4
        %v4503 = vrot.slane %v4374, 5
        %v4504 = vsel %vm1318, %v4502, %v4503
        %v4505 = vrot.slane %v4503, 4
        %v4506 = vrot.slane %v4375, 5
        %v4507 = vsel %vm1318, %v4505, %v4506
        %v4508 = vrot.slane %v4376, 5
        %v4509 = vrot.slane %v4508, 4
        %v4510 = vrot.slane %v4377, 5
        %v4511 = vsel %vm1318, %v4509, %v4510
        %v4512 = vrot.slane %v4510, 4
        %v4513 = vrot.slane %v4378, 5
        %v4514 = vsel %vm1318, %v4512, %v4513
        %v4515 = vrot.slane %v4379, 5
        %v4516 = vrot.slane %v4515, 4
        %v4517 = vrot.slane %v4380, 5
        %v4518 = vsel %vm1318, %v4516, %v4517
        %v4519 = vrot.slane %v4517, 4
        %v4520 = vrot.slane %v4381, 5
        %v4521 = vsel %vm1318, %v4519, %v4520
        %v4522 = vrot.slane %v4382, 5
        %v4523 = vrot.slane %v4522, 4
        %v4524 = vrot.slane %v4383, 5
        %v4525 = vsel %vm1318, %v4523, %v4524
        %v4526 = vrot.slane %v4524, 4
        %v4527 = vrot.slane %v4384, 5
        %v4528 = vsel %vm1318, %v4526, %v4527
        %v4529 = vrot.slane %v4385, 5
        %v4530 = vrot.slane %v4529, 4
        %v4531 = vrot.slane %v4386, 5
        %v4532 = vsel %vm1318, %v4530, %v4531
        %v4533 = vrot.slane %v4531, 4
        %v4534 = vrot.slane %v4387, 5
        %v4535 = vsel %vm1318, %v4533, %v4534
        %v4536 = vrot.slane %v4388, 5
        %v4537 = vrot.slane %v4536, 4
        %v4538 = vrot.slane %v4389, 5
        %v4539 = vsel %vm1318, %v4537, %v4538
        %v4540 = vrot.slane %v4538, 4
        %v4541 = vrot.slane %v4390, 5
        %v4542 = vsel %vm1318, %v4540, %v4541
        %v4543 = vrot.slane %v4391, 5
        %v4544 = vrot.slane %v4543, 4
        %v4545 = vrot.slane %v4392, 5
        %v4546 = vsel %vm1318, %v4544, %v4545
        %v4547 = vrot.slane %v4545, 4
        %v4548 = vrot.slane %v4393, 5
        %v4549 = vsel %vm1318, %v4547, %v4548
        %v4550 = vrot.slane %v4394, 5
        %v4551 = vrot.slane %v4550, 4
        %v4552 = vrot.slane %v4395, 5
        %v4553 = vsel %vm1318, %v4551, %v4552
        %v4554 = vrot.slane %v4552, 4
        %v4555 = vrot.slane %v4396, 5
        %v4556 = vsel %vm1318, %v4554, %v4555
        %s4557 = scalar_lea.vmem %s1, 16
        %v4558 = vld [vmem:[%s4557] sm:$0x3]
        %v4559 = vunpack.c.l.b16 %v4448
        %v4560 = vunpack.c.l.b16 %v4451
        %v4561 = vunpack.c.l.b16 %v4455
        %v4562 = vunpack.c.l.b16 %v4458
        %v4563 = vunpack.c.l.b16 %v4462
        %v4564 = vunpack.c.l.b16 %v4465
        %v4565 = vunpack.c.l.b16 %v4469
        %v4566 = vunpack.c.l.b16 %v4472
        %v4567 = vunpack.c.l.b16 %v4476
        %v4568 = vunpack.c.l.b16 %v4479
        %v4569 = vunpack.c.l.b16 %v4483
        %v4570 = vunpack.c.l.b16 %v4486
        %v4571 = vunpack.c.l.b16 %v4490
        %v4572 = vunpack.c.l.b16 %v4493
        %v4573 = vunpack.c.l.b16 %v4497
        %v4574 = vunpack.c.l.b16 %v4500
        %v4575 = vunpack.c.l.b16 %v4504
        %v4576 = vunpack.c.l.b16 %v4507
        %v4577 = vunpack.c.l.b16 %v4511
        %v4578 = vunpack.c.l.b16 %v4514
        %v4579 = vunpack.c.l.b16 %v4518
        %v4580 = vunpack.c.l.b16 %v4521
        %v4581 = vunpack.c.l.b16 %v4525
        %v4582 = vunpack.c.l.b16 %v4528
        %v4583 = vunpack.c.l.b16 %v4532
        %v4584 = vunpack.c.l.b16 %v4535
        %v4585 = vunpack.c.l.b16 %v4539
        %v4586 = vunpack.c.l.b16 %v4542
        %v4587 = vunpack.c.l.b16 %v4546
        %v4588 = vunpack.c.l.b16 %v4549
        %v4589 = vunpack.c.l.b16 %v4553
        %v4590 = vunpack.c.l.b16 %v4556
        %v4591 = vpack.c.b16 %v4560, %v4559
        %v4592 = vpack.c.b16 %v4562, %v4561
        %v4593 = vpack.c.b16 %v4564, %v4563
        %v4594 = vpack.c.b16 %v4566, %v4565
        %v4595 = vpack.c.b16 %v4568, %v4567
        %v4596 = vpack.c.b16 %v4570, %v4569
        %v4597 = vpack.c.b16 %v4572, %v4571
        %v4598 = vpack.c.b16 %v4574, %v4573
        %v4599 = vpack.c.b16 %v4576, %v4575
        %v4600 = vpack.c.b16 %v4578, %v4577
        %v4601 = vpack.c.b16 %v4580, %v4579
        %v4602 = vpack.c.b16 %v4582, %v4581
        %v4603 = vpack.c.b16 %v4584, %v4583
        %v4604 = vpack.c.b16 %v4586, %v4585
        %v4605 = vpack.c.b16 %v4588, %v4587
        %v4606 = vpack.c.b16 %v4590, %v4589
        %v4608 = vsel %vm325, %v4591, 0
        %v4611 = vsel %vm325, %v4592, 0
        %v4614 = vsel %vm325, %v4593, 0
        %v4617 = vsel %vm325, %v4594, 0
        %v4620 = vsel %vm325, %v4595, 0
        %v4623 = vsel %vm325, %v4596, 0
        %v4626 = vsel %vm325, %v4597, 0
        %v4629 = vsel %vm325, %v4598, 0
        %v4632 = vsel %vm325, %v4599, 0
        %v4635 = vsel %vm325, %v4600, 0
        %v4638 = vsel %vm325, %v4601, 0
        %v4641 = vsel %vm325, %v4602, 0
        %v4644 = vsel %vm325, %v4603, 0
        %v4647 = vsel %vm325, %v4604, 0
        %v4650 = vsel %vm325, %v4605, 0
        %v4653 = vsel %vm325, %v4606, 0
        %v4656 = vsel %vm374, %v4558, 0
        %4658 = vmatpush.bf16.msra.mxu0 0
        %4659 = vmatpush.bf16.msra.mxu0 0
        %4660 = vmatpush.bf16.msra.mxu0 0
        %4661 = vmatpush.bf16.msra.mxu0 0
        %4662 = vmatpush.bf16.msra.mxu0 0
        %4663 = vmatpush.bf16.msra.mxu0 0
        %4664 = vmatpush.bf16.msra.mxu0 0
        %4665 = vmatpush.bf16.msra.mxu0 %v4656
        %4666 = vmatmul.bf16.gmra.mxu0 %v4608
        %v4667 = vpop.f32.mrf.mxu0
        %v4668 = vadd.f32 0.0, %v4667
        %v4669 = vpop.f32.mrf.mxu0
        %v4670 = vadd.f32 0.0, %v4669
        %4671 = vmatmul.bf16.gmra.mxu0 %v4611
        %v4672 = vpop.f32.mrf.mxu0
        %v4673 = vadd.f32 0.0, %v4672
        %v4674 = vpop.f32.mrf.mxu0
        %v4675 = vadd.f32 0.0, %v4674
        %4676 = vmatmul.bf16.gmra.mxu0 %v4614
        %v4677 = vpop.f32.mrf.mxu0
        %v4678 = vadd.f32 0.0, %v4677
        %v4679 = vpop.f32.mrf.mxu0
        %v4680 = vadd.f32 0.0, %v4679
        %4681 = vmatmul.bf16.gmra.mxu0 %v4617
        %v4682 = vpop.f32.mrf.mxu0
        %v4683 = vadd.f32 0.0, %v4682
        %v4684 = vpop.f32.mrf.mxu0
        %v4685 = vadd.f32 0.0, %v4684
        %4686 = vmatmul.bf16.gmra.mxu0 %v4620
        %v4687 = vpop.f32.mrf.mxu0
        %v4688 = vadd.f32 0.0, %v4687
        %v4689 = vpop.f32.mrf.mxu0
        %v4690 = vadd.f32 0.0, %v4689
        %4691 = vmatmul.bf16.gmra.mxu0 %v4623
        %v4692 = vpop.f32.mrf.mxu0
        %v4693 = vadd.f32 0.0, %v4692
        %v4694 = vpop.f32.mrf.mxu0
        %v4695 = vadd.f32 0.0, %v4694
        %4696 = vmatmul.bf16.gmra.mxu0 %v4626
        %v4697 = vpop.f32.mrf.mxu0
        %v4698 = vadd.f32 0.0, %v4697
        %v4699 = vpop.f32.mrf.mxu0
        %v4700 = vadd.f32 0.0, %v4699
        %4701 = vmatmul.bf16.gmra.mxu0 %v4629
        %v4702 = vpop.f32.mrf.mxu0
        %v4703 = vadd.f32 0.0, %v4702
        %v4704 = vpop.f32.mrf.mxu0
        %v4705 = vadd.f32 0.0, %v4704
        %4706 = vmatmul.bf16.gmra.mxu0 %v4632
        %v4707 = vpop.f32.mrf.mxu0
        %v4708 = vadd.f32 0.0, %v4707
        %v4709 = vpop.f32.mrf.mxu0
        %v4710 = vadd.f32 0.0, %v4709
        %4711 = vmatmul.bf16.gmra.mxu0 %v4635
        %v4712 = vpop.f32.mrf.mxu0
        %v4713 = vadd.f32 0.0, %v4712
        %v4714 = vpop.f32.mrf.mxu0
        %v4715 = vadd.f32 0.0, %v4714
        %4716 = vmatmul.bf16.gmra.mxu0 %v4638
        %v4717 = vpop.f32.mrf.mxu0
        %v4718 = vadd.f32 0.0, %v4717
        %v4719 = vpop.f32.mrf.mxu0
        %v4720 = vadd.f32 0.0, %v4719
        %4721 = vmatmul.bf16.gmra.mxu0 %v4641
        %v4722 = vpop.f32.mrf.mxu0
        %v4723 = vadd.f32 0.0, %v4722
        %v4724 = vpop.f32.mrf.mxu0
        %v4725 = vadd.f32 0.0, %v4724
        %4726 = vmatmul.bf16.gmra.mxu0 %v4644
        %v4727 = vpop.f32.mrf.mxu0
        %v4728 = vadd.f32 0.0, %v4727
        %v4729 = vpop.f32.mrf.mxu0
        %v4730 = vadd.f32 0.0, %v4729
        %4731 = vmatmul.bf16.gmra.mxu0 %v4647
        %v4732 = vpop.f32.mrf.mxu0
        %v4733 = vadd.f32 0.0, %v4732
        %v4734 = vpop.f32.mrf.mxu0
        %v4735 = vadd.f32 0.0, %v4734
        %4736 = vmatmul.bf16.gmra.mxu0 %v4650
        %v4737 = vpop.f32.mrf.mxu0
        %v4738 = vadd.f32 0.0, %v4737
        %v4739 = vpop.f32.mrf.mxu0
        %v4740 = vadd.f32 0.0, %v4739
        %4741 = vmatmul.bf16.gmra.mxu0 %v4653
        %v4742 = vpop.f32.mrf.mxu0
        %v4743 = vadd.f32 0.0, %v4742
        %v4744 = vpop.f32.mrf.mxu0
        %v4745 = vadd.f32 0.0, %v4744
        %4746 = vdwg.mxu0
        %v4747 = vld [vmem:[#allocation2] sm:$0xff]
        %v4748 = vld [vmem:[#allocation2 + $0x8] sm:$0xff]
        %v4749 = vld [vmem:[#allocation2 + $0x10] sm:$0xff]
        %v4750 = vld [vmem:[#allocation2 + $0x18] sm:$0xff]
        %v4751 = vld [vmem:[#allocation2 + $0x20] sm:$0xff]
        %v4752 = vld [vmem:[#allocation2 + $0x28] sm:$0xff]
        %v4753 = vld [vmem:[#allocation2 + $0x30] sm:$0xff]
        %v4754 = vld [vmem:[#allocation2 + $0x38] sm:$0xff]
        %v4755 = vld [vmem:[#allocation2 + $0x40] sm:$0xff]
        %v4756 = vld [vmem:[#allocation2 + $0x48] sm:$0xff]
        %v4757 = vld [vmem:[#allocation2 + $0x50] sm:$0xff]
        %v4758 = vld [vmem:[#allocation2 + $0x58] sm:$0xff]
        %v4759 = vld [vmem:[#allocation2 + $0x60] sm:$0xff]
        %v4760 = vld [vmem:[#allocation2 + $0x68] sm:$0xff]
        %v4761 = vld [vmem:[#allocation2 + $0x70] sm:$0xff]
        %v4762 = vld [vmem:[#allocation2 + $0x78] sm:$0xff]
        %v4763 = vld [vmem:[#allocation2 + $0x80] sm:$0xff]
        %v4764 = vld [vmem:[#allocation2 + $0x88] sm:$0xff]
        %v4765 = vld [vmem:[#allocation2 + $0x90] sm:$0xff]
        %v4766 = vld [vmem:[#allocation2 + $0x98] sm:$0xff]
        %v4767 = vld [vmem:[#allocation2 + $0xa0] sm:$0xff]
        %v4768 = vld [vmem:[#allocation2 + $0xa8] sm:$0xff]
        %v4769 = vld [vmem:[#allocation2 + $0xb0] sm:$0xff]
        %v4770 = vld [vmem:[#allocation2 + $0xb8] sm:$0xff]
        %v4771 = vld [vmem:[#allocation2 + $0xc0] sm:$0xff]
        %v4772 = vld [vmem:[#allocation2 + $0xc8] sm:$0xff]
        %v4773 = vld [vmem:[#allocation2 + $0xd0] sm:$0xff]
        %v4774 = vld [vmem:[#allocation2 + $0xd8] sm:$0xff]
        %v4775 = vld [vmem:[#allocation2 + $0xe0] sm:$0xff]
        %v4776 = vld [vmem:[#allocation2 + $0xe8] sm:$0xff]
        %v4777 = vld [vmem:[#allocation2 + $0xf0] sm:$0xff]
        %v4778 = vld [vmem:[#allocation2 + $0xf8] sm:$0xff]
        %v4779 = vadd.f32 %v4747, %v4668
        %v4780 = vadd.f32 %v4748, %v4670
        %v4781 = vadd.f32 %v4749, %v4673
        %v4782 = vadd.f32 %v4750, %v4675
        %v4783 = vadd.f32 %v4751, %v4678
        %v4784 = vadd.f32 %v4752, %v4680
        %v4785 = vadd.f32 %v4753, %v4683
        %v4786 = vadd.f32 %v4754, %v4685
        %v4787 = vadd.f32 %v4755, %v4688
        %v4788 = vadd.f32 %v4756, %v4690
        %v4789 = vadd.f32 %v4757, %v4693
        %v4790 = vadd.f32 %v4758, %v4695
        %v4791 = vadd.f32 %v4759, %v4698
        %v4792 = vadd.f32 %v4760, %v4700
        %v4793 = vadd.f32 %v4761, %v4703
        %v4794 = vadd.f32 %v4762, %v4705
        %v4795 = vadd.f32 %v4763, %v4708
        %v4796 = vadd.f32 %v4764, %v4710
        %v4797 = vadd.f32 %v4765, %v4713
        %v4798 = vadd.f32 %v4766, %v4715
        %v4799 = vadd.f32 %v4767, %v4718
        %v4800 = vadd.f32 %v4768, %v4720
        %v4801 = vadd.f32 %v4769, %v4723
        %v4802 = vadd.f32 %v4770, %v4725
        %v4803 = vadd.f32 %v4771, %v4728
        %v4804 = vadd.f32 %v4772, %v4730
        %v4805 = vadd.f32 %v4773, %v4733
        %v4806 = vadd.f32 %v4774, %v4735
        %v4807 = vadd.f32 %v4775, %v4738
        %v4808 = vadd.f32 %v4776, %v4740
        %v4809 = vadd.f32 %v4777, %v4743
        %v4810 = vadd.f32 %v4778, %v4745
        %4811 = vst [vmem:[#allocation2] sm:$0xff] %v4779
        %4812 = vst [vmem:[#allocation2 + $0x8] sm:$0xff] %v4780
        %4813 = vst [vmem:[#allocation2 + $0x10] sm:$0xff] %v4781
        %4814 = vst [vmem:[#allocation2 + $0x18] sm:$0xff] %v4782
        %4815 = vst [vmem:[#allocation2 + $0x20] sm:$0xff] %v4783
        %4816 = vst [vmem:[#allocation2 + $0x28] sm:$0xff] %v4784
        %4817 = vst [vmem:[#allocation2 + $0x30] sm:$0xff] %v4785
        %4818 = vst [vmem:[#allocation2 + $0x38] sm:$0xff] %v4786
        %4819 = vst [vmem:[#allocation2 + $0x40] sm:$0xff] %v4787
        %4820 = vst [vmem:[#allocation2 + $0x48] sm:$0xff] %v4788
        %4821 = vst [vmem:[#allocation2 + $0x50] sm:$0xff] %v4789
        %4822 = vst [vmem:[#allocation2 + $0x58] sm:$0xff] %v4790
        %4823 = vst [vmem:[#allocation2 + $0x60] sm:$0xff] %v4791
        %4824 = vst [vmem:[#allocation2 + $0x68] sm:$0xff] %v4792
        %4825 = vst [vmem:[#allocation2 + $0x70] sm:$0xff] %v4793
        %4826 = vst [vmem:[#allocation2 + $0x78] sm:$0xff] %v4794
        %4827 = vst [vmem:[#allocation2 + $0x80] sm:$0xff] %v4795
        %4828 = vst [vmem:[#allocation2 + $0x88] sm:$0xff] %v4796
        %4829 = vst [vmem:[#allocation2 + $0x90] sm:$0xff] %v4797
        %4830 = vst [vmem:[#allocation2 + $0x98] sm:$0xff] %v4798
        %4831 = vst [vmem:[#allocation2 + $0xa0] sm:$0xff] %v4799
        %4832 = vst [vmem:[#allocation2 + $0xa8] sm:$0xff] %v4800
        %4833 = vst [vmem:[#allocation2 + $0xb0] sm:$0xff] %v4801
        %4834 = vst [vmem:[#allocation2 + $0xb8] sm:$0xff] %v4802
        %4835 = vst [vmem:[#allocation2 + $0xc0] sm:$0xff] %v4803
        %4836 = vst [vmem:[#allocation2 + $0xc8] sm:$0xff] %v4804
        %4837 = vst [vmem:[#allocation2 + $0xd0] sm:$0xff] %v4805
        %4838 = vst [vmem:[#allocation2 + $0xd8] sm:$0xff] %v4806
        %4839 = vst [vmem:[#allocation2 + $0xe0] sm:$0xff] %v4807
        %4840 = vst [vmem:[#allocation2 + $0xe8] sm:$0xff] %v4808
        %4841 = vst [vmem:[#allocation2 + $0xf0] sm:$0xff] %v4809
        %4842 = vst [vmem:[#allocation2 + $0xf8] sm:$0xff] %v4810
        %v4843 = vld [vmem:[#allocation2] sm:$0xff]
        %v4844 = vld [vmem:[#allocation2 + $0x8] sm:$0xff]
        %v4845 = vld [vmem:[#allocation2 + $0x10] sm:$0xff]
        %v4846 = vld [vmem:[#allocation2 + $0x18] sm:$0xff]
        %v4847 = vld [vmem:[#allocation2 + $0x20] sm:$0xff]
        %v4848 = vld [vmem:[#allocation2 + $0x28] sm:$0xff]
        %v4849 = vld [vmem:[#allocation2 + $0x30] sm:$0xff]
        %v4850 = vld [vmem:[#allocation2 + $0x38] sm:$0xff]
        %v4851 = vld [vmem:[#allocation2 + $0x40] sm:$0xff]
        %v4852 = vld [vmem:[#allocation2 + $0x48] sm:$0xff]
        %v4853 = vld [vmem:[#allocation2 + $0x50] sm:$0xff]
        %v4854 = vld [vmem:[#allocation2 + $0x58] sm:$0xff]
        %v4855 = vld [vmem:[#allocation2 + $0x60] sm:$0xff]
        %v4856 = vld [vmem:[#allocation2 + $0x68] sm:$0xff]
        %v4857 = vld [vmem:[#allocation2 + $0x70] sm:$0xff]
        %v4858 = vld [vmem:[#allocation2 + $0x78] sm:$0xff]
        %v4859 = vld [vmem:[#allocation2 + $0x80] sm:$0xff]
        %v4860 = vld [vmem:[#allocation2 + $0x88] sm:$0xff]
        %v4861 = vld [vmem:[#allocation2 + $0x90] sm:$0xff]
        %v4862 = vld [vmem:[#allocation2 + $0x98] sm:$0xff]
        %v4863 = vld [vmem:[#allocation2 + $0xa0] sm:$0xff]
        %v4864 = vld [vmem:[#allocation2 + $0xa8] sm:$0xff]
        %v4865 = vld [vmem:[#allocation2 + $0xb0] sm:$0xff]
        %v4866 = vld [vmem:[#allocation2 + $0xb8] sm:$0xff]
        %v4867 = vld [vmem:[#allocation2 + $0xc0] sm:$0xff]
        %v4868 = vld [vmem:[#allocation2 + $0xc8] sm:$0xff]
        %v4869 = vld [vmem:[#allocation2 + $0xd0] sm:$0xff]
        %v4870 = vld [vmem:[#allocation2 + $0xd8] sm:$0xff]
        %v4871 = vld [vmem:[#allocation2 + $0xe0] sm:$0xff]
        %v4872 = vld [vmem:[#allocation2 + $0xe8] sm:$0xff]
        %v4873 = vld [vmem:[#allocation2 + $0xf0] sm:$0xff]
        %v4874 = vld [vmem:[#allocation2 + $0xf8] sm:$0xff]
        %p4875 = scmp.eq.s32.totalorder %s17, 0
        // Predicated region
        $region41: #{tpu_custom_call.1} parent=39 // pred_check
          %p4876 = pneg %p4875
        $region42: #{tpu_custom_call.1} parent=39 // pred_check_branch
          %4878 = sbr.rel (%p4876) target = $region44
        $region43: #{tpu_custom_call.1} parent=39 // pred_region
          %4879 = vst [vmem:[#allocation3] sm:$0x1] 0.0
          %4880 = vst [vmem:[#allocation4] sm:$0x1] 0.0
        $region44: #{tpu_custom_call.1} parent=39 // pred_fallthru
          _
        %v4881 = vld [vmem:[#allocation3] sm:$0x1]
        %v4882 = vadd.f32 %v4843, %v4844
        %v4883 = vadd.f32 %v4882, %v4845
        %v4884 = vadd.f32 %v4883, %v4846
        %v4885 = vadd.f32 %v4884, %v4847
        %v4886 = vadd.f32 %v4885, %v4848
        %v4887 = vadd.f32 %v4886, %v4849
        %v4888 = vadd.f32 %v4887, %v4850
        %v4889 = vadd.f32 %v4888, %v4851
        %v4890 = vadd.f32 %v4889, %v4852
        %v4891 = vadd.f32 %v4890, %v4853
        %v4892 = vadd.f32 %v4891, %v4854
        %v4893 = vadd.f32 %v4892, %v4855
        %v4894 = vadd.f32 %v4893, %v4856
        %v4895 = vadd.f32 %v4894, %v4857
        %v4896 = vadd.f32 %v4895, %v4858
        %v4897 = vadd.f32 %v4896, %v4859
        %v4898 = vadd.f32 %v4897, %v4860
        %v4899 = vadd.f32 %v4898, %v4861
        %v4900 = vadd.f32 %v4899, %v4862
        %v4901 = vadd.f32 %v4900, %v4863
        %v4902 = vadd.f32 %v4901, %v4864
        %v4903 = vadd.f32 %v4902, %v4865
        %v4904 = vadd.f32 %v4903, %v4866
        %v4905 = vadd.f32 %v4904, %v4867
        %v4906 = vadd.f32 %v4905, %v4868
        %v4907 = vadd.f32 %v4906, %v4869
        %v4908 = vadd.f32 %v4907, %v4870
        %v4909 = vadd.f32 %v4908, %v4871
        %v4910 = vadd.f32 %v4909, %v4872
        %v4911 = vadd.f32 %v4910, %v4873
        %v4912 = vadd.f32 %v4911, %v4874
        %v4913 = vrot.slane %v4912, 4
        %v4914 = vadd.f32 %v4912, %v4913
        %v4915 = vrot.slane %v4914, 2
        %v4916 = vadd.f32 %v4914, %v4915
        %v4917 = vrot.slane %v4916, 1
        %v4918 = vadd.f32 %v4916, %v4917
        %v4919 = vadd.f32 %v4881, %v4918
        %4920 = vst [vmem:[#allocation3] sm:$0x1] %v4919
        %v4921 = vld [vmem:[#allocation4] sm:$0x1]
        %v4922 = vmul.f32 %v4843, %v4843
        %v4923 = vmul.f32 %v4844, %v4844
        %v4924 = vmul.f32 %v4845, %v4845
        %v4925 = vmul.f32 %v4846, %v4846
        %v4926 = vmul.f32 %v4847, %v4847
        %v4927 = vmul.f32 %v4848, %v4848
        %v4928 = vmul.f32 %v4849, %v4849
        %v4929 = vmul.f32 %v4850, %v4850
        %v4930 = vmul.f32 %v4851, %v4851
        %v4931 = vmul.f32 %v4852, %v4852
        %v4932 = vmul.f32 %v4853, %v4853
        %v4933 = vmul.f32 %v4854, %v4854
        %v4934 = vmul.f32 %v4855, %v4855
        %v4935 = vmul.f32 %v4856, %v4856
        %v4936 = vmul.f32 %v4857, %v4857
        %v4937 = vmul.f32 %v4858, %v4858
        %v4938 = vmul.f32 %v4859, %v4859
        %v4939 = vmul.f32 %v4860, %v4860
        %v4940 = vmul.f32 %v4861, %v4861
        %v4941 = vmul.f32 %v4862, %v4862
        %v4942 = vmul.f32 %v4863, %v4863
        %v4943 = vmul.f32 %v4864, %v4864
        %v4944 = vmul.f32 %v4865, %v4865
        %v4945 = vmul.f32 %v4866, %v4866
        %v4946 = vmul.f32 %v4867, %v4867
        %v4947 = vmul.f32 %v4868, %v4868
        %v4948 = vmul.f32 %v4869, %v4869
        %v4949 = vmul.f32 %v4870, %v4870
        %v4950 = vmul.f32 %v4871, %v4871
        %v4951 = vmul.f32 %v4872, %v4872
        %v4952 = vmul.f32 %v4873, %v4873
        %v4953 = vmul.f32 %v4874, %v4874
        %v4954 = vadd.f32 %v4922, %v4923
        %v4955 = vadd.f32 %v4954, %v4924
        %v4956 = vadd.f32 %v4955, %v4925
        %v4957 = vadd.f32 %v4956, %v4926
        %v4958 = vadd.f32 %v4957, %v4927
        %v4959 = vadd.f32 %v4958, %v4928
        %v4960 = vadd.f32 %v4959, %v4929
        %v4961 = vadd.f32 %v4960, %v4930
        %v4962 = vadd.f32 %v4961, %v4931
        %v4963 = vadd.f32 %v4962, %v4932
        %v4964 = vadd.f32 %v4963, %v4933
        %v4965 = vadd.f32 %v4964, %v4934
        %v4966 = vadd.f32 %v4965, %v4935
        %v4967 = vadd.f32 %v4966, %v4936
        %v4968 = vadd.f32 %v4967, %v4937
        %v4969 = vadd.f32 %v4968, %v4938
        %v4970 = vadd.f32 %v4969, %v4939
        %v4971 = vadd.f32 %v4970, %v4940
        %v4972 = vadd.f32 %v4971, %v4941
        %v4973 = vadd.f32 %v4972, %v4942
        %v4974 = vadd.f32 %v4973, %v4943
        %v4975 = vadd.f32 %v4974, %v4944
        %v4976 = vadd.f32 %v4975, %v4945
        %v4977 = vadd.f32 %v4976, %v4946
        %v4978 = vadd.f32 %v4977, %v4947
        %v4979 = vadd.f32 %v4978, %v4948
        %v4980 = vadd.f32 %v4979, %v4949
        %v4981 = vadd.f32 %v4980, %v4950
        %v4982 = vadd.f32 %v4981, %v4951
        %v4983 = vadd.f32 %v4982, %v4952
        %v4984 = vadd.f32 %v4983, %v4953
        %v4985 = vrot.slane %v4984, 4
        %v4986 = vadd.f32 %v4984, %v4985
        %v4987 = vrot.slane %v4986, 2
        %v4988 = vadd.f32 %v4986, %v4987
        %v4989 = vrot.slane %v4988, 1
        %v4990 = vadd.f32 %v4988, %v4989
        %v4991 = vadd.f32 %v4921, %v4990
        %4992 = vst [vmem:[#allocation4] sm:$0x1] %v4991
        %s4993 = smul.u32 %s17, 256
        %s4994 = scalar_lea.vmem [#allocation5], %s4993
        %4995 = vst [vmem:[%s4994] sm:$0xff] %v4843
        %4996 = vst [vmem:[%s4994 + $0x8] sm:$0xff] %v4844
        %4997 = vst [vmem:[%s4994 + $0x10] sm:$0xff] %v4845
        %4998 = vst [vmem:[%s4994 + $0x18] sm:$0xff] %v4846
        %4999 = vst [vmem:[%s4994 + $0x20] sm:$0xff] %v4847
        %5000 = vst [vmem:[%s4994 + $0x28] sm:$0xff] %v4848
        %5001 = vst [vmem:[%s4994 + $0x30] sm:$0xff] %v4849
        %5002 = vst [vmem:[%s4994 + $0x38] sm:$0xff] %v4850
        %5003 = vst [vmem:[%s4994 + $0x40] sm:$0xff] %v4851
        %5004 = vst [vmem:[%s4994 + $0x48] sm:$0xff] %v4852
        %5005 = vst [vmem:[%s4994 + $0x50] sm:$0xff] %v4853
        %5006 = vst [vmem:[%s4994 + $0x58] sm:$0xff] %v4854
        %5007 = vst [vmem:[%s4994 + $0x60] sm:$0xff] %v4855
        %5008 = vst [vmem:[%s4994 + $0x68] sm:$0xff] %v4856
        %5009 = vst [vmem:[%s4994 + $0x70] sm:$0xff] %v4857
        %5010 = vst [vmem:[%s4994 + $0x78] sm:$0xff] %v4858
        %5011 = vst [vmem:[%s4994 + $0x80] sm:$0xff] %v4859
        %5012 = vst [vmem:[%s4994 + $0x88] sm:$0xff] %v4860
        %5013 = vst [vmem:[%s4994 + $0x90] sm:$0xff] %v4861
        %5014 = vst [vmem:[%s4994 + $0x98] sm:$0xff] %v4862
        %5015 = vst [vmem:[%s4994 + $0xa0] sm:$0xff] %v4863
        %5016 = vst [vmem:[%s4994 + $0xa8] sm:$0xff] %v4864
        %5017 = vst [vmem:[%s4994 + $0xb0] sm:$0xff] %v4865
        %5018 = vst [vmem:[%s4994 + $0xb8] sm:$0xff] %v4866
        %5019 = vst [vmem:[%s4994 + $0xc0] sm:$0xff] %v4867
        %5020 = vst [vmem:[%s4994 + $0xc8] sm:$0xff] %v4868
        %5021 = vst [vmem:[%s4994 + $0xd0] sm:$0xff] %v4869
        %5022 = vst [vmem:[%s4994 + $0xd8] sm:$0xff] %v4870
        %5023 = vst [vmem:[%s4994 + $0xe0] sm:$0xff] %v4871
        %5024 = vst [vmem:[%s4994 + $0xe8] sm:$0xff] %v4872
        %5025 = vst [vmem:[%s4994 + $0xf0] sm:$0xff] %v4873
        %5026 = vst [vmem:[%s4994 + $0xf8] sm:$0xff] %v4874
        %p5027 = scmp.eq.s32.totalorder %s17, 1
        // Predicated region
        $region45: #{tpu_custom_call.1} parent=39 // pred_check
          %p5028 = pneg %p5027
        $region46: #{tpu_custom_call.1} parent=39 // pred_check_branch
          %5030 = sbr.rel (%p5028) target = $region48
        $region47: #{tpu_custom_call.1} parent=39 // pred_region
          %v5031 = vld [vmem:[#allocation3] sm:$0x1]
          %v5032 = vmul.f32 %v5031, 0.001953125
          %v5033 = vld [vmem:[#allocation4] sm:$0x1]
          %v5034 = vmul.f32 %v5033, 0.001953125
          %v5035 = vmul.f32 %v5032, %v5032
          %v5036 = vsub.f32 %v5034, %v5035
          %v5037 = vmax.f32 %v5036, 0.0
          %v5038 = vld [vmem:[%s3] sm:$0x1]
          %v5039 = vadd.f32 %v5037, 1e-05
          %v5040 = vrsqrt.pop %v5039
          %v5041 = vmul.f32 %v5040, %v5039
          %v5042 = vmul.f32 %v5041, %v5040
          %v5043 = vmul.f32 0.5, %v5042
          %v5044 = vsub.f32 1.5, %v5043
          %v5045 = vmul.f32 %v5040, %v5044
          %vm5046 = vweird.f32 %v5039
          %vm5047 = vweird.f32 %v5040
          %vm5048 = vmor %vm5046, %vm5047
          %v5049 = vsel %vm5048, %v5040, %v5045
          %v5050 = vmul.f32 %v5038, %v5049
          %v5051 = vld [vmem:[%s4] sm:$0x1]
          %v5052 = vmul.f32 %v5032, %v5050
          %v5053 = vsub.f32 %v5051, %v5052
          loop: start=0, step=1, limit=2
          $region49: #{tpu_custom_call.1} parent=47 // loop_pre_header
            _
          $region50: #{tpu_custom_call.1} parent=47 // loop_header
            %s5055 = sphi 0, %s5059
            %p5056 = scmp.ge.s32.totalorder %s5055, 2
          $region51: #{tpu_custom_call.1} parent=47 // loop_header_branch
            %5058 = sbr.rel (%p5056) target = $region55
          $region52: #{tpu_custom_call.1} parent=47 // loop_body
            %s5060 = smul.u32 %s5055, 256
            %s5061 = scalar_lea.vmem [#allocation5], %s5060
            %v5062 = vld [vmem:[%s5061] sm:$0xff]
            %v5063 = vld [vmem:[%s5061 + $0x8] sm:$0xff]
            %v5064 = vld [vmem:[%s5061 + $0x10] sm:$0xff]
            %v5065 = vld [vmem:[%s5061 + $0x18] sm:$0xff]
            %v5066 = vld [vmem:[%s5061 + $0x20] sm:$0xff]
            %v5067 = vld [vmem:[%s5061 + $0x28] sm:$0xff]
            %v5068 = vld [vmem:[%s5061 + $0x30] sm:$0xff]
            %v5069 = vld [vmem:[%s5061 + $0x38] sm:$0xff]
            %v5070 = vld [vmem:[%s5061 + $0x40] sm:$0xff]
            %v5071 = vld [vmem:[%s5061 + $0x48] sm:$0xff]
            %v5072 = vld [vmem:[%s5061 + $0x50] sm:$0xff]
            %v5073 = vld [vmem:[%s5061 + $0x58] sm:$0xff]
            %v5074 = vld [vmem:[%s5061 + $0x60] sm:$0xff]
            %v5075 = vld [vmem:[%s5061 + $0x68] sm:$0xff]
            %v5076 = vld [vmem:[%s5061 + $0x70] sm:$0xff]
            %v5077 = vld [vmem:[%s5061 + $0x78] sm:$0xff]
            %v5078 = vld [vmem:[%s5061 + $0x80] sm:$0xff]
            %v5079 = vld [vmem:[%s5061 + $0x88] sm:$0xff]
            %v5080 = vld [vmem:[%s5061 + $0x90] sm:$0xff]
            %v5081 = vld [vmem:[%s5061 + $0x98] sm:$0xff]
            %v5082 = vld [vmem:[%s5061 + $0xa0] sm:$0xff]
            %v5083 = vld [vmem:[%s5061 + $0xa8] sm:$0xff]
            %v5084 = vld [vmem:[%s5061 + $0xb0] sm:$0xff]
            %v5085 = vld [vmem:[%s5061 + $0xb8] sm:$0xff]
            %v5086 = vld [vmem:[%s5061 + $0xc0] sm:$0xff]
            %v5087 = vld [vmem:[%s5061 + $0xc8] sm:$0xff]
            %v5088 = vld [vmem:[%s5061 + $0xd0] sm:$0xff]
            %v5089 = vld [vmem:[%s5061 + $0xd8] sm:$0xff]
            %v5090 = vld [vmem:[%s5061 + $0xe0] sm:$0xff]
            %v5091 = vld [vmem:[%s5061 + $0xe8] sm:$0xff]
            %v5092 = vld [vmem:[%s5061 + $0xf0] sm:$0xff]
            %v5093 = vld [vmem:[%s5061 + $0xf8] sm:$0xff]
            %v5095 = vperm.slane %v5050, 0
            %v5097 = vmul.f32 %v5062, %v5095
            %v5098 = vmul.f32 %v5063, %v5095
            %v5099 = vmul.f32 %v5064, %v5095
            %v5100 = vmul.f32 %v5065, %v5095
            %v5101 = vmul.f32 %v5066, %v5095
            %v5102 = vmul.f32 %v5067, %v5095
            %v5103 = vmul.f32 %v5068, %v5095
            %v5104 = vmul.f32 %v5069, %v5095
            %v5105 = vmul.f32 %v5070, %v5095
            %v5106 = vmul.f32 %v5071, %v5095
            %v5107 = vmul.f32 %v5072, %v5095
            %v5108 = vmul.f32 %v5073, %v5095
            %v5109 = vmul.f32 %v5074, %v5095
            %v5110 = vmul.f32 %v5075, %v5095
            %v5111 = vmul.f32 %v5076, %v5095
            %v5112 = vmul.f32 %v5077, %v5095
            %v5113 = vmul.f32 %v5078, %v5095
            %v5114 = vmul.f32 %v5079, %v5095
            %v5115 = vmul.f32 %v5080, %v5095
            %v5116 = vmul.f32 %v5081, %v5095
            %v5117 = vmul.f32 %v5082, %v5095
            %v5118 = vmul.f32 %v5083, %v5095
            %v5119 = vmul.f32 %v5084, %v5095
            %v5120 = vmul.f32 %v5085, %v5095
            %v5121 = vmul.f32 %v5086, %v5095
            %v5122 = vmul.f32 %v5087, %v5095
            %v5123 = vmul.f32 %v5088, %v5095
            %v5124 = vmul.f32 %v5089, %v5095
            %v5125 = vmul.f32 %v5090, %v5095
            %v5126 = vmul.f32 %v5091, %v5095
            %v5127 = vmul.f32 %v5092, %v5095
            %v5128 = vmul.f32 %v5093, %v5095
            %v5130 = vperm.slane %v5053, 0
            %v5132 = vadd.f32 %v5097, %v5130
            %v5133 = vadd.f32 %v5098, %v5130
            %v5134 = vadd.f32 %v5099, %v5130
            %v5135 = vadd.f32 %v5100, %v5130
            %v5136 = vadd.f32 %v5101, %v5130
            %v5137 = vadd.f32 %v5102, %v5130
            %v5138 = vadd.f32 %v5103, %v5130
            %v5139 = vadd.f32 %v5104, %v5130
            %v5140 = vadd.f32 %v5105, %v5130
            %v5141 = vadd.f32 %v5106, %v5130
            %v5142 = vadd.f32 %v5107, %v5130
            %v5143 = vadd.f32 %v5108, %v5130
            %v5144 = vadd.f32 %v5109, %v5130
            %v5145 = vadd.f32 %v5110, %v5130
            %v5146 = vadd.f32 %v5111, %v5130
            %v5147 = vadd.f32 %v5112, %v5130
            %v5148 = vadd.f32 %v5113, %v5130
            %v5149 = vadd.f32 %v5114, %v5130
            %v5150 = vadd.f32 %v5115, %v5130
            %v5151 = vadd.f32 %v5116, %v5130
            %v5152 = vadd.f32 %v5117, %v5130
            %v5153 = vadd.f32 %v5118, %v5130
            %v5154 = vadd.f32 %v5119, %v5130
            %v5155 = vadd.f32 %v5120, %v5130
            %v5156 = vadd.f32 %v5121, %v5130
            %v5157 = vadd.f32 %v5122, %v5130
            %v5158 = vadd.f32 %v5123, %v5130
            %v5159 = vadd.f32 %v5124, %v5130
            %v5160 = vadd.f32 %v5125, %v5130
            %v5161 = vadd.f32 %v5126, %v5130
            %v5162 = vadd.f32 %v5127, %v5130
            %v5163 = vadd.f32 %v5128, %v5130
            %v5164 = vmax.f32 %v5132, 0.0
            %v5165 = vmax.f32 %v5133, 0.0
            %v5166 = vmax.f32 %v5134, 0.0
            %v5167 = vmax.f32 %v5135, 0.0
            %v5168 = vmax.f32 %v5136, 0.0
            %v5169 = vmax.f32 %v5137, 0.0
            %v5170 = vmax.f32 %v5138, 0.0
            %v5171 = vmax.f32 %v5139, 0.0
            %v5172 = vmax.f32 %v5140, 0.0
            %v5173 = vmax.f32 %v5141, 0.0
            %v5174 = vmax.f32 %v5142, 0.0
            %v5175 = vmax.f32 %v5143, 0.0
            %v5176 = vmax.f32 %v5144, 0.0
            %v5177 = vmax.f32 %v5145, 0.0
            %v5178 = vmax.f32 %v5146, 0.0
            %v5179 = vmax.f32 %v5147, 0.0
            %v5180 = vmax.f32 %v5148, 0.0
            %v5181 = vmax.f32 %v5149, 0.0
            %v5182 = vmax.f32 %v5150, 0.0
            %v5183 = vmax.f32 %v5151, 0.0
            %v5184 = vmax.f32 %v5152, 0.0
            %v5185 = vmax.f32 %v5153, 0.0
            %v5186 = vmax.f32 %v5154, 0.0
            %v5187 = vmax.f32 %v5155, 0.0
            %v5188 = vmax.f32 %v5156, 0.0
            %v5189 = vmax.f32 %v5157, 0.0
            %v5190 = vmax.f32 %v5158, 0.0
            %v5191 = vmax.f32 %v5159, 0.0
            %v5192 = vmax.f32 %v5160, 0.0
            %v5193 = vmax.f32 %v5161, 0.0
            %v5194 = vmax.f32 %v5162, 0.0
            %v5195 = vmax.f32 %v5163, 0.0
            %5196 = vst [vmem:[%s5061] sm:$0xff] %v5164
            %5197 = vst [vmem:[%s5061 + $0x8] sm:$0xff] %v5165
            %5198 = vst [vmem:[%s5061 + $0x10] sm:$0xff] %v5166
            %5199 = vst [vmem:[%s5061 + $0x18] sm:$0xff] %v5167
            %5200 = vst [vmem:[%s5061 + $0x20] sm:$0xff] %v5168
            %5201 = vst [vmem:[%s5061 + $0x28] sm:$0xff] %v5169
            %5202 = vst [vmem:[%s5061 + $0x30] sm:$0xff] %v5170
            %5203 = vst [vmem:[%s5061 + $0x38] sm:$0xff] %v5171
            %5204 = vst [vmem:[%s5061 + $0x40] sm:$0xff] %v5172
            %5205 = vst [vmem:[%s5061 + $0x48] sm:$0xff] %v5173
            %5206 = vst [vmem:[%s5061 + $0x50] sm:$0xff] %v5174
            %5207 = vst [vmem:[%s5061 + $0x58] sm:$0xff] %v5175
            %5208 = vst [vmem:[%s5061 + $0x60] sm:$0xff] %v5176
            %5209 = vst [vmem:[%s5061 + $0x68] sm:$0xff] %v5177
            %5210 = vst [vmem:[%s5061 + $0x70] sm:$0xff] %v5178
            %5211 = vst [vmem:[%s5061 + $0x78] sm:$0xff] %v5179
            %5212 = vst [vmem:[%s5061 + $0x80] sm:$0xff] %v5180
            %5213 = vst [vmem:[%s5061 + $0x88] sm:$0xff] %v5181
            %5214 = vst [vmem:[%s5061 + $0x90] sm:$0xff] %v5182
            %5215 = vst [vmem:[%s5061 + $0x98] sm:$0xff] %v5183
            %5216 = vst [vmem:[%s5061 + $0xa0] sm:$0xff] %v5184
            %5217 = vst [vmem:[%s5061 + $0xa8] sm:$0xff] %v5185
            %5218 = vst [vmem:[%s5061 + $0xb0] sm:$0xff] %v5186
            %5219 = vst [vmem:[%s5061 + $0xb8] sm:$0xff] %v5187
            %5220 = vst [vmem:[%s5061 + $0xc0] sm:$0xff] %v5188
            %5221 = vst [vmem:[%s5061 + $0xc8] sm:$0xff] %v5189
            %5222 = vst [vmem:[%s5061 + $0xd0] sm:$0xff] %v5190
            %5223 = vst [vmem:[%s5061 + $0xd8] sm:$0xff] %v5191
            %5224 = vst [vmem:[%s5061 + $0xe0] sm:$0xff] %v5192
            %5225 = vst [vmem:[%s5061 + $0xe8] sm:$0xff] %v5193
            %5226 = vst [vmem:[%s5061 + $0xf0] sm:$0xff] %v5194
            %5227 = vst [vmem:[%s5061 + $0xf8] sm:$0xff] %v5195
          $region53: #{tpu_custom_call.1} parent=47 // loop_footer
            %s5059 = sadd.s32 1, %s5055
          $region54: #{tpu_custom_call.1} parent=47 // loop_footer_branch
            %5054 = sbr.rel target = $region50
          $region55: #{tpu_custom_call.1} parent=47 // loop_exit
            _
        $region48: #{tpu_custom_call.1} parent=39 // pred_fallthru
          _
        // Predicated region
        $region56: #{tpu_custom_call.1} parent=39 // pred_check
          %p5228 = pneg %p140
        $region57: #{tpu_custom_call.1} parent=39 // pred_check_branch
          %5230 = sbr.rel (%p5228) target = $region59
        $region58: #{tpu_custom_call.1} parent=39 // pred_region
          %5232 = vsyncadd [#allocation6], 0
          %s5233 = sshll.u32 [#allocation5], 4
          %s5234 = int_to_ptr.vmem [resolvable:$true] %s5233
          %s5235 = sshll.u32 %s5, 4
          %s5236 = int_to_ptr.hbm [resolvable:$true] %s5235
          %5241 = dma.vmem_to_hbm [thread:$0]  %s5234, 8192, %s5236, [#allocation6], 128, 128, 8
        $region59: #{tpu_custom_call.1} parent=39 // pred_fallthru
          _
        // Predicated region
        $region60: #{tpu_custom_call.1} parent=39 // pred_check
          %p5242 = pneg %p140
        $region61: #{tpu_custom_call.1} parent=39 // pred_check_branch
          %5244 = sbr.rel (%p5242) target = $region63
        $region62: #{tpu_custom_call.1} parent=39 // pred_region
          %5246 = dma.done [#allocation6], 8192
        $region63: #{tpu_custom_call.1} parent=39 // pred_fallthru
          _
      $region40: #{tpu_custom_call.1} parent=5 // pred_fallthru
        _
      %p5247 = scmp.le.s32.totalorder 2, %s12
      // Predicated region
      $region64: #{tpu_custom_call.1} parent=5 // pred_check
        %p5248 = pneg %p5247
      $region65: #{tpu_custom_call.1} parent=5 // pred_check_branch
        %5250 = sbr.rel (%p5248) target = $region67
      $region66: #{tpu_custom_call.1} parent=5 // pred_region
        %s5251 = ssub.s32 %s12, 2
      $region67: #{tpu_custom_call.1} parent=5 // pred_fallthru
        _
    $region6: #{tpu_custom_call.1} parent=1 // loop_footer
      %s16 = sadd.s32 1, %s12
    $region7: #{tpu_custom_call.1} parent=1 // loop_footer_branch
      %11 = sbr.rel target = $region3
    $region8: #{tpu_custom_call.1} parent=1 // loop_exit
      _
    %5252 = vsyncpa [#allocation6], 1
    %s5253 = scalar_lea.sflag [#allocation6], 1
    %5254 = vsyncpa %s5253, 1

</llo_original>
